<compile_context>
chip_gen: v6e
topology: v6e:2x2x1
jax: 0.10.0
libtpu: 0.0.40
codegen_flags: <defaults>
</compile_context>

<pallas_src>
import numpy as np
import jax
import jax.numpy as jnp
from jax.experimental import pallas as pl
from jax.experimental.pallas import tpu as pltpu


def _round_up(v, m):
    return ((v + m - 1) // m) * m


def _harmonic_kernel(x_ref, sel_ref, freq_ref, phase_ref, out_ref):
    """One grid step.

    x_ref:     [R, G*D]     f32   (G original rows folded into each block row)
    sel_ref:   [3*G*D, W]   bf16  0/1 selection matrix, stacked for hi/mid/lo,
                                  W = G * 2 * D * H
    freq_ref:  [1, W]       f32   frequencies[h(lane)]
    phase_ref: [1, W]       f32   0.0 on sin lanes, pi/2 on cos lanes
    out_ref:   [R, W]             lane-dense fused (sin, cos) output
    """
    x = x_ref[...]

    # Exact 8/8/8 split of the 24-bit f32 mantissa into three bf16 parts.
    # `hi` keeps the top 16 bits of the f32 encoding (truncation, not RN), so
    # hi + mid + lo == x bit-exactly and every partial sum is representable in
    # f32 -> the 0/1 selection matmul below reconstructs x exactly.
    xu = pltpu.bitcast(x, jnp.uint32)
    hi_f = pltpu.bitcast(xu & np.uint32(0xFFFF0000), jnp.float32)
    hi = hi_f.astype(jnp.bfloat16)                             # exact: low bits zero
    r1 = x - hi_f                                              # exact, <= 16 bits
    mid = r1.astype(jnp.bfloat16)
    lo = (r1 - mid.astype(jnp.float32)).astype(jnp.bfloat16)   # exact, <= 8 bits

    # Single MXU drain: [R, 3*G*D] x [3*G*D, W] with f32 accumulation replaces
    # the previous three dots + two [R, W] f32 adds.
    parts = jnp.concatenate([hi, mid, lo], axis=-1)
    x_exp = jnp.dot(parts, sel_ref[...], preferred_element_type=jnp.float32)

    # One multiply, one add, ONE sin per output element.  sin(t + pi/2) stands
    # in for cos(t) on the cos lanes (<= ~2e-6 deviation for |t| <= ~51 with
    # unit-norm inputs).
    out_ref[...] = jnp.sin(x_exp * freq_ref[...] + phase_ref[...]).astype(out_ref.dtype)


def _default_tile_rows():
    # Bigger tiles amortize the ~0.35 us/step pipeline overhead where VMEM is
    # plentiful (v5e/v6e: 128 MiB); keep rows-per-step modest on 64-MiB v7x.
    try:
        vmem = pltpu.get_tpu_info().vmem_capacity_bytes
    except Exception:   # unknown chip / query unavailable -> conservative choice
        vmem = 64 * 1024 * 1024
    return 16384 if vmem > 64 * 1024 * 1024 else 8192


def harmonic_embedding(x, frequencies, *, tile_rows=None, fold=32,
                       out_dtype=jnp.float32, trim=True,
                       vmem_limit_bytes=48 * 1024 * 1024):
    """Pallas equivalent of HarmonicEmbedding.forward.

    Args:
        x: float array of shape [..., dim]
        frequencies: float array of shape [n_harmonic_functions]
        tile_rows: rows processed per grid step; None -> auto per chip
            (16384 on 128-MiB-VMEM v5e/v6e, 8192 on 64-MiB v7x). Sweepable.
        fold: rows folded into the lane axis; fold*2*dim*H should be a multiple
            of 128 for unmasked stores (32 -> 1920 lanes for dim=3, H=10).
        out_dtype: jnp.float32 (exact) or jnp.bfloat16 (halves store traffic).
        trim: if False, return the padded [Np, 2*dim*H] slab so a fused
            consumer avoids a second HBM pass for the [:N] slice.
        vmem_limit_bytes: Mosaic scoped-VMEM cap (48 MiB leaves headroom on v7x).
    Returns:
        array of shape [..., 2 * dim * n_harmonic_functions] (or padded slab).
    """
    x = jnp.asarray(x, jnp.float32)
    frequencies = jnp.asarray(frequencies, jnp.float32)

    *lead, D = x.shape
    H = frequencies.shape[0]
    N = int(np.prod(lead)) if lead else 1

    G = int(fold)
    row_w = 2 * D * H              # output width per original input row
    W = G * row_w                  # lane width of one folded kernel row

    if tile_rows is None:
        tile_rows = _default_tile_rows()

    # Rows-per-step must be a multiple of 16*G so the folded block keeps
    # sublane-packable row counts for both f32 and bf16 outputs.
    unit = 16 * G
    N1 = max(N, 1)
    tr = min(_round_up(int(tile_rows), unit), _round_up(N1, unit))
    n_steps = -(-N1 // tr)
    if n_steps > 1 and n_steps % 2 == 1:
        n_steps += 1               # even split across v7x's two TensorCores
    tr = _round_up(-(-N1 // n_steps), unit)
    Np = tr * n_steps
    rg = tr // G                   # folded rows per block (multiple of 16)

    x_flat = x.reshape(N, D)
    if Np != N:
        x_flat = jnp.concatenate(
            [x_flat, jnp.zeros((Np - N, D), jnp.float32)], axis=0)
    # Free row-major fold of G rows into the lane axis (lane-dense output).
    x_fold = x_flat.reshape(Np // G, G * D)

    # Constant tables: lane l -> (g, s, d, h) with h fastest, matching the
    # PyTorch `.view(*shape[:-1], -1)` + cat((sin, cos), -1) ordering.
    l = np.arange(W)
    g = l // row_w
    rem = l % row_w
    s = rem // (D * H)
    d = (rem % (D * H)) // H
    h = (rem % H).astype(np.int32)

    sel_np = np.zeros((G * D, W), np.float32)
    sel_np[g * D + d, l] = 1.0
    sel3 = jnp.asarray(np.concatenate([sel_np] * 3, axis=0), jnp.bfloat16)
    freq_row = frequencies[h].reshape(1, W)
    phase_row = jnp.asarray(
        (s == 1).astype(np.float32) * np.float32(np.pi / 2)).reshape(1, W)

    out = pl.pallas_call(
        _harmonic_kernel,
        out_shape=jax.ShapeDtypeStruct((Np // G, W), out_dtype),
        grid_spec=pltpu.PrefetchScalarGridSpec(
            num_scalar_prefetch=0,
            grid=(n_steps,),
            in_specs=[
                pl.BlockSpec((rg, G * D), lambda i: (i, 0)),
                # Constant-index operands: fetched once, not re-DMA'd per step.
                pl.BlockSpec((3 * G * D, W), lambda i: (0, 0)),
                pl.BlockSpec((1, W), lambda i: (0, 0)),
                pl.BlockSpec((1, W), lambda i: (0, 0)),
            ],
            out_specs=pl.BlockSpec((rg, W), lambda i: (i, 0)),
        ),
        compiler_params=pltpu.CompilerParams(
            dimension_semantics=("parallel",),
            vmem_limit_bytes=vmem_limit_bytes,
        ),
    )(x_fold, sel3, freq_row, phase_row)

    # Byte-identical unfold: one output row per input point.
    out = out.reshape(Np, row_w)
    if not trim:
        return out                 # rows >= N are padding
    return out[:N].reshape(*lead, row_w)


def harmonic_embedding_ref(x, frequencies):
    """Pure-JAX reference matching the PyTorch forward exactly."""
    x = jnp.asarray(x, jnp.float32)
    frequencies = jnp.asarray(frequencies, jnp.float32)
    embed = (x[..., None] * frequencies).reshape(*x.shape[:-1], -1)
    return jnp.concatenate([jnp.sin(embed), jnp.cos(embed)], axis=-1)


if __name__ == "__main__":
    # Deterministic "parameters": the frequencies buffer from __init__.
    n_harmonic_functions = 10
    omega0 = 0.1
    frequencies = omega0 * (2.0 ** jnp.arange(n_harmonic_functions,
                                              dtype=jnp.float32))

    key = jax.random.PRNGKey(0)
    k_small, k_big = jax.random.split(key)

    # EnvironmentMap.forward normalizes its direction inputs; mirror that here.
    x_small = jax.random.normal(k_small, (2, 8, 3), dtype=jnp.float32)
    x_small = x_small / (jnp.linalg.norm(x_small, axis=-1, keepdims=True) + 1e-6)
    out_small = jax.block_until_ready(harmonic_embedding(x_small, frequencies))
    ref_small = harmonic_embedding_ref(x_small, frequencies)
    assert out_small.shape == (2, 8, 2 * 3 * n_harmonic_functions), out_small.shape
    np.testing.assert_allclose(np.asarray(out_small), np.asarray(ref_small),
                               rtol=1e-5, atol=1e-5)

    # Larger input exercising the multi-step (even) grid and row padding.
    x_big = jax.random.normal(k_big, (20000, 3), dtype=jnp.float32)
    x_big = x_big / (jnp.linalg.norm(x_big, axis=-1, keepdims=True) + 1e-6)
    out_big = jax.block_until_ready(harmonic_embedding(x_big, frequencies))
    ref_big = harmonic_embedding_ref(x_big, frequencies)
    assert out_big.shape == (20000, 2 * 3 * n_harmonic_functions), out_big.shape
    np.testing.assert_allclose(np.asarray(out_big), np.asarray(ref_big),
                               rtol=1e-5, atol=1e-5)

    # bf16-output variant (halves the dominant store traffic; looser tolerance).
    out_bf16 = jax.block_until_ready(
        harmonic_embedding(x_big, frequencies, out_dtype=jnp.bfloat16))
    np.testing.assert_allclose(np.asarray(out_bf16.astype(jnp.float32)),
                               np.asarray(ref_big), rtol=0.0, atol=1e-2)

    print("KERNEL_OK")
</pallas_src>

<mosaic_0001>
module attributes {stable_mosaic.version = 11 : i64} {
  func.func @_harmonic_kernel(%arg0: i32, %arg1: memref<16x96xf32, #tpu.memory_space<vmem>>, %arg2: memref<288x1920xbf16, #tpu.memory_space<vmem>>, %arg3: memref<1x1920xf32, #tpu.memory_space<vmem>>, %arg4: memref<1x1920xf32, #tpu.memory_space<vmem>>, %arg5: memref<16x1920xf32, #tpu.memory_space<vmem>>) attributes {dimension_semantics = [#tpu.dimension_semantics<parallel>], iteration_bounds = array<i64: 1>, scalar_prefetch = 0 : i64, scratch_operands = 0 : i64, tpu.core_type = #tpu.core_type<tc>, window_params = [{transform_indices = @transform_0, window_bounds = array<i64: 16, 96>}, {pipeline_mode = #tpu.pipeline_mode<synchronous>, transform_indices = @transform_1, window_bounds = array<i64: 288, 1920>}, {pipeline_mode = #tpu.pipeline_mode<synchronous>, transform_indices = @transform_2, window_bounds = array<i64: 1, 1920>}, {pipeline_mode = #tpu.pipeline_mode<synchronous>, transform_indices = @transform_3, window_bounds = array<i64: 1, 1920>}, {transform_indices = @transform_4, window_bounds = array<i64: 16, 1920>}]} {
    %c0 = arith.constant 0 : index
    %c0_0 = arith.constant 0 : index
    %0 = vector.load %arg1[%c0, %c0_0] : memref<16x96xf32, #tpu.memory_space<vmem>>, vector<16x96xf32>
    %1 = tpu.bitcast %0 : vector<16x96xf32> -> vector<16x96xi32>
    %c-65536_i32 = arith.constant -65536 : i32
    %2 = vector.broadcast %c-65536_i32 : i32 to vector<16x96xi32>
    %3 = arith.andi %1, %2 : vector<16x96xi32>
    %4 = tpu.bitcast %3 : vector<16x96xi32> -> vector<16x96xf32>
    %5 = arith.truncf %4 : vector<16x96xf32> to vector<16x96xbf16>
    %6 = arith.subf %0, %4 : vector<16x96xf32>
    %7 = arith.truncf %6 : vector<16x96xf32> to vector<16x96xbf16>
    %8 = arith.extf %7 : vector<16x96xbf16> to vector<16x96xf32>
    %9 = arith.subf %6, %8 : vector<16x96xf32>
    %10 = arith.truncf %9 : vector<16x96xf32> to vector<16x96xbf16>
    %11 = tpu.concatenate %5, %7, %10 in 1 : vector<16x96xbf16>, vector<16x96xbf16>, vector<16x96xbf16> -> vector<16x288xbf16>
    %c0_1 = arith.constant 0 : index
    %c0_2 = arith.constant 0 : index
    %12 = vector.load %arg2[%c0_1, %c0_2] : memref<288x1920xbf16, #tpu.memory_space<vmem>>, vector<288x1920xbf16>
    %cst = arith.constant dense<0.000000e+00> : vector<16x1920xf32>
    %13 = tpu.matmul %11, %12, %cst {dimension_numbers = #tpu.dot_dimension_numbers<[1], [0], [0], [1], [0, 0, 1, 1], [], []>} : vector<16x288xbf16>, vector<288x1920xbf16>, vector<16x1920xf32> -> vector<16x1920xf32>
    %c0_3 = arith.constant 0 : index
    %c0_4 = arith.constant 0 : index
    %14 = vector.load %arg3[%c0_3, %c0_4] : memref<1x1920xf32, #tpu.memory_space<vmem>>, vector<1x1920xf32>
    %15 = vector.broadcast %14 : vector<1x1920xf32> to vector<16x1920xf32>
    %16 = arith.mulf %13, %15 : vector<16x1920xf32>
    %c0_5 = arith.constant 0 : index
    %c0_6 = arith.constant 0 : index
    %17 = vector.load %arg4[%c0_5, %c0_6] : memref<1x1920xf32, #tpu.memory_space<vmem>>, vector<1x1920xf32>
    %18 = vector.broadcast %17 : vector<1x1920xf32> to vector<16x1920xf32>
    %19 = arith.addf %16, %18 : vector<16x1920xf32>
    %20 = math.sin %19 : vector<16x1920xf32>
    %c0_7 = arith.constant 0 : index
    %c0_8 = arith.constant 0 : index
    %21 = vector.load %arg5[%c0_7, %c0_8] : memref<16x1920xf32, #tpu.memory_space<vmem>>, vector<16x1920xf32>
    tpu.vector_store %arg5[%c0_7, %c0_8], %20 {strides = array<i32>} : memref<16x1920xf32, #tpu.memory_space<vmem>>, vector<16x1920xf32>,
    return
  }
  func.func @transform_0(%arg0: i32) -> (i32, i32) {
    %c0_i32 = arith.constant 0 : i32
    %c0_i32_0 = arith.constant 0 : i32
    return %arg0, %c0_i32 : i32, i32
  }
  func.func @transform_1(%arg0: i32) -> (i32, i32) {
    %c0_i32 = arith.constant 0 : i32
    %c0_i32_0 = arith.constant 0 : i32
    %c0_i32_1 = arith.constant 0 : i32
    return %c0_i32, %c0_i32_0 : i32, i32
  }
  func.func @transform_2(%arg0: i32) -> (i32, i32) {
    %c0_i32 = arith.constant 0 : i32
    %c0_i32_0 = arith.constant 0 : i32
    %c0_i32_1 = arith.constant 0 : i32
    return %c0_i32, %c0_i32_0 : i32, i32
  }
  func.func @transform_3(%arg0: i32) -> (i32, i32) {
    %c0_i32 = arith.constant 0 : i32
    %c0_i32_0 = arith.constant 0 : i32
    %c0_i32_1 = arith.constant 0 : i32
    return %c0_i32, %c0_i32_0 : i32, i32
  }
  func.func @transform_4(%arg0: i32) -> (i32, i32) {
    %c0_i32 = arith.constant 0 : i32
    %c0_i32_0 = arith.constant 0 : i32
    return %arg0, %c0_i32 : i32, i32
  }
}

</mosaic_0001>

<llo_original>
// kernel: tpu_custom_call.1
$region0: #{tpu_custom_call.1}
  #allocation0 [shape = 'u32[]', space=smem, size = 0x4, offset = 0x4, fixed_abs, tag = 'smem constant byte address 0x4 - core index']
  #allocation1 [shape = 'u32[144,128]{1,0:T(1,128)}', space=vmem, size = 0x12000, scoped, tag = 'internal scratch']
  %s0 = inlined_call_operand.hbm [shape: f32[16,96], index: 0, kind: input, shape index: {}]
  %s1 = inlined_call_operand.hbm [shape: bf16[288,1920], index: 1, kind: input, shape index: {}]
  %s2 = inlined_call_operand.hbm [shape: f32[1,1920], index: 2, kind: input, shape index: {}]
  %s3 = inlined_call_operand.hbm [shape: f32[1,1920], index: 3, kind: input, shape index: {}]
  %s4 = inlined_call_operand.hbm [shape: f32[16,1920], index: 4, kind: output, shape index: {}]
  %s5 = sld [smem:[#allocation0]]
  $region42: #{tpu_custom_call.1} parent=0
    _
  %s7 = ssub.s32 1, %s5
  %s8 = scalar_select 0, %s7, %s5
  $region1: #{tpu_custom_call.1} parent=0
    #allocation2 [shape = 'u8[8192]{0}', space=vmem, size = 0x2000, scoped, tag = 'input window, operand 0, single buffered']
    #allocation3 [shape = 's32[1]{0}', space=sflag, size = 0x4, scoped, tag = 'scoped memory for tpu_custom_call.1']
    #allocation4 [shape = 's32[1]{0}', space=sflag, size = 0x4, scoped, tag = 'scoped memory for tpu_custom_call.1']
    #allocation5 [shape = 'u8[1105920]{0}', space=vmem, size = 0x10e000, scoped, tag = 'input window, operand 1, single buffered']
    #allocation6 [shape = 's32[1]{0}', space=sflag, size = 0x4, scoped, tag = 'scoped memory for tpu_custom_call.1']
    #allocation7 [shape = 'u8[7680]{0}', space=vmem, size = 0x2000, scoped, tag = 'input window, operand 2, single buffered']
    #allocation8 [shape = 'u8[7680]{0}', space=vmem, size = 0x2000, scoped, tag = 'input window, operand 3, single buffered']
    #allocation9 [shape = 's32[1]{0}', space=sflag, size = 0x4, scoped, tag = 'scoped memory for tpu_custom_call.1']
    #allocation10 [shape = 'u8[122880]{0}', space=vmem, size = 0x1e000, scoped, tag = 'output window, operand 0, single buffered']
    %9 = vsyncpa [#allocation3], 0
    %10 = vsyncpa [#allocation6], 0
    %11 = vsyncpa [#allocation9], 0
    %12 = vsyncpa [#allocation4], 0
    // Predicated region
    $region2: #{tpu_custom_call.1} parent=1 // pred_check
      _
    $region3: #{tpu_custom_call.1} parent=1 // pred_check_branch
      %14 = sbr.rel (0) target = $region5
    $region4: #{tpu_custom_call.1} parent=1 // pred_region
      %s16 = ssub.s32 256, 256
      %17 = vsyncadd [#allocation3], %s16
      %s18 = sshll.u32 [#allocation2], 4
      %s19 = int_to_ptr.vmem [resolvable:$true] %s18
      %24 = dma.hbm_to_vmem [thread:$0]  %s0, 256, %s19, [#allocation3], 128, 128, 8
    $region5: #{tpu_custom_call.1} parent=1 // pred_fallthru
      _
    // Predicated region
    $region6: #{tpu_custom_call.1} parent=1 // pred_check
      _
    $region7: #{tpu_custom_call.1} parent=1 // pred_check_branch
      %26 = sbr.rel (0) target = $region9
    $region8: #{tpu_custom_call.1} parent=1 // pred_region
      %s28 = ssub.s32 34560, 34560
      %29 = vsyncadd [#allocation6], %s28
      %s30 = sshll.u32 [#allocation5], 4
      %s31 = int_to_ptr.vmem [resolvable:$true] %s30
      %36 = dma.hbm_to_vmem [thread:$0]  %s1, 34560, %s31, [#allocation6], 960, 960, 60
    $region9: #{tpu_custom_call.1} parent=1 // pred_fallthru
      _
    // Predicated region
    $region10: #{tpu_custom_call.1} parent=1 // pred_check
      _
    $region11: #{tpu_custom_call.1} parent=1 // pred_check_branch
      %38 = sbr.rel (0) target = $region13
    $region12: #{tpu_custom_call.1} parent=1 // pred_region
      %s40 = ssub.s32 240, 240
      %41 = vsyncadd [#allocation6], %s40
      %s43 = sshll.u32 [#allocation7], 4
      %s44 = int_to_ptr.vmem [resolvable:$true] %s43
      %46 = dma.hbm_to_vmem [thread:$0]  %s2, 240, %s44, [#allocation6]
    $region13: #{tpu_custom_call.1} parent=1 // pred_fallthru
      _
    // Predicated region
    $region14: #{tpu_custom_call.1} parent=1 // pred_check
      _
    $region15: #{tpu_custom_call.1} parent=1 // pred_check_branch
      %48 = sbr.rel (0) target = $region17
    $region16: #{tpu_custom_call.1} parent=1 // pred_region
      %s50 = ssub.s32 240, 240
      %51 = vsyncadd [#allocation9], %s50
      %s53 = sshll.u32 [#allocation8], 4
      %s54 = int_to_ptr.vmem [resolvable:$true] %s53
      %56 = dma.hbm_to_vmem [thread:$0]  %s3, 240, %s54, [#allocation9]
    $region17: #{tpu_custom_call.1} parent=1 // pred_fallthru
      _
    // Predicated region
    $region18: #{tpu_custom_call.1} parent=1 // pred_check
      _
    $region19: #{tpu_custom_call.1} parent=1 // pred_check_branch
      %58 = sbr.rel (0) target = $region21
    $region20: #{tpu_custom_call.1} parent=1 // pred_region
      %59 = dma.done [#allocation3], 256
    $region21: #{tpu_custom_call.1} parent=1 // pred_fallthru
      _
    // Predicated region
    $region22: #{tpu_custom_call.1} parent=1 // pred_check
      _
    $region23: #{tpu_custom_call.1} parent=1 // pred_check_branch
      %61 = sbr.rel (0) target = $region25
    $region24: #{tpu_custom_call.1} parent=1 // pred_region
      %62 = dma.done [#allocation6], 34560
    $region25: #{tpu_custom_call.1} parent=1 // pred_fallthru
      _
    // Predicated region
    $region26: #{tpu_custom_call.1} parent=1 // pred_check
      _
    $region27: #{tpu_custom_call.1} parent=1 // pred_check_branch
      %64 = sbr.rel (0) target = $region29
    $region28: #{tpu_custom_call.1} parent=1 // pred_region
      %65 = dma.done [#allocation6], 240
    $region29: #{tpu_custom_call.1} parent=1 // pred_fallthru
      _
    // Predicated region
    $region30: #{tpu_custom_call.1} parent=1 // pred_check
      _
    $region31: #{tpu_custom_call.1} parent=1 // pred_check_branch
      %67 = sbr.rel (0) target = $region33
    $region32: #{tpu_custom_call.1} parent=1 // pred_region
      %68 = dma.done [#allocation9], 240
    $region33: #{tpu_custom_call.1} parent=1 // pred_fallthru
      _
    %v70 = vld [vmem:[#allocation2] sm:$0xff]
    %v71 = vld [vmem:[#allocation2 + $0x8] sm:$0xff]
    %v74 = vand.u32 %v70, 4294901760
    %v75 = vand.u32 %v71, 4294901760
    %v78 = vpack.c.bf16 %v75, %v74
    %v79 = vsub.f32 %v70, %v74
    %v80 = vsub.f32 %v71, %v75
    %v81 = vpack.c.bf16 %v80, %v79
    %v82 = vunpack.c.l.bf16 %v81
    %v83 = vunpack.c.h.bf16 %v81
    %v84 = vsub.f32 %v79, %v82
    %v85 = vsub.f32 %v80, %v83
    %v86 = vpack.c.bf16 %v85, %v84
    %88 = vrot.lane.b32.xlu0 %v81, 96
    %v89 = vpop.permute.xlu0 %88
    %91 = vrot.lane.b32.xlu0 %v86, 64
    %v92 = vpop.permute.xlu0 %91
    %vm93 = vcmask 785408
    %v96 = vsel %vm93, %v78, %v89
    %vm98 = vcmask 523264
    %v100 = vsel %vm98, %v89, %v92
    %v102 = vld [vmem:[#allocation5] sm:$0xff]
    %v103 = vld [vmem:[#allocation5 + $0x8] sm:$0xff]
    %v104 = vld [vmem:[#allocation5 + $0x10] sm:$0xff]
    %v105 = vld [vmem:[#allocation5 + $0x18] sm:$0xff]
    %v106 = vld [vmem:[#allocation5 + $0x20] sm:$0xff]
    %v107 = vld [vmem:[#allocation5 + $0x28] sm:$0xff]
    %v108 = vld [vmem:[#allocation5 + $0x30] sm:$0xff]
    %v109 = vld [vmem:[#allocation5 + $0x38] sm:$0xf]
    %v110 = vld [vmem:[#allocation5 + $0x3c] sm:$0xff]
    %v111 = vld [vmem:[#allocation5 + $0x44] sm:$0xff]
    %v112 = vld [vmem:[#allocation5 + $0x4c] sm:$0xff]
    %v113 = vld [vmem:[#allocation5 + $0x54] sm:$0xff]
    %v114 = vld [vmem:[#allocation5 + $0x5c] sm:$0xff]
    %v115 = vld [vmem:[#allocation5 + $0x64] sm:$0xff]
    %v116 = vld [vmem:[#allocation5 + $0x6c] sm:$0xff]
    %v117 = vld [vmem:[#allocation5 + $0x74] sm:$0xf]
    %v118 = vld [vmem:[#allocation5 + $0x78] sm:$0xff]
    %v119 = vld [vmem:[#allocation5 + $0x80] sm:$0xff]
    %v120 = vld [vmem:[#allocation5 + $0x88] sm:$0xff]
    %v121 = vld [vmem:[#allocation5 + $0x90] sm:$0xff]
    %v122 = vld [vmem:[#allocation5 + $0x98] sm:$0xff]
    %v123 = vld [vmem:[#allocation5 + $0xa0] sm:$0xff]
    %v124 = vld [vmem:[#allocation5 + $0xa8] sm:$0xff]
    %v125 = vld [vmem:[#allocation5 + $0xb0] sm:$0xf]
    %v126 = vld [vmem:[#allocation5 + $0xb4] sm:$0xff]
    %v127 = vld [vmem:[#allocation5 + $0xbc] sm:$0xff]
    %v128 = vld [vmem:[#allocation5 + $0xc4] sm:$0xff]
    %v129 = vld [vmem:[#allocation5 + $0xcc] sm:$0xff]
    %v130 = vld [vmem:[#allocation5 + $0xd4] sm:$0xff]
    %v131 = vld [vmem:[#allocation5 + $0xdc] sm:$0xff]
    %v132 = vld [vmem:[#allocation5 + $0xe4] sm:$0xff]
    %v133 = vld [vmem:[#allocation5 + $0xec] sm:$0xf]
    %v134 = vld [vmem:[#allocation5 + $0xf0] sm:$0xff]
    %v135 = vld [vmem:[#allocation5 + $0xf8] sm:$0xff]
    %v136 = vld [vmem:[#allocation5 + $0x100] sm:$0xff]
    %v137 = vld [vmem:[#allocation5 + $0x108] sm:$0xff]
    %v138 = vld [vmem:[#allocation5 + $0x110] sm:$0xff]
    %v139 = vld [vmem:[#allocation5 + $0x118] sm:$0xff]
    %v140 = vld [vmem:[#allocation5 + $0x120] sm:$0xff]
    %v141 = vld [vmem:[#allocation5 + $0x128] sm:$0xf]
    %v142 = vld [vmem:[#allocation5 + $0x12c] sm:$0xff]
    %v143 = vld [vmem:[#allocation5 + $0x134] sm:$0xff]
    %v144 = vld [vmem:[#allocation5 + $0x13c] sm:$0xff]
    %v145 = vld [vmem:[#allocation5 + $0x144] sm:$0xff]
    %v146 = vld [vmem:[#allocation5 + $0x14c] sm:$0xff]
    %v147 = vld [vmem:[#allocation5 + $0x154] sm:$0xff]
    %v148 = vld [vmem:[#allocation5 + $0x15c] sm:$0xff]
    %v149 = vld [vmem:[#allocation5 + $0x164] sm:$0xf]
    %v150 = vld [vmem:[#allocation5 + $0x168] sm:$0xff]
    %v151 = vld [vmem:[#allocation5 + $0x170] sm:$0xff]
    %v152 = vld [vmem:[#allocation5 + $0x178] sm:$0xff]
    %v153 = vld [vmem:[#allocation5 + $0x180] sm:$0xff]
    %v154 = vld [vmem:[#allocation5 + $0x188] sm:$0xff]
    %v155 = vld [vmem:[#allocation5 + $0x190] sm:$0xff]
    %v156 = vld [vmem:[#allocation5 + $0x198] sm:$0xff]
    %v157 = vld [vmem:[#allocation5 + $0x1a0] sm:$0xf]
    %v158 = vld [vmem:[#allocation5 + $0x1a4] sm:$0xff]
    %v159 = vld [vmem:[#allocation5 + $0x1ac] sm:$0xff]
    %v160 = vld [vmem:[#allocation5 + $0x1b4] sm:$0xff]
    %v161 = vld [vmem:[#allocation5 + $0x1bc] sm:$0xff]
    %v162 = vld [vmem:[#allocation5 + $0x1c4] sm:$0xff]
    %v163 = vld [vmem:[#allocation5 + $0x1cc] sm:$0xff]
    %v164 = vld [vmem:[#allocation5 + $0x1d4] sm:$0xff]
    %v165 = vld [vmem:[#allocation5 + $0x1dc] sm:$0xf]
    %v166 = vld [vmem:[#allocation5 + $0x1e0] sm:$0xff]
    %v167 = vld [vmem:[#allocation5 + $0x1e8] sm:$0xff]
    %v168 = vld [vmem:[#allocation5 + $0x1f0] sm:$0xff]
    %v169 = vld [vmem:[#allocation5 + $0x1f8] sm:$0xff]
    %v170 = vld [vmem:[#allocation5 + $0x200] sm:$0xff]
    %v171 = vld [vmem:[#allocation5 + $0x208] sm:$0xff]
    %v172 = vld [vmem:[#allocation5 + $0x210] sm:$0xff]
    %v173 = vld [vmem:[#allocation5 + $0x218] sm:$0xf]
    %v174 = vld [vmem:[#allocation5 + $0x21c] sm:$0xff]
    %v175 = vld [vmem:[#allocation5 + $0x224] sm:$0xff]
    %v176 = vld [vmem:[#allocation5 + $0x22c] sm:$0xff]
    %v177 = vld [vmem:[#allocation5 + $0x234] sm:$0xff]
    %v178 = vld [vmem:[#allocation5 + $0x23c] sm:$0xff]
    %v179 = vld [vmem:[#allocation5 + $0x244] sm:$0xff]
    %v180 = vld [vmem:[#allocation5 + $0x24c] sm:$0xff]
    %v181 = vld [vmem:[#allocation5 + $0x254] sm:$0xf]
    %v182 = vld [vmem:[#allocation5 + $0x258] sm:$0xff]
    %v183 = vld [vmem:[#allocation5 + $0x260] sm:$0xff]
    %v184 = vld [vmem:[#allocation5 + $0x268] sm:$0xff]
    %v185 = vld [vmem:[#allocation5 + $0x270] sm:$0xff]
    %v186 = vld [vmem:[#allocation5 + $0x278] sm:$0xff]
    %v187 = vld [vmem:[#allocation5 + $0x280] sm:$0xff]
    %v188 = vld [vmem:[#allocation5 + $0x288] sm:$0xff]
    %v189 = vld [vmem:[#allocation5 + $0x290] sm:$0xf]
    %v190 = vld [vmem:[#allocation5 + $0x294] sm:$0xff]
    %v191 = vld [vmem:[#allocation5 + $0x29c] sm:$0xff]
    %v192 = vld [vmem:[#allocation5 + $0x2a4] sm:$0xff]
    %v193 = vld [vmem:[#allocation5 + $0x2ac] sm:$0xff]
    %v194 = vld [vmem:[#allocation5 + $0x2b4] sm:$0xff]
    %v195 = vld [vmem:[#allocation5 + $0x2bc] sm:$0xff]
    %v196 = vld [vmem:[#allocation5 + $0x2c4] sm:$0xff]
    %v197 = vld [vmem:[#allocation5 + $0x2cc] sm:$0xf]
    %v198 = vld [vmem:[#allocation5 + $0x2d0] sm:$0xff]
    %v199 = vld [vmem:[#allocation5 + $0x2d8] sm:$0xff]
    %v200 = vld [vmem:[#allocation5 + $0x2e0] sm:$0xff]
    %v201 = vld [vmem:[#allocation5 + $0x2e8] sm:$0xff]
    %v202 = vld [vmem:[#allocation5 + $0x2f0] sm:$0xff]
    %v203 = vld [vmem:[#allocation5 + $0x2f8] sm:$0xff]
    %v204 = vld [vmem:[#allocation5 + $0x300] sm:$0xff]
    %v205 = vld [vmem:[#allocation5 + $0x308] sm:$0xf]
    %v206 = vld [vmem:[#allocation5 + $0x30c] sm:$0xff]
    %v207 = vld [vmem:[#allocation5 + $0x314] sm:$0xff]
    %v208 = vld [vmem:[#allocation5 + $0x31c] sm:$0xff]
    %v209 = vld [vmem:[#allocation5 + $0x324] sm:$0xff]
    %v210 = vld [vmem:[#allocation5 + $0x32c] sm:$0xff]
    %v211 = vld [vmem:[#allocation5 + $0x334] sm:$0xff]
    %v212 = vld [vmem:[#allocation5 + $0x33c] sm:$0xff]
    %v213 = vld [vmem:[#allocation5 + $0x344] sm:$0xf]
    %v214 = vld [vmem:[#allocation5 + $0x348] sm:$0xff]
    %v215 = vld [vmem:[#allocation5 + $0x350] sm:$0xff]
    %v216 = vld [vmem:[#allocation5 + $0x358] sm:$0xff]
    %v217 = vld [vmem:[#allocation5 + $0x360] sm:$0xff]
    %v218 = vld [vmem:[#allocation5 + $0x368] sm:$0xff]
    %v219 = vld [vmem:[#allocation5 + $0x370] sm:$0xff]
    %v220 = vld [vmem:[#allocation5 + $0x378] sm:$0xff]
    %v221 = vld [vmem:[#allocation5 + $0x380] sm:$0xf]
    %v222 = vld [vmem:[#allocation5 + $0x384] sm:$0xff]
    %v223 = vld [vmem:[#allocation5 + $0x38c] sm:$0xff]
    %v224 = vld [vmem:[#allocation5 + $0x394] sm:$0xff]
    %v225 = vld [vmem:[#allocation5 + $0x39c] sm:$0xff]
    %v226 = vld [vmem:[#allocation5 + $0x3a4] sm:$0xff]
    %v227 = vld [vmem:[#allocation5 + $0x3ac] sm:$0xff]
    %v228 = vld [vmem:[#allocation5 + $0x3b4] sm:$0xff]
    %v229 = vld [vmem:[#allocation5 + $0x3bc] sm:$0xf]
    %v230 = vld [vmem:[#allocation5 + $0x3c0] sm:$0xff]
    %v231 = vld [vmem:[#allocation5 + $0x3c8] sm:$0xff]
    %v232 = vld [vmem:[#allocation5 + $0x3d0] sm:$0xff]
    %v233 = vld [vmem:[#allocation5 + $0x3d8] sm:$0xff]
    %v234 = vld [vmem:[#allocation5 + $0x3e0] sm:$0xff]
    %v235 = vld [vmem:[#allocation5 + $0x3e8] sm:$0xff]
    %v236 = vld [vmem:[#allocation5 + $0x3f0] sm:$0xff]
    %v237 = vld [vmem:[#allocation5 + $0x3f8] sm:$0xf]
    %v238 = vld [vmem:[#allocation5 + $0x3fc] sm:$0xff]
    %v239 = vld [vmem:[#allocation5 + $0x404] sm:$0xff]
    %v240 = vld [vmem:[#allocation5 + $0x40c] sm:$0xff]
    %v241 = vld [vmem:[#allocation5 + $0x414] sm:$0xff]
    %v242 = vld [vmem:[#allocation5 + $0x41c] sm:$0xff]
    %v243 = vld [vmem:[#allocation5 + $0x424] sm:$0xff]
    %v244 = vld [vmem:[#allocation5 + $0x42c] sm:$0xff]
    %v245 = vld [vmem:[#allocation5 + $0x434] sm:$0xf]
    %v246 = vld [vmem:[#allocation5 + $0x438] sm:$0xff]
    %v247 = vld [vmem:[#allocation5 + $0x440] sm:$0xff]
    %v248 = vld [vmem:[#allocation5 + $0x448] sm:$0xff]
    %v249 = vld [vmem:[#allocation5 + $0x450] sm:$0xff]
    %v250 = vld [vmem:[#allocation5 + $0x458] sm:$0xff]
    %v251 = vld [vmem:[#allocation5 + $0x460] sm:$0xff]
    %v252 = vld [vmem:[#allocation5 + $0x468] sm:$0xff]
    %v253 = vld [vmem:[#allocation5 + $0x470] sm:$0xf]
    %v254 = vld [vmem:[#allocation5 + $0x474] sm:$0xff]
    %v255 = vld [vmem:[#allocation5 + $0x47c] sm:$0xff]
    %v256 = vld [vmem:[#allocation5 + $0x484] sm:$0xff]
    %v257 = vld [vmem:[#allocation5 + $0x48c] sm:$0xff]
    %v258 = vld [vmem:[#allocation5 + $0x494] sm:$0xff]
    %v259 = vld [vmem:[#allocation5 + $0x49c] sm:$0xff]
    %v260 = vld [vmem:[#allocation5 + $0x4a4] sm:$0xff]
    %v261 = vld [vmem:[#allocation5 + $0x4ac] sm:$0xf]
    %v262 = vld [vmem:[#allocation5 + $0x4b0] sm:$0xff]
    %v263 = vld [vmem:[#allocation5 + $0x4b8] sm:$0xff]
    %v264 = vld [vmem:[#allocation5 + $0x4c0] sm:$0xff]
    %v265 = vld [vmem:[#allocation5 + $0x4c8] sm:$0xff]
    %v266 = vld [vmem:[#allocation5 + $0x4d0] sm:$0xff]
    %v267 = vld [vmem:[#allocation5 + $0x4d8] sm:$0xff]
    %v268 = vld [vmem:[#allocation5 + $0x4e0] sm:$0xff]
    %v269 = vld [vmem:[#allocation5 + $0x4e8] sm:$0xf]
    %v270 = vld [vmem:[#allocation5 + $0x4ec] sm:$0xff]
    %v271 = vld [vmem:[#allocation5 + $0x4f4] sm:$0xff]
    %v272 = vld [vmem:[#allocation5 + $0x4fc] sm:$0xff]
    %v273 = vld [vmem:[#allocation5 + $0x504] sm:$0xff]
    %v274 = vld [vmem:[#allocation5 + $0x50c] sm:$0xff]
    %v275 = vld [vmem:[#allocation5 + $0x514] sm:$0xff]
    %v276 = vld [vmem:[#allocation5 + $0x51c] sm:$0xff]
    %v277 = vld [vmem:[#allocation5 + $0x524] sm:$0xf]
    %v278 = vld [vmem:[#allocation5 + $0x528] sm:$0xff]
    %v279 = vld [vmem:[#allocation5 + $0x530] sm:$0xff]
    %v280 = vld [vmem:[#allocation5 + $0x538] sm:$0xff]
    %v281 = vld [vmem:[#allocation5 + $0x540] sm:$0xff]
    %v282 = vld [vmem:[#allocation5 + $0x548] sm:$0xff]
    %v283 = vld [vmem:[#allocation5 + $0x550] sm:$0xff]
    %v284 = vld [vmem:[#allocation5 + $0x558] sm:$0xff]
    %v285 = vld [vmem:[#allocation5 + $0x560] sm:$0xf]
    %v286 = vld [vmem:[#allocation5 + $0x564] sm:$0xff]
    %v287 = vld [vmem:[#allocation5 + $0x56c] sm:$0xff]
    %v288 = vld [vmem:[#allocation5 + $0x574] sm:$0xff]
    %v289 = vld [vmem:[#allocation5 + $0x57c] sm:$0xff]
    %v290 = vld [vmem:[#allocation5 + $0x584] sm:$0xff]
    %v291 = vld [vmem:[#allocation5 + $0x58c] sm:$0xff]
    %v292 = vld [vmem:[#allocation5 + $0x594] sm:$0xff]
    %v293 = vld [vmem:[#allocation5 + $0x59c] sm:$0xf]
    %v294 = vld [vmem:[#allocation5 + $0x5a0] sm:$0xff]
    %v295 = vld [vmem:[#allocation5 + $0x5a8] sm:$0xff]
    %v296 = vld [vmem:[#allocation5 + $0x5b0] sm:$0xff]
    %v297 = vld [vmem:[#allocation5 + $0x5b8] sm:$0xff]
    %v298 = vld [vmem:[#allocation5 + $0x5c0] sm:$0xff]
    %v299 = vld [vmem:[#allocation5 + $0x5c8] sm:$0xff]
    %v300 = vld [vmem:[#allocation5 + $0x5d0] sm:$0xff]
    %v301 = vld [vmem:[#allocation5 + $0x5d8] sm:$0xf]
    %v302 = vld [vmem:[#allocation5 + $0x5dc] sm:$0xff]
    %v303 = vld [vmem:[#allocation5 + $0x5e4] sm:$0xff]
    %v304 = vld [vmem:[#allocation5 + $0x5ec] sm:$0xff]
    %v305 = vld [vmem:[#allocation5 + $0x5f4] sm:$0xff]
    %v306 = vld [vmem:[#allocation5 + $0x5fc] sm:$0xff]
    %v307 = vld [vmem:[#allocation5 + $0x604] sm:$0xff]
    %v308 = vld [vmem:[#allocation5 + $0x60c] sm:$0xff]
    %v309 = vld [vmem:[#allocation5 + $0x614] sm:$0xf]
    %v310 = vld [vmem:[#allocation5 + $0x618] sm:$0xff]
    %v311 = vld [vmem:[#allocation5 + $0x620] sm:$0xff]
    %v312 = vld [vmem:[#allocation5 + $0x628] sm:$0xff]
    %v313 = vld [vmem:[#allocation5 + $0x630] sm:$0xff]
    %v314 = vld [vmem:[#allocation5 + $0x638] sm:$0xff]
    %v315 = vld [vmem:[#allocation5 + $0x640] sm:$0xff]
    %v316 = vld [vmem:[#allocation5 + $0x648] sm:$0xff]
    %v317 = vld [vmem:[#allocation5 + $0x650] sm:$0xf]
    %v318 = vld [vmem:[#allocation5 + $0x654] sm:$0xff]
    %v319 = vld [vmem:[#allocation5 + $0x65c] sm:$0xff]
    %v320 = vld [vmem:[#allocation5 + $0x664] sm:$0xff]
    %v321 = vld [vmem:[#allocation5 + $0x66c] sm:$0xff]
    %v322 = vld [vmem:[#allocation5 + $0x674] sm:$0xff]
    %v323 = vld [vmem:[#allocation5 + $0x67c] sm:$0xff]
    %v324 = vld [vmem:[#allocation5 + $0x684] sm:$0xff]
    %v325 = vld [vmem:[#allocation5 + $0x68c] sm:$0xf]
    %v326 = vld [vmem:[#allocation5 + $0x690] sm:$0xff]
    %v327 = vld [vmem:[#allocation5 + $0x698] sm:$0xff]
    %v328 = vld [vmem:[#allocation5 + $0x6a0] sm:$0xff]
    %v329 = vld [vmem:[#allocation5 + $0x6a8] sm:$0xff]
    %v330 = vld [vmem:[#allocation5 + $0x6b0] sm:$0xff]
    %v331 = vld [vmem:[#allocation5 + $0x6b8] sm:$0xff]
    %v332 = vld [vmem:[#allocation5 + $0x6c0] sm:$0xff]
    %v333 = vld [vmem:[#allocation5 + $0x6c8] sm:$0xf]
    %v334 = vld [vmem:[#allocation5 + $0x6cc] sm:$0xff]
    %v335 = vld [vmem:[#allocation5 + $0x6d4] sm:$0xff]
    %v336 = vld [vmem:[#allocation5 + $0x6dc] sm:$0xff]
    %v337 = vld [vmem:[#allocation5 + $0x6e4] sm:$0xff]
    %v338 = vld [vmem:[#allocation5 + $0x6ec] sm:$0xff]
    %v339 = vld [vmem:[#allocation5 + $0x6f4] sm:$0xff]
    %v340 = vld [vmem:[#allocation5 + $0x6fc] sm:$0xff]
    %v341 = vld [vmem:[#allocation5 + $0x704] sm:$0xf]
    %v342 = vld [vmem:[#allocation5 + $0x708] sm:$0xff]
    %v343 = vld [vmem:[#allocation5 + $0x710] sm:$0xff]
    %v344 = vld [vmem:[#allocation5 + $0x718] sm:$0xff]
    %v345 = vld [vmem:[#allocation5 + $0x720] sm:$0xff]
    %v346 = vld [vmem:[#allocation5 + $0x728] sm:$0xff]
    %v347 = vld [vmem:[#allocation5 + $0x730] sm:$0xff]
    %v348 = vld [vmem:[#allocation5 + $0x738] sm:$0xff]
    %v349 = vld [vmem:[#allocation5 + $0x740] sm:$0xf]
    %v350 = vld [vmem:[#allocation5 + $0x744] sm:$0xff]
    %v351 = vld [vmem:[#allocation5 + $0x74c] sm:$0xff]
    %v352 = vld [vmem:[#allocation5 + $0x754] sm:$0xff]
    %v353 = vld [vmem:[#allocation5 + $0x75c] sm:$0xff]
    %v354 = vld [vmem:[#allocation5 + $0x764] sm:$0xff]
    %v355 = vld [vmem:[#allocation5 + $0x76c] sm:$0xff]
    %v356 = vld [vmem:[#allocation5 + $0x774] sm:$0xff]
    %v357 = vld [vmem:[#allocation5 + $0x77c] sm:$0xf]
    %v358 = vld [vmem:[#allocation5 + $0x780] sm:$0xff]
    %v359 = vld [vmem:[#allocation5 + $0x788] sm:$0xff]
    %v360 = vld [vmem:[#allocation5 + $0x790] sm:$0xff]
    %v361 = vld [vmem:[#allocation5 + $0x798] sm:$0xff]
    %v362 = vld [vmem:[#allocation5 + $0x7a0] sm:$0xff]
    %v363 = vld [vmem:[#allocation5 + $0x7a8] sm:$0xff]
    %v364 = vld [vmem:[#allocation5 + $0x7b0] sm:$0xff]
    %v365 = vld [vmem:[#allocation5 + $0x7b8] sm:$0xf]
    %v366 = vld [vmem:[#allocation5 + $0x7bc] sm:$0xff]
    %v367 = vld [vmem:[#allocation5 + $0x7c4] sm:$0xff]
    %v368 = vld [vmem:[#allocation5 + $0x7cc] sm:$0xff]
    %v369 = vld [vmem:[#allocation5 + $0x7d4] sm:$0xff]
    %v370 = vld [vmem:[#allocation5 + $0x7dc] sm:$0xff]
    %v371 = vld [vmem:[#allocation5 + $0x7e4] sm:$0xff]
    %v372 = vld [vmem:[#allocation5 + $0x7ec] sm:$0xff]
    %v373 = vld [vmem:[#allocation5 + $0x7f4] sm:$0xf]
    %v374 = vld [vmem:[#allocation5 + $0x7f8] sm:$0xff]
    %v375 = vld [vmem:[#allocation5 + $0x800] sm:$0xff]
    %v376 = vld [vmem:[#allocation5 + $0x808] sm:$0xff]
    %v377 = vld [vmem:[#allocation5 + $0x810] sm:$0xff]
    %v378 = vld [vmem:[#allocation5 + $0x818] sm:$0xff]
    %v379 = vld [vmem:[#allocation5 + $0x820] sm:$0xff]
    %v380 = vld [vmem:[#allocation5 + $0x828] sm:$0xff]
    %v381 = vld [vmem:[#allocation5 + $0x830] sm:$0xf]
    %v382 = vld [vmem:[#allocation5 + $0x834] sm:$0xff]
    %v383 = vld [vmem:[#allocation5 + $0x83c] sm:$0xff]
    %v384 = vld [vmem:[#allocation5 + $0x844] sm:$0xff]
    %v385 = vld [vmem:[#allocation5 + $0x84c] sm:$0xff]
    %v386 = vld [vmem:[#allocation5 + $0x854] sm:$0xff]
    %v387 = vld [vmem:[#allocation5 + $0x85c] sm:$0xff]
    %v388 = vld [vmem:[#allocation5 + $0x864] sm:$0xff]
    %v389 = vld [vmem:[#allocation5 + $0x86c] sm:$0xf]
    %v678 = vunpack.c.l.b16 %v102
    %v679 = vunpack.c.h.b16 %v102
    %v680 = vunpack.c.l.b16 %v103
    %v681 = vunpack.c.h.b16 %v103
    %v682 = vunpack.c.l.b16 %v104
    %v683 = vunpack.c.h.b16 %v104
    %v684 = vunpack.c.l.b16 %v105
    %v685 = vunpack.c.h.b16 %v105
    %v686 = vunpack.c.l.b16 %v106
    %v687 = vunpack.c.h.b16 %v106
    %v688 = vunpack.c.l.b16 %v107
    %v689 = vunpack.c.h.b16 %v107
    %v690 = vunpack.c.l.b16 %v108
    %v691 = vunpack.c.h.b16 %v108
    %v692 = vunpack.c.l.b16 %v109
    %v693 = vunpack.c.l.b16 %v110
    %v694 = vunpack.c.h.b16 %v110
    %v695 = vunpack.c.l.b16 %v111
    %v696 = vunpack.c.h.b16 %v111
    %v697 = vunpack.c.l.b16 %v112
    %v698 = vunpack.c.h.b16 %v112
    %v699 = vunpack.c.l.b16 %v113
    %v700 = vunpack.c.h.b16 %v113
    %v701 = vunpack.c.l.b16 %v114
    %v702 = vunpack.c.h.b16 %v114
    %v703 = vunpack.c.l.b16 %v115
    %v704 = vunpack.c.h.b16 %v115
    %v705 = vunpack.c.l.b16 %v116
    %v706 = vunpack.c.h.b16 %v116
    %v707 = vunpack.c.l.b16 %v117
    %v708 = vunpack.c.l.b16 %v118
    %v709 = vunpack.c.h.b16 %v118
    %v710 = vunpack.c.l.b16 %v119
    %v711 = vunpack.c.h.b16 %v119
    %v712 = vunpack.c.l.b16 %v120
    %v713 = vunpack.c.h.b16 %v120
    %v714 = vunpack.c.l.b16 %v121
    %v715 = vunpack.c.h.b16 %v121
    %v716 = vunpack.c.l.b16 %v122
    %v717 = vunpack.c.h.b16 %v122
    %v718 = vunpack.c.l.b16 %v123
    %v719 = vunpack.c.h.b16 %v123
    %v720 = vunpack.c.l.b16 %v124
    %v721 = vunpack.c.h.b16 %v124
    %v722 = vunpack.c.l.b16 %v125
    %v723 = vunpack.c.l.b16 %v126
    %v724 = vunpack.c.h.b16 %v126
    %v725 = vunpack.c.l.b16 %v127
    %v726 = vunpack.c.h.b16 %v127
    %v727 = vunpack.c.l.b16 %v128
    %v728 = vunpack.c.h.b16 %v128
    %v729 = vunpack.c.l.b16 %v129
    %v730 = vunpack.c.h.b16 %v129
    %v731 = vunpack.c.l.b16 %v130
    %v732 = vunpack.c.h.b16 %v130
    %v733 = vunpack.c.l.b16 %v131
    %v734 = vunpack.c.h.b16 %v131
    %v735 = vunpack.c.l.b16 %v132
    %v736 = vunpack.c.h.b16 %v132
    %v737 = vunpack.c.l.b16 %v133
    %v738 = vunpack.c.l.b16 %v134
    %v739 = vunpack.c.h.b16 %v134
    %v740 = vunpack.c.l.b16 %v135
    %v741 = vunpack.c.h.b16 %v135
    %v742 = vunpack.c.l.b16 %v136
    %v743 = vunpack.c.h.b16 %v136
    %v744 = vunpack.c.l.b16 %v137
    %v745 = vunpack.c.h.b16 %v137
    %v746 = vunpack.c.l.b16 %v138
    %v747 = vunpack.c.h.b16 %v138
    %v748 = vunpack.c.l.b16 %v139
    %v749 = vunpack.c.h.b16 %v139
    %v750 = vunpack.c.l.b16 %v140
    %v751 = vunpack.c.h.b16 %v140
    %v752 = vunpack.c.l.b16 %v141
    %v753 = vunpack.c.l.b16 %v142
    %v754 = vunpack.c.h.b16 %v142
    %v755 = vunpack.c.l.b16 %v143
    %v756 = vunpack.c.h.b16 %v143
    %v757 = vunpack.c.l.b16 %v144
    %v758 = vunpack.c.h.b16 %v144
    %v759 = vunpack.c.l.b16 %v145
    %v760 = vunpack.c.h.b16 %v145
    %v761 = vunpack.c.l.b16 %v146
    %v762 = vunpack.c.h.b16 %v146
    %v763 = vunpack.c.l.b16 %v147
    %v764 = vunpack.c.h.b16 %v147
    %v765 = vunpack.c.l.b16 %v148
    %v766 = vunpack.c.h.b16 %v148
    %v767 = vunpack.c.l.b16 %v149
    %v768 = vunpack.c.l.b16 %v150
    %v769 = vunpack.c.h.b16 %v150
    %v770 = vunpack.c.l.b16 %v151
    %v771 = vunpack.c.h.b16 %v151
    %v772 = vunpack.c.l.b16 %v152
    %v773 = vunpack.c.h.b16 %v152
    %v774 = vunpack.c.l.b16 %v153
    %v775 = vunpack.c.h.b16 %v153
    %v776 = vunpack.c.l.b16 %v154
    %v777 = vunpack.c.h.b16 %v154
    %v778 = vunpack.c.l.b16 %v155
    %v779 = vunpack.c.h.b16 %v155
    %v780 = vunpack.c.l.b16 %v156
    %v781 = vunpack.c.h.b16 %v156
    %v782 = vunpack.c.l.b16 %v157
    %v783 = vunpack.c.l.b16 %v158
    %v784 = vunpack.c.h.b16 %v158
    %v785 = vunpack.c.l.b16 %v159
    %v786 = vunpack.c.h.b16 %v159
    %v787 = vunpack.c.l.b16 %v160
    %v788 = vunpack.c.h.b16 %v160
    %v789 = vunpack.c.l.b16 %v161
    %v790 = vunpack.c.h.b16 %v161
    %v791 = vunpack.c.l.b16 %v162
    %v792 = vunpack.c.h.b16 %v162
    %v793 = vunpack.c.l.b16 %v163
    %v794 = vunpack.c.h.b16 %v163
    %v795 = vunpack.c.l.b16 %v164
    %v796 = vunpack.c.h.b16 %v164
    %v797 = vunpack.c.l.b16 %v165
    %v798 = vunpack.c.l.b16 %v166
    %v799 = vunpack.c.h.b16 %v166
    %v800 = vunpack.c.l.b16 %v167
    %v801 = vunpack.c.h.b16 %v167
    %v802 = vunpack.c.l.b16 %v168
    %v803 = vunpack.c.h.b16 %v168
    %v804 = vunpack.c.l.b16 %v169
    %v805 = vunpack.c.h.b16 %v169
    %v806 = vunpack.c.l.b16 %v170
    %v807 = vunpack.c.h.b16 %v170
    %v808 = vunpack.c.l.b16 %v171
    %v809 = vunpack.c.h.b16 %v171
    %v810 = vunpack.c.l.b16 %v172
    %v811 = vunpack.c.h.b16 %v172
    %v812 = vunpack.c.l.b16 %v173
    %v813 = vunpack.c.l.b16 %v174
    %v814 = vunpack.c.h.b16 %v174
    %v815 = vunpack.c.l.b16 %v175
    %v816 = vunpack.c.h.b16 %v175
    %v817 = vunpack.c.l.b16 %v176
    %v818 = vunpack.c.h.b16 %v176
    %v819 = vunpack.c.l.b16 %v177
    %v820 = vunpack.c.h.b16 %v177
    %v821 = vunpack.c.l.b16 %v178
    %v822 = vunpack.c.h.b16 %v178
    %v823 = vunpack.c.l.b16 %v179
    %v824 = vunpack.c.h.b16 %v179
    %v825 = vunpack.c.l.b16 %v180
    %v826 = vunpack.c.h.b16 %v180
    %v827 = vunpack.c.l.b16 %v181
    %v828 = vunpack.c.l.b16 %v182
    %v829 = vunpack.c.h.b16 %v182
    %v830 = vunpack.c.l.b16 %v183
    %v831 = vunpack.c.h.b16 %v183
    %v832 = vunpack.c.l.b16 %v184
    %v833 = vunpack.c.h.b16 %v184
    %v834 = vunpack.c.l.b16 %v185
    %v835 = vunpack.c.h.b16 %v185
    %v836 = vunpack.c.l.b16 %v186
    %v837 = vunpack.c.h.b16 %v186
    %v838 = vunpack.c.l.b16 %v187
    %v839 = vunpack.c.h.b16 %v187
    %v840 = vunpack.c.l.b16 %v188
    %v841 = vunpack.c.h.b16 %v188
    %v842 = vunpack.c.l.b16 %v189
    %v843 = vunpack.c.l.b16 %v190
    %v844 = vunpack.c.h.b16 %v190
    %v845 = vunpack.c.l.b16 %v191
    %v846 = vunpack.c.h.b16 %v191
    %v847 = vunpack.c.l.b16 %v192
    %v848 = vunpack.c.h.b16 %v192
    %v849 = vunpack.c.l.b16 %v193
    %v850 = vunpack.c.h.b16 %v193
    %v851 = vunpack.c.l.b16 %v194
    %v852 = vunpack.c.h.b16 %v194
    %v853 = vunpack.c.l.b16 %v195
    %v854 = vunpack.c.h.b16 %v195
    %v855 = vunpack.c.l.b16 %v196
    %v856 = vunpack.c.h.b16 %v196
    %v857 = vunpack.c.l.b16 %v197
    %v858 = vunpack.c.l.b16 %v198
    %v859 = vunpack.c.h.b16 %v198
    %v860 = vunpack.c.l.b16 %v199
    %v861 = vunpack.c.h.b16 %v199
    %v862 = vunpack.c.l.b16 %v200
    %v863 = vunpack.c.h.b16 %v200
    %v864 = vunpack.c.l.b16 %v201
    %v865 = vunpack.c.h.b16 %v201
    %v866 = vunpack.c.l.b16 %v202
    %v867 = vunpack.c.h.b16 %v202
    %v868 = vunpack.c.l.b16 %v203
    %v869 = vunpack.c.h.b16 %v203
    %v870 = vunpack.c.l.b16 %v204
    %v871 = vunpack.c.h.b16 %v204
    %v872 = vunpack.c.l.b16 %v205
    %v873 = vunpack.c.l.b16 %v206
    %v874 = vunpack.c.h.b16 %v206
    %v875 = vunpack.c.l.b16 %v207
    %v876 = vunpack.c.h.b16 %v207
    %v877 = vunpack.c.l.b16 %v208
    %v878 = vunpack.c.h.b16 %v208
    %v879 = vunpack.c.l.b16 %v209
    %v880 = vunpack.c.h.b16 %v209
    %v881 = vunpack.c.l.b16 %v210
    %v882 = vunpack.c.h.b16 %v210
    %v883 = vunpack.c.l.b16 %v211
    %v884 = vunpack.c.h.b16 %v211
    %v885 = vunpack.c.l.b16 %v212
    %v886 = vunpack.c.h.b16 %v212
    %v887 = vunpack.c.l.b16 %v213
    %v888 = vunpack.c.l.b16 %v214
    %v889 = vunpack.c.h.b16 %v214
    %v890 = vunpack.c.l.b16 %v215
    %v891 = vunpack.c.h.b16 %v215
    %v892 = vunpack.c.l.b16 %v216
    %v893 = vunpack.c.h.b16 %v216
    %v894 = vunpack.c.l.b16 %v217
    %v895 = vunpack.c.h.b16 %v217
    %v896 = vunpack.c.l.b16 %v218
    %v897 = vunpack.c.h.b16 %v218
    %v898 = vunpack.c.l.b16 %v219
    %v899 = vunpack.c.h.b16 %v219
    %v900 = vunpack.c.l.b16 %v220
    %v901 = vunpack.c.h.b16 %v220
    %v902 = vunpack.c.l.b16 %v221
    %v903 = vunpack.c.l.b16 %v222
    %v904 = vunpack.c.h.b16 %v222
    %v905 = vunpack.c.l.b16 %v223
    %v906 = vunpack.c.h.b16 %v223
    %v907 = vunpack.c.l.b16 %v224
    %v908 = vunpack.c.h.b16 %v224
    %v909 = vunpack.c.l.b16 %v225
    %v910 = vunpack.c.h.b16 %v225
    %v911 = vunpack.c.l.b16 %v226
    %v912 = vunpack.c.h.b16 %v226
    %v913 = vunpack.c.l.b16 %v227
    %v914 = vunpack.c.h.b16 %v227
    %v915 = vunpack.c.l.b16 %v228
    %v916 = vunpack.c.h.b16 %v228
    %v917 = vunpack.c.l.b16 %v229
    %v918 = vunpack.c.l.b16 %v230
    %v919 = vunpack.c.h.b16 %v230
    %v920 = vunpack.c.l.b16 %v231
    %v921 = vunpack.c.h.b16 %v231
    %v922 = vunpack.c.l.b16 %v232
    %v923 = vunpack.c.h.b16 %v232
    %v924 = vunpack.c.l.b16 %v233
    %v925 = vunpack.c.h.b16 %v233
    %v926 = vunpack.c.l.b16 %v234
    %v927 = vunpack.c.h.b16 %v234
    %v928 = vunpack.c.l.b16 %v235
    %v929 = vunpack.c.h.b16 %v235
    %v930 = vunpack.c.l.b16 %v236
    %v931 = vunpack.c.h.b16 %v236
    %v932 = vunpack.c.l.b16 %v237
    %v933 = vunpack.c.l.b16 %v238
    %v934 = vunpack.c.h.b16 %v238
    %v935 = vunpack.c.l.b16 %v239
    %v936 = vunpack.c.h.b16 %v239
    %v937 = vunpack.c.l.b16 %v240
    %v938 = vunpack.c.h.b16 %v240
    %v939 = vunpack.c.l.b16 %v241
    %v940 = vunpack.c.h.b16 %v241
    %v941 = vunpack.c.l.b16 %v242
    %v942 = vunpack.c.h.b16 %v242
    %v943 = vunpack.c.l.b16 %v243
    %v944 = vunpack.c.h.b16 %v243
    %v945 = vunpack.c.l.b16 %v244
    %v946 = vunpack.c.h.b16 %v244
    %v947 = vunpack.c.l.b16 %v245
    %v948 = vunpack.c.l.b16 %v246
    %v949 = vunpack.c.h.b16 %v246
    %v950 = vunpack.c.l.b16 %v247
    %v951 = vunpack.c.h.b16 %v247
    %v952 = vunpack.c.l.b16 %v248
    %v953 = vunpack.c.h.b16 %v248
    %v954 = vunpack.c.l.b16 %v249
    %v955 = vunpack.c.h.b16 %v249
    %v956 = vunpack.c.l.b16 %v250
    %v957 = vunpack.c.h.b16 %v250
    %v958 = vunpack.c.l.b16 %v251
    %v959 = vunpack.c.h.b16 %v251
    %v960 = vunpack.c.l.b16 %v252
    %v961 = vunpack.c.h.b16 %v252
    %v962 = vunpack.c.l.b16 %v253
    %v963 = vunpack.c.l.b16 %v254
    %v964 = vunpack.c.h.b16 %v254
    %v965 = vunpack.c.l.b16 %v255
    %v966 = vunpack.c.h.b16 %v255
    %v967 = vunpack.c.l.b16 %v256
    %v968 = vunpack.c.h.b16 %v256
    %v969 = vunpack.c.l.b16 %v257
    %v970 = vunpack.c.h.b16 %v257
    %v971 = vunpack.c.l.b16 %v258
    %v972 = vunpack.c.h.b16 %v258
    %v973 = vunpack.c.l.b16 %v259
    %v974 = vunpack.c.h.b16 %v259
    %v975 = vunpack.c.l.b16 %v260
    %v976 = vunpack.c.h.b16 %v260
    %v977 = vunpack.c.l.b16 %v261
    %v978 = vunpack.c.l.b16 %v262
    %v979 = vunpack.c.h.b16 %v262
    %v980 = vunpack.c.l.b16 %v263
    %v981 = vunpack.c.h.b16 %v263
    %v982 = vunpack.c.l.b16 %v264
    %v983 = vunpack.c.h.b16 %v264
    %v984 = vunpack.c.l.b16 %v265
    %v985 = vunpack.c.h.b16 %v265
    %v986 = vunpack.c.l.b16 %v266
    %v987 = vunpack.c.h.b16 %v266
    %v988 = vunpack.c.l.b16 %v267
    %v989 = vunpack.c.h.b16 %v267
    %v990 = vunpack.c.l.b16 %v268
    %v991 = vunpack.c.h.b16 %v268
    %v992 = vunpack.c.l.b16 %v269
    %v993 = vunpack.c.l.b16 %v270
    %v994 = vunpack.c.h.b16 %v270
    %v995 = vunpack.c.l.b16 %v271
    %v996 = vunpack.c.h.b16 %v271
    %v997 = vunpack.c.l.b16 %v272
    %v998 = vunpack.c.h.b16 %v272
    %v999 = vunpack.c.l.b16 %v273
    %v1000 = vunpack.c.h.b16 %v273
    %v1001 = vunpack.c.l.b16 %v274
    %v1002 = vunpack.c.h.b16 %v274
    %v1003 = vunpack.c.l.b16 %v275
    %v1004 = vunpack.c.h.b16 %v275
    %v1005 = vunpack.c.l.b16 %v276
    %v1006 = vunpack.c.h.b16 %v276
    %v1007 = vunpack.c.l.b16 %v277
    %v1008 = vunpack.c.l.b16 %v278
    %v1009 = vunpack.c.h.b16 %v278
    %v1010 = vunpack.c.l.b16 %v279
    %v1011 = vunpack.c.h.b16 %v279
    %v1012 = vunpack.c.l.b16 %v280
    %v1013 = vunpack.c.h.b16 %v280
    %v1014 = vunpack.c.l.b16 %v281
    %v1015 = vunpack.c.h.b16 %v281
    %v1016 = vunpack.c.l.b16 %v282
    %v1017 = vunpack.c.h.b16 %v282
    %v1018 = vunpack.c.l.b16 %v283
    %v1019 = vunpack.c.h.b16 %v283
    %v1020 = vunpack.c.l.b16 %v284
    %v1021 = vunpack.c.h.b16 %v284
    %v1022 = vunpack.c.l.b16 %v285
    %v1023 = vunpack.c.l.b16 %v286
    %v1024 = vunpack.c.h.b16 %v286
    %v1025 = vunpack.c.l.b16 %v287
    %v1026 = vunpack.c.h.b16 %v287
    %v1027 = vunpack.c.l.b16 %v288
    %v1028 = vunpack.c.h.b16 %v288
    %v1029 = vunpack.c.l.b16 %v289
    %v1030 = vunpack.c.h.b16 %v289
    %v1031 = vunpack.c.l.b16 %v290
    %v1032 = vunpack.c.h.b16 %v290
    %v1033 = vunpack.c.l.b16 %v291
    %v1034 = vunpack.c.h.b16 %v291
    %v1035 = vunpack.c.l.b16 %v292
    %v1036 = vunpack.c.h.b16 %v292
    %v1037 = vunpack.c.l.b16 %v293
    %v1038 = vunpack.c.l.b16 %v294
    %v1039 = vunpack.c.h.b16 %v294
    %v1040 = vunpack.c.l.b16 %v295
    %v1041 = vunpack.c.h.b16 %v295
    %v1042 = vunpack.c.l.b16 %v296
    %v1043 = vunpack.c.h.b16 %v296
    %v1044 = vunpack.c.l.b16 %v297
    %v1045 = vunpack.c.h.b16 %v297
    %v1046 = vunpack.c.l.b16 %v298
    %v1047 = vunpack.c.h.b16 %v298
    %v1048 = vunpack.c.l.b16 %v299
    %v1049 = vunpack.c.h.b16 %v299
    %v1050 = vunpack.c.l.b16 %v300
    %v1051 = vunpack.c.h.b16 %v300
    %v1052 = vunpack.c.l.b16 %v301
    %v1053 = vunpack.c.l.b16 %v302
    %v1054 = vunpack.c.h.b16 %v302
    %v1055 = vunpack.c.l.b16 %v303
    %v1056 = vunpack.c.h.b16 %v303
    %v1057 = vunpack.c.l.b16 %v304
    %v1058 = vunpack.c.h.b16 %v304
    %v1059 = vunpack.c.l.b16 %v305
    %v1060 = vunpack.c.h.b16 %v305
    %v1061 = vunpack.c.l.b16 %v306
    %v1062 = vunpack.c.h.b16 %v306
    %v1063 = vunpack.c.l.b16 %v307
    %v1064 = vunpack.c.h.b16 %v307
    %v1065 = vunpack.c.l.b16 %v308
    %v1066 = vunpack.c.h.b16 %v308
    %v1067 = vunpack.c.l.b16 %v309
    %v1068 = vunpack.c.l.b16 %v310
    %v1069 = vunpack.c.h.b16 %v310
    %v1070 = vunpack.c.l.b16 %v311
    %v1071 = vunpack.c.h.b16 %v311
    %v1072 = vunpack.c.l.b16 %v312
    %v1073 = vunpack.c.h.b16 %v312
    %v1074 = vunpack.c.l.b16 %v313
    %v1075 = vunpack.c.h.b16 %v313
    %v1076 = vunpack.c.l.b16 %v314
    %v1077 = vunpack.c.h.b16 %v314
    %v1078 = vunpack.c.l.b16 %v315
    %v1079 = vunpack.c.h.b16 %v315
    %v1080 = vunpack.c.l.b16 %v316
    %v1081 = vunpack.c.h.b16 %v316
    %v1082 = vunpack.c.l.b16 %v317
    %v1083 = vunpack.c.l.b16 %v318
    %v1084 = vunpack.c.h.b16 %v318
    %v1085 = vunpack.c.l.b16 %v319
    %v1086 = vunpack.c.h.b16 %v319
    %v1087 = vunpack.c.l.b16 %v320
    %v1088 = vunpack.c.h.b16 %v320
    %v1089 = vunpack.c.l.b16 %v321
    %v1090 = vunpack.c.h.b16 %v321
    %v1091 = vunpack.c.l.b16 %v322
    %v1092 = vunpack.c.h.b16 %v322
    %v1093 = vunpack.c.l.b16 %v323
    %v1094 = vunpack.c.h.b16 %v323
    %v1095 = vunpack.c.l.b16 %v324
    %v1096 = vunpack.c.h.b16 %v324
    %v1097 = vunpack.c.l.b16 %v325
    %v1098 = vunpack.c.l.b16 %v326
    %v1099 = vunpack.c.h.b16 %v326
    %v1100 = vunpack.c.l.b16 %v327
    %v1101 = vunpack.c.h.b16 %v327
    %v1102 = vunpack.c.l.b16 %v328
    %v1103 = vunpack.c.h.b16 %v328
    %v1104 = vunpack.c.l.b16 %v329
    %v1105 = vunpack.c.h.b16 %v329
    %v1106 = vunpack.c.l.b16 %v330
    %v1107 = vunpack.c.h.b16 %v330
    %v1108 = vunpack.c.l.b16 %v331
    %v1109 = vunpack.c.h.b16 %v331
    %v1110 = vunpack.c.l.b16 %v332
    %v1111 = vunpack.c.h.b16 %v332
    %v1112 = vunpack.c.l.b16 %v333
    %v1113 = vunpack.c.l.b16 %v334
    %v1114 = vunpack.c.h.b16 %v334
    %v1115 = vunpack.c.l.b16 %v335
    %v1116 = vunpack.c.h.b16 %v335
    %v1117 = vunpack.c.l.b16 %v336
    %v1118 = vunpack.c.h.b16 %v336
    %v1119 = vunpack.c.l.b16 %v337
    %v1120 = vunpack.c.h.b16 %v337
    %v1121 = vunpack.c.l.b16 %v338
    %v1122 = vunpack.c.h.b16 %v338
    %v1123 = vunpack.c.l.b16 %v339
    %v1124 = vunpack.c.h.b16 %v339
    %v1125 = vunpack.c.l.b16 %v340
    %v1126 = vunpack.c.h.b16 %v340
    %v1127 = vunpack.c.l.b16 %v341
    %v1128 = vunpack.c.l.b16 %v342
    %v1129 = vunpack.c.h.b16 %v342
    %v1130 = vunpack.c.l.b16 %v343
    %v1131 = vunpack.c.h.b16 %v343
    %v1132 = vunpack.c.l.b16 %v344
    %v1133 = vunpack.c.h.b16 %v344
    %v1134 = vunpack.c.l.b16 %v345
    %v1135 = vunpack.c.h.b16 %v345
    %v1136 = vunpack.c.l.b16 %v346
    %v1137 = vunpack.c.h.b16 %v346
    %v1138 = vunpack.c.l.b16 %v347
    %v1139 = vunpack.c.h.b16 %v347
    %v1140 = vunpack.c.l.b16 %v348
    %v1141 = vunpack.c.h.b16 %v348
    %v1142 = vunpack.c.l.b16 %v349
    %v1143 = vunpack.c.l.b16 %v350
    %v1144 = vunpack.c.h.b16 %v350
    %v1145 = vunpack.c.l.b16 %v351
    %v1146 = vunpack.c.h.b16 %v351
    %v1147 = vunpack.c.l.b16 %v352
    %v1148 = vunpack.c.h.b16 %v352
    %v1149 = vunpack.c.l.b16 %v353
    %v1150 = vunpack.c.h.b16 %v353
    %v1151 = vunpack.c.l.b16 %v354
    %v1152 = vunpack.c.h.b16 %v354
    %v1153 = vunpack.c.l.b16 %v355
    %v1154 = vunpack.c.h.b16 %v355
    %v1155 = vunpack.c.l.b16 %v356
    %v1156 = vunpack.c.h.b16 %v356
    %v1157 = vunpack.c.l.b16 %v357
    %v1158 = vunpack.c.l.b16 %v358
    %v1159 = vunpack.c.h.b16 %v358
    %v1160 = vunpack.c.l.b16 %v359
    %v1161 = vunpack.c.h.b16 %v359
    %v1162 = vunpack.c.l.b16 %v360
    %v1163 = vunpack.c.h.b16 %v360
    %v1164 = vunpack.c.l.b16 %v361
    %v1165 = vunpack.c.h.b16 %v361
    %v1166 = vunpack.c.l.b16 %v362
    %v1167 = vunpack.c.h.b16 %v362
    %v1168 = vunpack.c.l.b16 %v363
    %v1169 = vunpack.c.h.b16 %v363
    %v1170 = vunpack.c.l.b16 %v364
    %v1171 = vunpack.c.h.b16 %v364
    %v1172 = vunpack.c.l.b16 %v365
    %v1173 = vunpack.c.l.b16 %v366
    %v1174 = vunpack.c.h.b16 %v366
    %v1175 = vunpack.c.l.b16 %v367
    %v1176 = vunpack.c.h.b16 %v367
    %v1177 = vunpack.c.l.b16 %v368
    %v1178 = vunpack.c.h.b16 %v368
    %v1179 = vunpack.c.l.b16 %v369
    %v1180 = vunpack.c.h.b16 %v369
    %v1181 = vunpack.c.l.b16 %v370
    %v1182 = vunpack.c.h.b16 %v370
    %v1183 = vunpack.c.l.b16 %v371
    %v1184 = vunpack.c.h.b16 %v371
    %v1185 = vunpack.c.l.b16 %v372
    %v1186 = vunpack.c.h.b16 %v372
    %v1187 = vunpack.c.l.b16 %v373
    %v1188 = vunpack.c.l.b16 %v374
    %v1189 = vunpack.c.h.b16 %v374
    %v1190 = vunpack.c.l.b16 %v375
    %v1191 = vunpack.c.h.b16 %v375
    %v1192 = vunpack.c.l.b16 %v376
    %v1193 = vunpack.c.h.b16 %v376
    %v1194 = vunpack.c.l.b16 %v377
    %v1195 = vunpack.c.h.b16 %v377
    %v1196 = vunpack.c.l.b16 %v378
    %v1197 = vunpack.c.h.b16 %v378
    %v1198 = vunpack.c.l.b16 %v379
    %v1199 = vunpack.c.h.b16 %v379
    %v1200 = vunpack.c.l.b16 %v380
    %v1201 = vunpack.c.h.b16 %v380
    %v1202 = vunpack.c.l.b16 %v381
    %v1203 = vunpack.c.l.b16 %v382
    %v1204 = vunpack.c.h.b16 %v382
    %v1205 = vunpack.c.l.b16 %v383
    %v1206 = vunpack.c.h.b16 %v383
    %v1207 = vunpack.c.l.b16 %v384
    %v1208 = vunpack.c.h.b16 %v384
    %v1209 = vunpack.c.l.b16 %v385
    %v1210 = vunpack.c.h.b16 %v385
    %v1211 = vunpack.c.l.b16 %v386
    %v1212 = vunpack.c.h.b16 %v386
    %v1213 = vunpack.c.l.b16 %v387
    %v1214 = vunpack.c.h.b16 %v387
    %v1215 = vunpack.c.l.b16 %v388
    %v1216 = vunpack.c.h.b16 %v388
    %v1217 = vunpack.c.l.b16 %v389
    %v1218 = vpack.c.b16 %v693, %v678
    %v1219 = vpack.c.b16 %v694, %v679
    %v1220 = vpack.c.b16 %v695, %v680
    %v1221 = vpack.c.b16 %v696, %v681
    %v1222 = vpack.c.b16 %v697, %v682
    %v1223 = vpack.c.b16 %v698, %v683
    %v1224 = vpack.c.b16 %v699, %v684
    %v1225 = vpack.c.b16 %v700, %v685
    %v1226 = vpack.c.b16 %v701, %v686
    %v1227 = vpack.c.b16 %v702, %v687
    %v1228 = vpack.c.b16 %v703, %v688
    %v1229 = vpack.c.b16 %v704, %v689
    %v1230 = vpack.c.b16 %v705, %v690
    %v1231 = vpack.c.b16 %v706, %v691
    %v1232 = vpack.c.b16 %v707, %v692
    %v1233 = vpack.c.b16 %v723, %v708
    %v1234 = vpack.c.b16 %v724, %v709
    %v1235 = vpack.c.b16 %v725, %v710
    %v1236 = vpack.c.b16 %v726, %v711
    %v1237 = vpack.c.b16 %v727, %v712
    %v1238 = vpack.c.b16 %v728, %v713
    %v1239 = vpack.c.b16 %v729, %v714
    %v1240 = vpack.c.b16 %v730, %v715
    %v1241 = vpack.c.b16 %v731, %v716
    %v1242 = vpack.c.b16 %v732, %v717
    %v1243 = vpack.c.b16 %v733, %v718
    %v1244 = vpack.c.b16 %v734, %v719
    %v1245 = vpack.c.b16 %v735, %v720
    %v1246 = vpack.c.b16 %v736, %v721
    %v1247 = vpack.c.b16 %v737, %v722
    %v1248 = vpack.c.b16 %v753, %v738
    %v1249 = vpack.c.b16 %v754, %v739
    %v1250 = vpack.c.b16 %v755, %v740
    %v1251 = vpack.c.b16 %v756, %v741
    %v1252 = vpack.c.b16 %v757, %v742
    %v1253 = vpack.c.b16 %v758, %v743
    %v1254 = vpack.c.b16 %v759, %v744
    %v1255 = vpack.c.b16 %v760, %v745
    %v1256 = vpack.c.b16 %v761, %v746
    %v1257 = vpack.c.b16 %v762, %v747
    %v1258 = vpack.c.b16 %v763, %v748
    %v1259 = vpack.c.b16 %v764, %v749
    %v1260 = vpack.c.b16 %v765, %v750
    %v1261 = vpack.c.b16 %v766, %v751
    %v1262 = vpack.c.b16 %v767, %v752
    %v1263 = vpack.c.b16 %v783, %v768
    %v1264 = vpack.c.b16 %v784, %v769
    %v1265 = vpack.c.b16 %v785, %v770
    %v1266 = vpack.c.b16 %v786, %v771
    %v1267 = vpack.c.b16 %v787, %v772
    %v1268 = vpack.c.b16 %v788, %v773
    %v1269 = vpack.c.b16 %v789, %v774
    %v1270 = vpack.c.b16 %v790, %v775
    %v1271 = vpack.c.b16 %v791, %v776
    %v1272 = vpack.c.b16 %v792, %v777
    %v1273 = vpack.c.b16 %v793, %v778
    %v1274 = vpack.c.b16 %v794, %v779
    %v1275 = vpack.c.b16 %v795, %v780
    %v1276 = vpack.c.b16 %v796, %v781
    %v1277 = vpack.c.b16 %v797, %v782
    %v1278 = vpack.c.b16 %v813, %v798
    %v1279 = vpack.c.b16 %v814, %v799
    %v1280 = vpack.c.b16 %v815, %v800
    %v1281 = vpack.c.b16 %v816, %v801
    %v1282 = vpack.c.b16 %v817, %v802
    %v1283 = vpack.c.b16 %v818, %v803
    %v1284 = vpack.c.b16 %v819, %v804
    %v1285 = vpack.c.b16 %v820, %v805
    %v1286 = vpack.c.b16 %v821, %v806
    %v1287 = vpack.c.b16 %v822, %v807
    %v1288 = vpack.c.b16 %v823, %v808
    %v1289 = vpack.c.b16 %v824, %v809
    %v1290 = vpack.c.b16 %v825, %v810
    %v1291 = vpack.c.b16 %v826, %v811
    %v1292 = vpack.c.b16 %v827, %v812
    %v1293 = vpack.c.b16 %v843, %v828
    %v1294 = vpack.c.b16 %v844, %v829
    %v1295 = vpack.c.b16 %v845, %v830
    %v1296 = vpack.c.b16 %v846, %v831
    %v1297 = vpack.c.b16 %v847, %v832
    %v1298 = vpack.c.b16 %v848, %v833
    %v1299 = vpack.c.b16 %v849, %v834
    %v1300 = vpack.c.b16 %v850, %v835
    %v1301 = vpack.c.b16 %v851, %v836
    %v1302 = vpack.c.b16 %v852, %v837
    %v1303 = vpack.c.b16 %v853, %v838
    %v1304 = vpack.c.b16 %v854, %v839
    %v1305 = vpack.c.b16 %v855, %v840
    %v1306 = vpack.c.b16 %v856, %v841
    %v1307 = vpack.c.b16 %v857, %v842
    %v1308 = vpack.c.b16 %v873, %v858
    %v1309 = vpack.c.b16 %v874, %v859
    %v1310 = vpack.c.b16 %v875, %v860
    %v1311 = vpack.c.b16 %v876, %v861
    %v1312 = vpack.c.b16 %v877, %v862
    %v1313 = vpack.c.b16 %v878, %v863
    %v1314 = vpack.c.b16 %v879, %v864
    %v1315 = vpack.c.b16 %v880, %v865
    %v1316 = vpack.c.b16 %v881, %v866
    %v1317 = vpack.c.b16 %v882, %v867
    %v1318 = vpack.c.b16 %v883, %v868
    %v1319 = vpack.c.b16 %v884, %v869
    %v1320 = vpack.c.b16 %v885, %v870
    %v1321 = vpack.c.b16 %v886, %v871
    %v1322 = vpack.c.b16 %v887, %v872
    %v1323 = vpack.c.b16 %v903, %v888
    %v1324 = vpack.c.b16 %v904, %v889
    %v1325 = vpack.c.b16 %v905, %v890
    %v1326 = vpack.c.b16 %v906, %v891
    %v1327 = vpack.c.b16 %v907, %v892
    %v1328 = vpack.c.b16 %v908, %v893
    %v1329 = vpack.c.b16 %v909, %v894
    %v1330 = vpack.c.b16 %v910, %v895
    %v1331 = vpack.c.b16 %v911, %v896
    %v1332 = vpack.c.b16 %v912, %v897
    %v1333 = vpack.c.b16 %v913, %v898
    %v1334 = vpack.c.b16 %v914, %v899
    %v1335 = vpack.c.b16 %v915, %v900
    %v1336 = vpack.c.b16 %v916, %v901
    %v1337 = vpack.c.b16 %v917, %v902
    %v1338 = vpack.c.b16 %v933, %v918
    %v1339 = vpack.c.b16 %v934, %v919
    %v1340 = vpack.c.b16 %v935, %v920
    %v1341 = vpack.c.b16 %v936, %v921
    %v1342 = vpack.c.b16 %v937, %v922
    %v1343 = vpack.c.b16 %v938, %v923
    %v1344 = vpack.c.b16 %v939, %v924
    %v1345 = vpack.c.b16 %v940, %v925
    %v1346 = vpack.c.b16 %v941, %v926
    %v1347 = vpack.c.b16 %v942, %v927
    %v1348 = vpack.c.b16 %v943, %v928
    %v1349 = vpack.c.b16 %v944, %v929
    %v1350 = vpack.c.b16 %v945, %v930
    %v1351 = vpack.c.b16 %v946, %v931
    %v1352 = vpack.c.b16 %v947, %v932
    %v1353 = vpack.c.b16 %v963, %v948
    %v1354 = vpack.c.b16 %v964, %v949
    %v1355 = vpack.c.b16 %v965, %v950
    %v1356 = vpack.c.b16 %v966, %v951
    %v1357 = vpack.c.b16 %v967, %v952
    %v1358 = vpack.c.b16 %v968, %v953
    %v1359 = vpack.c.b16 %v969, %v954
    %v1360 = vpack.c.b16 %v970, %v955
    %v1361 = vpack.c.b16 %v971, %v956
    %v1362 = vpack.c.b16 %v972, %v957
    %v1363 = vpack.c.b16 %v973, %v958
    %v1364 = vpack.c.b16 %v974, %v959
    %v1365 = vpack.c.b16 %v975, %v960
    %v1366 = vpack.c.b16 %v976, %v961
    %v1367 = vpack.c.b16 %v977, %v962
    %v1368 = vpack.c.b16 %v993, %v978
    %v1369 = vpack.c.b16 %v994, %v979
    %v1370 = vpack.c.b16 %v995, %v980
    %v1371 = vpack.c.b16 %v996, %v981
    %v1372 = vpack.c.b16 %v997, %v982
    %v1373 = vpack.c.b16 %v998, %v983
    %v1374 = vpack.c.b16 %v999, %v984
    %v1375 = vpack.c.b16 %v1000, %v985
    %v1376 = vpack.c.b16 %v1001, %v986
    %v1377 = vpack.c.b16 %v1002, %v987
    %v1378 = vpack.c.b16 %v1003, %v988
    %v1379 = vpack.c.b16 %v1004, %v989
    %v1380 = vpack.c.b16 %v1005, %v990
    %v1381 = vpack.c.b16 %v1006, %v991
    %v1382 = vpack.c.b16 %v1007, %v992
    %v1383 = vpack.c.b16 %v1023, %v1008
    %v1384 = vpack.c.b16 %v1024, %v1009
    %v1385 = vpack.c.b16 %v1025, %v1010
    %v1386 = vpack.c.b16 %v1026, %v1011
    %v1387 = vpack.c.b16 %v1027, %v1012
    %v1388 = vpack.c.b16 %v1028, %v1013
    %v1389 = vpack.c.b16 %v1029, %v1014
    %v1390 = vpack.c.b16 %v1030, %v1015
    %v1391 = vpack.c.b16 %v1031, %v1016
    %v1392 = vpack.c.b16 %v1032, %v1017
    %v1393 = vpack.c.b16 %v1033, %v1018
    %v1394 = vpack.c.b16 %v1034, %v1019
    %v1395 = vpack.c.b16 %v1035, %v1020
    %v1396 = vpack.c.b16 %v1036, %v1021
    %v1397 = vpack.c.b16 %v1037, %v1022
    %v1398 = vpack.c.b16 %v1053, %v1038
    %v1399 = vpack.c.b16 %v1054, %v1039
    %v1400 = vpack.c.b16 %v1055, %v1040
    %v1401 = vpack.c.b16 %v1056, %v1041
    %v1402 = vpack.c.b16 %v1057, %v1042
    %v1403 = vpack.c.b16 %v1058, %v1043
    %v1404 = vpack.c.b16 %v1059, %v1044
    %v1405 = vpack.c.b16 %v1060, %v1045
    %v1406 = vpack.c.b16 %v1061, %v1046
    %v1407 = vpack.c.b16 %v1062, %v1047
    %v1408 = vpack.c.b16 %v1063, %v1048
    %v1409 = vpack.c.b16 %v1064, %v1049
    %v1410 = vpack.c.b16 %v1065, %v1050
    %v1411 = vpack.c.b16 %v1066, %v1051
    %v1412 = vpack.c.b16 %v1067, %v1052
    %v1413 = vpack.c.b16 %v1083, %v1068
    %v1414 = vpack.c.b16 %v1084, %v1069
    %v1415 = vpack.c.b16 %v1085, %v1070
    %v1416 = vpack.c.b16 %v1086, %v1071
    %v1417 = vpack.c.b16 %v1087, %v1072
    %v1418 = vpack.c.b16 %v1088, %v1073
    %v1419 = vpack.c.b16 %v1089, %v1074
    %v1420 = vpack.c.b16 %v1090, %v1075
    %v1421 = vpack.c.b16 %v1091, %v1076
    %v1422 = vpack.c.b16 %v1092, %v1077
    %v1423 = vpack.c.b16 %v1093, %v1078
    %v1424 = vpack.c.b16 %v1094, %v1079
    %v1425 = vpack.c.b16 %v1095, %v1080
    %v1426 = vpack.c.b16 %v1096, %v1081
    %v1427 = vpack.c.b16 %v1097, %v1082
    %v1428 = vpack.c.b16 %v1113, %v1098
    %v1429 = vpack.c.b16 %v1114, %v1099
    %v1430 = vpack.c.b16 %v1115, %v1100
    %v1431 = vpack.c.b16 %v1116, %v1101
    %v1432 = vpack.c.b16 %v1117, %v1102
    %v1433 = vpack.c.b16 %v1118, %v1103
    %v1434 = vpack.c.b16 %v1119, %v1104
    %v1435 = vpack.c.b16 %v1120, %v1105
    %v1436 = vpack.c.b16 %v1121, %v1106
    %v1437 = vpack.c.b16 %v1122, %v1107
    %v1438 = vpack.c.b16 %v1123, %v1108
    %v1439 = vpack.c.b16 %v1124, %v1109
    %v1440 = vpack.c.b16 %v1125, %v1110
    %v1441 = vpack.c.b16 %v1126, %v1111
    %v1442 = vpack.c.b16 %v1127, %v1112
    %v1443 = vpack.c.b16 %v1143, %v1128
    %v1444 = vpack.c.b16 %v1144, %v1129
    %v1445 = vpack.c.b16 %v1145, %v1130
    %v1446 = vpack.c.b16 %v1146, %v1131
    %v1447 = vpack.c.b16 %v1147, %v1132
    %v1448 = vpack.c.b16 %v1148, %v1133
    %v1449 = vpack.c.b16 %v1149, %v1134
    %v1450 = vpack.c.b16 %v1150, %v1135
    %v1451 = vpack.c.b16 %v1151, %v1136
    %v1452 = vpack.c.b16 %v1152, %v1137
    %v1453 = vpack.c.b16 %v1153, %v1138
    %v1454 = vpack.c.b16 %v1154, %v1139
    %v1455 = vpack.c.b16 %v1155, %v1140
    %v1456 = vpack.c.b16 %v1156, %v1141
    %v1457 = vpack.c.b16 %v1157, %v1142
    %v1458 = vpack.c.b16 %v1173, %v1158
    %v1459 = vpack.c.b16 %v1174, %v1159
    %v1460 = vpack.c.b16 %v1175, %v1160
    %v1461 = vpack.c.b16 %v1176, %v1161
    %v1462 = vpack.c.b16 %v1177, %v1162
    %v1463 = vpack.c.b16 %v1178, %v1163
    %v1464 = vpack.c.b16 %v1179, %v1164
    %v1465 = vpack.c.b16 %v1180, %v1165
    %v1466 = vpack.c.b16 %v1181, %v1166
    %v1467 = vpack.c.b16 %v1182, %v1167
    %v1468 = vpack.c.b16 %v1183, %v1168
    %v1469 = vpack.c.b16 %v1184, %v1169
    %v1470 = vpack.c.b16 %v1185, %v1170
    %v1471 = vpack.c.b16 %v1186, %v1171
    %v1472 = vpack.c.b16 %v1187, %v1172
    %v1473 = vpack.c.b16 %v1203, %v1188
    %v1474 = vpack.c.b16 %v1204, %v1189
    %v1475 = vpack.c.b16 %v1205, %v1190
    %v1476 = vpack.c.b16 %v1206, %v1191
    %v1477 = vpack.c.b16 %v1207, %v1192
    %v1478 = vpack.c.b16 %v1208, %v1193
    %v1479 = vpack.c.b16 %v1209, %v1194
    %v1480 = vpack.c.b16 %v1210, %v1195
    %v1481 = vpack.c.b16 %v1211, %v1196
    %v1482 = vpack.c.b16 %v1212, %v1197
    %v1483 = vpack.c.b16 %v1213, %v1198
    %v1484 = vpack.c.b16 %v1214, %v1199
    %v1485 = vpack.c.b16 %v1215, %v1200
    %v1486 = vpack.c.b16 %v1216, %v1201
    %v1487 = vpack.c.b16 %v1217, %v1202
    %vm1758 = vcmask 261120
    %v1759 = vsel %vm1758, %v92, 0
    %1761 = vmatprep.subr.bf16.mxu0 %v1324
    %1762 = vmatpush1.bf16.msra.mxu0 %v1323
    %1763 = vmatprep.subr.bf16.mxu0 %v1309
    %1764 = vmatpush1.bf16.msra.mxu0 %v1308
    %1765 = vmatprep.subr.bf16.mxu0 %v1294
    %1766 = vmatpush1.bf16.msra.mxu0 %v1293
    %1767 = vmatprep.subr.bf16.mxu0 %v1279
    %1768 = vmatpush1.bf16.msra.mxu0 %v1278
    %1769 = vmatprep.subr.bf16.mxu0 %v1264
    %1770 = vmatpush1.bf16.msra.mxu0 %v1263
    %1771 = vmatprep.subr.bf16.mxu0 %v1249
    %1772 = vmatpush1.bf16.msra.mxu0 %v1248
    %1773 = vmatprep.subr.bf16.mxu0 %v1234
    %1774 = vmatpush1.bf16.msra.mxu0 %v1233
    %1775 = vmatprep.subr.bf16.mxu0 %v1219
    %1776 = vmatpush1.bf16.msra.mxu0 %v1218
    %1777 = vmatprep.subr.bf16.mxu0 %v1444
    %1778 = vmatpush2.bf16.msra.mxu0 %v1443
    %1779 = vmatprep.subr.bf16.mxu0 %v1429
    %1780 = vmatpush2.bf16.msra.mxu0 %v1428
    %1781 = vmatprep.subr.bf16.mxu0 %v1414
    %1782 = vmatpush2.bf16.msra.mxu0 %v1413
    %1783 = vmatprep.subr.bf16.mxu0 %v1399
    %1784 = vmatpush2.bf16.msra.mxu0 %v1398
    %1785 = vmatprep.subr.bf16.mxu0 %v1384
    %1786 = vmatpush2.bf16.msra.mxu0 %v1383
    %1787 = vmatprep.subr.bf16.mxu0 %v1369
    %1788 = vmatpush2.bf16.msra.mxu0 %v1368
    %1789 = vmatprep.subr.bf16.mxu0 %v1354
    %1790 = vmatpush2.bf16.msra.mxu0 %v1353
    %1791 = vmatprep.subr.bf16.mxu0 %v1339
    %1792 = vmatpush2.bf16.msra.mxu0 %v1338
    %1793 = vmatprep.mubr.bf16.mxu0 %v100
    %1794 = vmatmul.mubr.bf16.gmra.mxu0 %v96
    %v1795 = vpop.f32.mrf.mxu0
    %v1796 = vadd.f32 0.0, %v1795
    %v1797 = vpop.f32.mrf.mxu0
    %v1798 = vadd.f32 0.0, %v1797
    %v1799 = vpop.f32.mrf.mxu0
    %v1800 = vadd.f32 0.0, %v1799
    %v1801 = vpop.f32.mrf.mxu0
    %v1802 = vadd.f32 0.0, %v1801
    %1803 = vdwg.mxu0
    %1804 = vmatprep.subr.bf16.mxu0 0
    %1805 = vmatpush1.bf16.msra.mxu0 0
    %1806 = vmatprep.subr.bf16.mxu0 0
    %1807 = vmatpush1.bf16.msra.mxu0 0
    %1808 = vmatprep.subr.bf16.mxu0 0
    %1809 = vmatpush1.bf16.msra.mxu0 0
    %1810 = vmatprep.subr.bf16.mxu0 0
    %1811 = vmatpush1.bf16.msra.mxu0 0
    %1812 = vmatprep.subr.bf16.mxu0 0
    %1813 = vmatpush1.bf16.msra.mxu0 0
    %1814 = vmatprep.subr.bf16.mxu0 0
    %1815 = vmatpush1.bf16.msra.mxu0 0
    %1816 = vmatprep.subr.bf16.mxu0 %v1474
    %1817 = vmatpush1.bf16.msra.mxu0 %v1473
    %1818 = vmatprep.subr.bf16.mxu0 %v1459
    %1819 = vmatpush1.bf16.msra.mxu0 %v1458
    %1820 = vmatprep.subr.bf16.mxu0 0
    %1821 = vmatpush2.bf16.msra.mxu0 0
    %1822 = vmatprep.subr.bf16.mxu0 0
    %1823 = vmatpush2.bf16.msra.mxu0 0
    %1824 = vmatprep.subr.bf16.mxu0 0
    %1825 = vmatpush2.bf16.msra.mxu0 0
    %1826 = vmatprep.subr.bf16.mxu0 0
    %1827 = vmatpush2.bf16.msra.mxu0 0
    %1828 = vmatprep.subr.bf16.mxu0 0
    %1829 = vmatpush2.bf16.msra.mxu0 0
    %1830 = vmatprep.subr.bf16.mxu0 0
    %1831 = vmatpush2.bf16.msra.mxu0 0
    %1832 = vmatprep.subr.bf16.mxu0 0
    %1833 = vmatpush2.bf16.msra.mxu0 0
    %1834 = vmatprep.subr.bf16.mxu0 0
    %1835 = vmatpush2.bf16.msra.mxu0 0
    %1836 = vmatprep.mubr.bf16.mxu0 0
    %1837 = vmatmul.mubr.bf16.gmra.mxu0 %v1759
    %v1838 = vpop.f32.mrf.mxu0
    %v1839 = vadd.f32 %v1796, %v1838
    %v1840 = vpop.f32.mrf.mxu0
    %v1841 = vadd.f32 %v1798, %v1840
    %v1842 = vpop.f32.mrf.mxu0
    %v1843 = vadd.f32 %v1800, %v1842
    %v1844 = vpop.f32.mrf.mxu0
    %v1845 = vadd.f32 %v1802, %v1844
    %1846 = vdwg.mxu0
    %1847 = vmatprep.subr.bf16.mxu0 %v1326
    %1848 = vmatpush1.bf16.msra.mxu0 %v1325
    %1849 = vmatprep.subr.bf16.mxu0 %v1311
    %1850 = vmatpush1.bf16.msra.mxu0 %v1310
    %1851 = vmatprep.subr.bf16.mxu0 %v1296
    %1852 = vmatpush1.bf16.msra.mxu0 %v1295
    %1853 = vmatprep.subr.bf16.mxu0 %v1281
    %1854 = vmatpush1.bf16.msra.mxu0 %v1280
    %1855 = vmatprep.subr.bf16.mxu0 %v1266
    %1856 = vmatpush1.bf16.msra.mxu0 %v1265
    %1857 = vmatprep.subr.bf16.mxu0 %v1251
    %1858 = vmatpush1.bf16.msra.mxu0 %v1250
    %1859 = vmatprep.subr.bf16.mxu0 %v1236
    %1860 = vmatpush1.bf16.msra.mxu0 %v1235
    %1861 = vmatprep.subr.bf16.mxu0 %v1221
    %1862 = vmatpush1.bf16.msra.mxu0 %v1220
    %1863 = vmatprep.subr.bf16.mxu0 %v1446
    %1864 = vmatpush2.bf16.msra.mxu0 %v1445
    %1865 = vmatprep.subr.bf16.mxu0 %v1431
    %1866 = vmatpush2.bf16.msra.mxu0 %v1430
    %1867 = vmatprep.subr.bf16.mxu0 %v1416
    %1868 = vmatpush2.bf16.msra.mxu0 %v1415
    %1869 = vmatprep.subr.bf16.mxu0 %v1401
    %1870 = vmatpush2.bf16.msra.mxu0 %v1400
    %1871 = vmatprep.subr.bf16.mxu0 %v1386
    %1872 = vmatpush2.bf16.msra.mxu0 %v1385
    %1873 = vmatprep.subr.bf16.mxu0 %v1371
    %1874 = vmatpush2.bf16.msra.mxu0 %v1370
    %1875 = vmatprep.subr.bf16.mxu0 %v1356
    %1876 = vmatpush2.bf16.msra.mxu0 %v1355
    %1877 = vmatprep.subr.bf16.mxu0 %v1341
    %1878 = vmatpush2.bf16.msra.mxu0 %v1340
    %1879 = vmatprep.mubr.bf16.mxu0 %v100
    %1880 = vmatmul.mubr.bf16.gmra.mxu0 %v96
    %v1881 = vpop.f32.mrf.mxu0
    %v1882 = vadd.f32 0.0, %v1881
    %v1883 = vpop.f32.mrf.mxu0
    %v1884 = vadd.f32 0.0, %v1883
    %v1885 = vpop.f32.mrf.mxu0
    %v1886 = vadd.f32 0.0, %v1885
    %v1887 = vpop.f32.mrf.mxu0
    %v1888 = vadd.f32 0.0, %v1887
    %1889 = vdwg.mxu0
    %1890 = vmatprep.subr.bf16.mxu0 0
    %1891 = vmatpush1.bf16.msra.mxu0 0
    %1892 = vmatprep.subr.bf16.mxu0 0
    %1893 = vmatpush1.bf16.msra.mxu0 0
    %1894 = vmatprep.subr.bf16.mxu0 0
    %1895 = vmatpush1.bf16.msra.mxu0 0
    %1896 = vmatprep.subr.bf16.mxu0 0
    %1897 = vmatpush1.bf16.msra.mxu0 0
    %1898 = vmatprep.subr.bf16.mxu0 0
    %1899 = vmatpush1.bf16.msra.mxu0 0
    %1900 = vmatprep.subr.bf16.mxu0 0
    %1901 = vmatpush1.bf16.msra.mxu0 0
    %1902 = vmatprep.subr.bf16.mxu0 %v1476
    %1903 = vmatpush1.bf16.msra.mxu0 %v1475
    %1904 = vmatprep.subr.bf16.mxu0 %v1461
    %1905 = vmatpush1.bf16.msra.mxu0 %v1460
    %1906 = vmatprep.subr.bf16.mxu0 0
    %1907 = vmatpush2.bf16.msra.mxu0 0
    %1908 = vmatprep.subr.bf16.mxu0 0
    %1909 = vmatpush2.bf16.msra.mxu0 0
    %1910 = vmatprep.subr.bf16.mxu0 0
    %1911 = vmatpush2.bf16.msra.mxu0 0
    %1912 = vmatprep.subr.bf16.mxu0 0
    %1913 = vmatpush2.bf16.msra.mxu0 0
    %1914 = vmatprep.subr.bf16.mxu0 0
    %1915 = vmatpush2.bf16.msra.mxu0 0
    %1916 = vmatprep.subr.bf16.mxu0 0
    %1917 = vmatpush2.bf16.msra.mxu0 0
    %1918 = vmatprep.subr.bf16.mxu0 0
    %1919 = vmatpush2.bf16.msra.mxu0 0
    %1920 = vmatprep.subr.bf16.mxu0 0
    %1921 = vmatpush2.bf16.msra.mxu0 0
    %1922 = vmatprep.mubr.bf16.mxu0 0
    %1923 = vmatmul.mubr.bf16.gmra.mxu0 %v1759
    %v1924 = vpop.f32.mrf.mxu0
    %v1925 = vadd.f32 %v1882, %v1924
    %v1926 = vpop.f32.mrf.mxu0
    %v1927 = vadd.f32 %v1884, %v1926
    %v1928 = vpop.f32.mrf.mxu0
    %v1929 = vadd.f32 %v1886, %v1928
    %v1930 = vpop.f32.mrf.mxu0
    %v1931 = vadd.f32 %v1888, %v1930
    %1932 = vdwg.mxu0
    %1933 = vmatprep.subr.bf16.mxu0 %v1328
    %1934 = vmatpush1.bf16.msra.mxu0 %v1327
    %1935 = vmatprep.subr.bf16.mxu0 %v1313
    %1936 = vmatpush1.bf16.msra.mxu0 %v1312
    %1937 = vmatprep.subr.bf16.mxu0 %v1298
    %1938 = vmatpush1.bf16.msra.mxu0 %v1297
    %1939 = vmatprep.subr.bf16.mxu0 %v1283
    %1940 = vmatpush1.bf16.msra.mxu0 %v1282
    %1941 = vmatprep.subr.bf16.mxu0 %v1268
    %1942 = vmatpush1.bf16.msra.mxu0 %v1267
    %1943 = vmatprep.subr.bf16.mxu0 %v1253
    %1944 = vmatpush1.bf16.msra.mxu0 %v1252
    %1945 = vmatprep.subr.bf16.mxu0 %v1238
    %1946 = vmatpush1.bf16.msra.mxu0 %v1237
    %1947 = vmatprep.subr.bf16.mxu0 %v1223
    %1948 = vmatpush1.bf16.msra.mxu0 %v1222
    %1949 = vmatprep.subr.bf16.mxu0 %v1448
    %1950 = vmatpush2.bf16.msra.mxu0 %v1447
    %1951 = vmatprep.subr.bf16.mxu0 %v1433
    %1952 = vmatpush2.bf16.msra.mxu0 %v1432
    %1953 = vmatprep.subr.bf16.mxu0 %v1418
    %1954 = vmatpush2.bf16.msra.mxu0 %v1417
    %1955 = vmatprep.subr.bf16.mxu0 %v1403
    %1956 = vmatpush2.bf16.msra.mxu0 %v1402
    %1957 = vmatprep.subr.bf16.mxu0 %v1388
    %1958 = vmatpush2.bf16.msra.mxu0 %v1387
    %1959 = vmatprep.subr.bf16.mxu0 %v1373
    %1960 = vmatpush2.bf16.msra.mxu0 %v1372
    %1961 = vmatprep.subr.bf16.mxu0 %v1358
    %1962 = vmatpush2.bf16.msra.mxu0 %v1357
    %1963 = vmatprep.subr.bf16.mxu0 %v1343
    %1964 = vmatpush2.bf16.msra.mxu0 %v1342
    %1965 = vmatprep.mubr.bf16.mxu0 %v100
    %1966 = vmatmul.mubr.bf16.gmra.mxu0 %v96
    %v1967 = vpop.f32.mrf.mxu0
    %v1968 = vadd.f32 0.0, %v1967
    %v1969 = vpop.f32.mrf.mxu0
    %v1970 = vadd.f32 0.0, %v1969
    %v1971 = vpop.f32.mrf.mxu0
    %v1972 = vadd.f32 0.0, %v1971
    %v1973 = vpop.f32.mrf.mxu0
    %v1974 = vadd.f32 0.0, %v1973
    %1975 = vdwg.mxu0
    %1976 = vmatprep.subr.bf16.mxu0 0
    %1977 = vmatpush1.bf16.msra.mxu0 0
    %1978 = vmatprep.subr.bf16.mxu0 0
    %1979 = vmatpush1.bf16.msra.mxu0 0
    %1980 = vmatprep.subr.bf16.mxu0 0
    %1981 = vmatpush1.bf16.msra.mxu0 0
    %1982 = vmatprep.subr.bf16.mxu0 0
    %1983 = vmatpush1.bf16.msra.mxu0 0
    %1984 = vmatprep.subr.bf16.mxu0 0
    %1985 = vmatpush1.bf16.msra.mxu0 0
    %1986 = vmatprep.subr.bf16.mxu0 0
    %1987 = vmatpush1.bf16.msra.mxu0 0
    %1988 = vmatprep.subr.bf16.mxu0 %v1478
    %1989 = vmatpush1.bf16.msra.mxu0 %v1477
    %1990 = vmatprep.subr.bf16.mxu0 %v1463
    %1991 = vmatpush1.bf16.msra.mxu0 %v1462
    %1992 = vmatprep.subr.bf16.mxu0 0
    %1993 = vmatpush2.bf16.msra.mxu0 0
    %1994 = vmatprep.subr.bf16.mxu0 0
    %1995 = vmatpush2.bf16.msra.mxu0 0
    %1996 = vmatprep.subr.bf16.mxu0 0
    %1997 = vmatpush2.bf16.msra.mxu0 0
    %1998 = vmatprep.subr.bf16.mxu0 0
    %1999 = vmatpush2.bf16.msra.mxu0 0
    %2000 = vmatprep.subr.bf16.mxu0 0
    %2001 = vmatpush2.bf16.msra.mxu0 0
    %2002 = vmatprep.subr.bf16.mxu0 0
    %2003 = vmatpush2.bf16.msra.mxu0 0
    %2004 = vmatprep.subr.bf16.mxu0 0
    %2005 = vmatpush2.bf16.msra.mxu0 0
    %2006 = vmatprep.subr.bf16.mxu0 0
    %2007 = vmatpush2.bf16.msra.mxu0 0
    %2008 = vmatprep.mubr.bf16.mxu0 0
    %2009 = vmatmul.mubr.bf16.gmra.mxu0 %v1759
    %v2010 = vpop.f32.mrf.mxu0
    %v2011 = vadd.f32 %v1968, %v2010
    %v2012 = vpop.f32.mrf.mxu0
    %v2013 = vadd.f32 %v1970, %v2012
    %v2014 = vpop.f32.mrf.mxu0
    %v2015 = vadd.f32 %v1972, %v2014
    %v2016 = vpop.f32.mrf.mxu0
    %v2017 = vadd.f32 %v1974, %v2016
    %2018 = vdwg.mxu0
    %2019 = vmatprep.subr.bf16.mxu0 %v1330
    %2020 = vmatpush1.bf16.msra.mxu0 %v1329
    %2021 = vmatprep.subr.bf16.mxu0 %v1315
    %2022 = vmatpush1.bf16.msra.mxu0 %v1314
    %2023 = vmatprep.subr.bf16.mxu0 %v1300
    %2024 = vmatpush1.bf16.msra.mxu0 %v1299
    %2025 = vmatprep.subr.bf16.mxu0 %v1285
    %2026 = vmatpush1.bf16.msra.mxu0 %v1284
    %2027 = vmatprep.subr.bf16.mxu0 %v1270
    %2028 = vmatpush1.bf16.msra.mxu0 %v1269
    %2029 = vmatprep.subr.bf16.mxu0 %v1255
    %2030 = vmatpush1.bf16.msra.mxu0 %v1254
    %2031 = vmatprep.subr.bf16.mxu0 %v1240
    %2032 = vmatpush1.bf16.msra.mxu0 %v1239
    %2033 = vmatprep.subr.bf16.mxu0 %v1225
    %2034 = vmatpush1.bf16.msra.mxu0 %v1224
    %2035 = vmatprep.subr.bf16.mxu0 %v1450
    %2036 = vmatpush2.bf16.msra.mxu0 %v1449
    %2037 = vmatprep.subr.bf16.mxu0 %v1435
    %2038 = vmatpush2.bf16.msra.mxu0 %v1434
    %2039 = vmatprep.subr.bf16.mxu0 %v1420
    %2040 = vmatpush2.bf16.msra.mxu0 %v1419
    %2041 = vmatprep.subr.bf16.mxu0 %v1405
    %2042 = vmatpush2.bf16.msra.mxu0 %v1404
    %2043 = vmatprep.subr.bf16.mxu0 %v1390
    %2044 = vmatpush2.bf16.msra.mxu0 %v1389
    %2045 = vmatprep.subr.bf16.mxu0 %v1375
    %2046 = vmatpush2.bf16.msra.mxu0 %v1374
    %2047 = vmatprep.subr.bf16.mxu0 %v1360
    %2048 = vmatpush2.bf16.msra.mxu0 %v1359
    %2049 = vmatprep.subr.bf16.mxu0 %v1345
    %2050 = vmatpush2.bf16.msra.mxu0 %v1344
    %2051 = vmatprep.mubr.bf16.mxu0 %v100
    %2052 = vmatmul.mubr.bf16.gmra.mxu0 %v96
    %v2053 = vpop.f32.mrf.mxu0
    %v2054 = vadd.f32 0.0, %v2053
    %v2055 = vpop.f32.mrf.mxu0
    %v2056 = vadd.f32 0.0, %v2055
    %v2057 = vpop.f32.mrf.mxu0
    %v2058 = vadd.f32 0.0, %v2057
    %v2059 = vpop.f32.mrf.mxu0
    %v2060 = vadd.f32 0.0, %v2059
    %2061 = vdwg.mxu0
    %2062 = vmatprep.subr.bf16.mxu0 0
    %2063 = vmatpush1.bf16.msra.mxu0 0
    %2064 = vmatprep.subr.bf16.mxu0 0
    %2065 = vmatpush1.bf16.msra.mxu0 0
    %2066 = vmatprep.subr.bf16.mxu0 0
    %2067 = vmatpush1.bf16.msra.mxu0 0
    %2068 = vmatprep.subr.bf16.mxu0 0
    %2069 = vmatpush1.bf16.msra.mxu0 0
    %2070 = vmatprep.subr.bf16.mxu0 0
    %2071 = vmatpush1.bf16.msra.mxu0 0
    %2072 = vmatprep.subr.bf16.mxu0 0
    %2073 = vmatpush1.bf16.msra.mxu0 0
    %2074 = vmatprep.subr.bf16.mxu0 %v1480
    %2075 = vmatpush1.bf16.msra.mxu0 %v1479
    %2076 = vmatprep.subr.bf16.mxu0 %v1465
    %2077 = vmatpush1.bf16.msra.mxu0 %v1464
    %2078 = vmatprep.subr.bf16.mxu0 0
    %2079 = vmatpush2.bf16.msra.mxu0 0
    %2080 = vmatprep.subr.bf16.mxu0 0
    %2081 = vmatpush2.bf16.msra.mxu0 0
    %2082 = vmatprep.subr.bf16.mxu0 0
    %2083 = vmatpush2.bf16.msra.mxu0 0
    %2084 = vmatprep.subr.bf16.mxu0 0
    %2085 = vmatpush2.bf16.msra.mxu0 0
    %2086 = vmatprep.subr.bf16.mxu0 0
    %2087 = vmatpush2.bf16.msra.mxu0 0
    %2088 = vmatprep.subr.bf16.mxu0 0
    %2089 = vmatpush2.bf16.msra.mxu0 0
    %2090 = vmatprep.subr.bf16.mxu0 0
    %2091 = vmatpush2.bf16.msra.mxu0 0
    %2092 = vmatprep.subr.bf16.mxu0 0
    %2093 = vmatpush2.bf16.msra.mxu0 0
    %2094 = vmatprep.mubr.bf16.mxu0 0
    %2095 = vmatmul.mubr.bf16.gmra.mxu0 %v1759
    %v2096 = vpop.f32.mrf.mxu0
    %v2097 = vadd.f32 %v2054, %v2096
    %v2098 = vpop.f32.mrf.mxu0
    %v2099 = vadd.f32 %v2056, %v2098
    %v2100 = vpop.f32.mrf.mxu0
    %v2101 = vadd.f32 %v2058, %v2100
    %v2102 = vpop.f32.mrf.mxu0
    %v2103 = vadd.f32 %v2060, %v2102
    %2104 = vdwg.mxu0
    %2105 = vmatprep.subr.bf16.mxu0 %v1332
    %2106 = vmatpush1.bf16.msra.mxu0 %v1331
    %2107 = vmatprep.subr.bf16.mxu0 %v1317
    %2108 = vmatpush1.bf16.msra.mxu0 %v1316
    %2109 = vmatprep.subr.bf16.mxu0 %v1302
    %2110 = vmatpush1.bf16.msra.mxu0 %v1301
    %2111 = vmatprep.subr.bf16.mxu0 %v1287
    %2112 = vmatpush1.bf16.msra.mxu0 %v1286
    %2113 = vmatprep.subr.bf16.mxu0 %v1272
    %2114 = vmatpush1.bf16.msra.mxu0 %v1271
    %2115 = vmatprep.subr.bf16.mxu0 %v1257
    %2116 = vmatpush1.bf16.msra.mxu0 %v1256
    %2117 = vmatprep.subr.bf16.mxu0 %v1242
    %2118 = vmatpush1.bf16.msra.mxu0 %v1241
    %2119 = vmatprep.subr.bf16.mxu0 %v1227
    %2120 = vmatpush1.bf16.msra.mxu0 %v1226
    %2121 = vmatprep.subr.bf16.mxu0 %v1452
    %2122 = vmatpush2.bf16.msra.mxu0 %v1451
    %2123 = vmatprep.subr.bf16.mxu0 %v1437
    %2124 = vmatpush2.bf16.msra.mxu0 %v1436
    %2125 = vmatprep.subr.bf16.mxu0 %v1422
    %2126 = vmatpush2.bf16.msra.mxu0 %v1421
    %2127 = vmatprep.subr.bf16.mxu0 %v1407
    %2128 = vmatpush2.bf16.msra.mxu0 %v1406
    %2129 = vmatprep.subr.bf16.mxu0 %v1392
    %2130 = vmatpush2.bf16.msra.mxu0 %v1391
    %2131 = vmatprep.subr.bf16.mxu0 %v1377
    %2132 = vmatpush2.bf16.msra.mxu0 %v1376
    %2133 = vmatprep.subr.bf16.mxu0 %v1362
    %2134 = vmatpush2.bf16.msra.mxu0 %v1361
    %2135 = vmatprep.subr.bf16.mxu0 %v1347
    %2136 = vmatpush2.bf16.msra.mxu0 %v1346
    %2137 = vmatprep.mubr.bf16.mxu0 %v100
    %2138 = vmatmul.mubr.bf16.gmra.mxu0 %v96
    %v2139 = vpop.f32.mrf.mxu0
    %v2140 = vadd.f32 0.0, %v2139
    %v2141 = vpop.f32.mrf.mxu0
    %v2142 = vadd.f32 0.0, %v2141
    %v2143 = vpop.f32.mrf.mxu0
    %v2144 = vadd.f32 0.0, %v2143
    %v2145 = vpop.f32.mrf.mxu0
    %v2146 = vadd.f32 0.0, %v2145
    %2147 = vdwg.mxu0
    %2148 = vmatprep.subr.bf16.mxu0 0
    %2149 = vmatpush1.bf16.msra.mxu0 0
    %2150 = vmatprep.subr.bf16.mxu0 0
    %2151 = vmatpush1.bf16.msra.mxu0 0
    %2152 = vmatprep.subr.bf16.mxu0 0
    %2153 = vmatpush1.bf16.msra.mxu0 0
    %2154 = vmatprep.subr.bf16.mxu0 0
    %2155 = vmatpush1.bf16.msra.mxu0 0
    %2156 = vmatprep.subr.bf16.mxu0 0
    %2157 = vmatpush1.bf16.msra.mxu0 0
    %2158 = vmatprep.subr.bf16.mxu0 0
    %2159 = vmatpush1.bf16.msra.mxu0 0
    %2160 = vmatprep.subr.bf16.mxu0 %v1482
    %2161 = vmatpush1.bf16.msra.mxu0 %v1481
    %2162 = vmatprep.subr.bf16.mxu0 %v1467
    %2163 = vmatpush1.bf16.msra.mxu0 %v1466
    %2164 = vmatprep.subr.bf16.mxu0 0
    %2165 = vmatpush2.bf16.msra.mxu0 0
    %2166 = vmatprep.subr.bf16.mxu0 0
    %2167 = vmatpush2.bf16.msra.mxu0 0
    %2168 = vmatprep.subr.bf16.mxu0 0
    %2169 = vmatpush2.bf16.msra.mxu0 0
    %2170 = vmatprep.subr.bf16.mxu0 0
    %2171 = vmatpush2.bf16.msra.mxu0 0
    %2172 = vmatprep.subr.bf16.mxu0 0
    %2173 = vmatpush2.bf16.msra.mxu0 0
    %2174 = vmatprep.subr.bf16.mxu0 0
    %2175 = vmatpush2.bf16.msra.mxu0 0
    %2176 = vmatprep.subr.bf16.mxu0 0
    %2177 = vmatpush2.bf16.msra.mxu0 0
    %2178 = vmatprep.subr.bf16.mxu0 0
    %2179 = vmatpush2.bf16.msra.mxu0 0
    %2180 = vmatprep.mubr.bf16.mxu0 0
    %2181 = vmatmul.mubr.bf16.gmra.mxu0 %v1759
    %v2182 = vpop.f32.mrf.mxu0
    %v2183 = vadd.f32 %v2140, %v2182
    %v2184 = vpop.f32.mrf.mxu0
    %v2185 = vadd.f32 %v2142, %v2184
    %v2186 = vpop.f32.mrf.mxu0
    %v2187 = vadd.f32 %v2144, %v2186
    %v2188 = vpop.f32.mrf.mxu0
    %v2189 = vadd.f32 %v2146, %v2188
    %2190 = vdwg.mxu0
    %2191 = vmatprep.subr.bf16.mxu0 %v1334
    %2192 = vmatpush1.bf16.msra.mxu0 %v1333
    %2193 = vmatprep.subr.bf16.mxu0 %v1319
    %2194 = vmatpush1.bf16.msra.mxu0 %v1318
    %2195 = vmatprep.subr.bf16.mxu0 %v1304
    %2196 = vmatpush1.bf16.msra.mxu0 %v1303
    %2197 = vmatprep.subr.bf16.mxu0 %v1289
    %2198 = vmatpush1.bf16.msra.mxu0 %v1288
    %2199 = vmatprep.subr.bf16.mxu0 %v1274
    %2200 = vmatpush1.bf16.msra.mxu0 %v1273
    %2201 = vmatprep.subr.bf16.mxu0 %v1259
    %2202 = vmatpush1.bf16.msra.mxu0 %v1258
    %2203 = vmatprep.subr.bf16.mxu0 %v1244
    %2204 = vmatpush1.bf16.msra.mxu0 %v1243
    %2205 = vmatprep.subr.bf16.mxu0 %v1229
    %2206 = vmatpush1.bf16.msra.mxu0 %v1228
    %2207 = vmatprep.subr.bf16.mxu0 %v1454
    %2208 = vmatpush2.bf16.msra.mxu0 %v1453
    %2209 = vmatprep.subr.bf16.mxu0 %v1439
    %2210 = vmatpush2.bf16.msra.mxu0 %v1438
    %2211 = vmatprep.subr.bf16.mxu0 %v1424
    %2212 = vmatpush2.bf16.msra.mxu0 %v1423
    %2213 = vmatprep.subr.bf16.mxu0 %v1409
    %2214 = vmatpush2.bf16.msra.mxu0 %v1408
    %2215 = vmatprep.subr.bf16.mxu0 %v1394
    %2216 = vmatpush2.bf16.msra.mxu0 %v1393
    %2217 = vmatprep.subr.bf16.mxu0 %v1379
    %2218 = vmatpush2.bf16.msra.mxu0 %v1378
    %2219 = vmatprep.subr.bf16.mxu0 %v1364
    %2220 = vmatpush2.bf16.msra.mxu0 %v1363
    %2221 = vmatprep.subr.bf16.mxu0 %v1349
    %2222 = vmatpush2.bf16.msra.mxu0 %v1348
    %2223 = vmatprep.mubr.bf16.mxu0 %v100
    %2224 = vmatmul.mubr.bf16.gmra.mxu0 %v96
    %v2225 = vpop.f32.mrf.mxu0
    %v2226 = vadd.f32 0.0, %v2225
    %v2227 = vpop.f32.mrf.mxu0
    %v2228 = vadd.f32 0.0, %v2227
    %v2229 = vpop.f32.mrf.mxu0
    %v2230 = vadd.f32 0.0, %v2229
    %v2231 = vpop.f32.mrf.mxu0
    %v2232 = vadd.f32 0.0, %v2231
    %2233 = vdwg.mxu0
    %2234 = vmatprep.subr.bf16.mxu0 0
    %2235 = vmatpush1.bf16.msra.mxu0 0
    %2236 = vmatprep.subr.bf16.mxu0 0
    %2237 = vmatpush1.bf16.msra.mxu0 0
    %2238 = vmatprep.subr.bf16.mxu0 0
    %2239 = vmatpush1.bf16.msra.mxu0 0
    %2240 = vmatprep.subr.bf16.mxu0 0
    %2241 = vmatpush1.bf16.msra.mxu0 0
    %2242 = vmatprep.subr.bf16.mxu0 0
    %2243 = vmatpush1.bf16.msra.mxu0 0
    %2244 = vmatprep.subr.bf16.mxu0 0
    %2245 = vmatpush1.bf16.msra.mxu0 0
    %2246 = vmatprep.subr.bf16.mxu0 %v1484
    %2247 = vmatpush1.bf16.msra.mxu0 %v1483
    %2248 = vmatprep.subr.bf16.mxu0 %v1469
    %2249 = vmatpush1.bf16.msra.mxu0 %v1468
    %2250 = vmatprep.subr.bf16.mxu0 0
    %2251 = vmatpush2.bf16.msra.mxu0 0
    %2252 = vmatprep.subr.bf16.mxu0 0
    %2253 = vmatpush2.bf16.msra.mxu0 0
    %2254 = vmatprep.subr.bf16.mxu0 0
    %2255 = vmatpush2.bf16.msra.mxu0 0
    %2256 = vmatprep.subr.bf16.mxu0 0
    %2257 = vmatpush2.bf16.msra.mxu0 0
    %2258 = vmatprep.subr.bf16.mxu0 0
    %2259 = vmatpush2.bf16.msra.mxu0 0
    %2260 = vmatprep.subr.bf16.mxu0 0
    %2261 = vmatpush2.bf16.msra.mxu0 0
    %2262 = vmatprep.subr.bf16.mxu0 0
    %2263 = vmatpush2.bf16.msra.mxu0 0
    %2264 = vmatprep.subr.bf16.mxu0 0
    %2265 = vmatpush2.bf16.msra.mxu0 0
    %2266 = vmatprep.mubr.bf16.mxu0 0
    %2267 = vmatmul.mubr.bf16.gmra.mxu0 %v1759
    %v2268 = vpop.f32.mrf.mxu0
    %v2269 = vadd.f32 %v2226, %v2268
    %v2270 = vpop.f32.mrf.mxu0
    %v2271 = vadd.f32 %v2228, %v2270
    %v2272 = vpop.f32.mrf.mxu0
    %v2273 = vadd.f32 %v2230, %v2272
    %v2274 = vpop.f32.mrf.mxu0
    %v2275 = vadd.f32 %v2232, %v2274
    %2276 = vdwg.mxu0
    %2277 = vmatprep.subr.bf16.mxu0 %v1336
    %2278 = vmatpush1.bf16.msra.mxu0 %v1335
    %2279 = vmatprep.subr.bf16.mxu0 %v1321
    %2280 = vmatpush1.bf16.msra.mxu0 %v1320
    %2281 = vmatprep.subr.bf16.mxu0 %v1306
    %2282 = vmatpush1.bf16.msra.mxu0 %v1305
    %2283 = vmatprep.subr.bf16.mxu0 %v1291
    %2284 = vmatpush1.bf16.msra.mxu0 %v1290
    %2285 = vmatprep.subr.bf16.mxu0 %v1276
    %2286 = vmatpush1.bf16.msra.mxu0 %v1275
    %2287 = vmatprep.subr.bf16.mxu0 %v1261
    %2288 = vmatpush1.bf16.msra.mxu0 %v1260
    %2289 = vmatprep.subr.bf16.mxu0 %v1246
    %2290 = vmatpush1.bf16.msra.mxu0 %v1245
    %2291 = vmatprep.subr.bf16.mxu0 %v1231
    %2292 = vmatpush1.bf16.msra.mxu0 %v1230
    %2293 = vmatprep.subr.bf16.mxu0 %v1456
    %2294 = vmatpush2.bf16.msra.mxu0 %v1455
    %2295 = vmatprep.subr.bf16.mxu0 %v1441
    %2296 = vmatpush2.bf16.msra.mxu0 %v1440
    %2297 = vmatprep.subr.bf16.mxu0 %v1426
    %2298 = vmatpush2.bf16.msra.mxu0 %v1425
    %2299 = vmatprep.subr.bf16.mxu0 %v1411
    %2300 = vmatpush2.bf16.msra.mxu0 %v1410
    %2301 = vmatprep.subr.bf16.mxu0 %v1396
    %2302 = vmatpush2.bf16.msra.mxu0 %v1395
    %2303 = vmatprep.subr.bf16.mxu0 %v1381
    %2304 = vmatpush2.bf16.msra.mxu0 %v1380
    %2305 = vmatprep.subr.bf16.mxu0 %v1366
    %2306 = vmatpush2.bf16.msra.mxu0 %v1365
    %2307 = vmatprep.subr.bf16.mxu0 %v1351
    %2308 = vmatpush2.bf16.msra.mxu0 %v1350
    %2309 = vmatprep.mubr.bf16.mxu0 %v100
    %2310 = vmatmul.mubr.bf16.gmra.mxu0 %v96
    %v2311 = vpop.f32.mrf.mxu0
    %v2312 = vadd.f32 0.0, %v2311
    %v2313 = vpop.f32.mrf.mxu0
    %v2314 = vadd.f32 0.0, %v2313
    %v2315 = vpop.f32.mrf.mxu0
    %v2316 = vadd.f32 0.0, %v2315
    %v2317 = vpop.f32.mrf.mxu0
    %v2318 = vadd.f32 0.0, %v2317
    %2319 = vdwg.mxu0
    %2320 = vmatprep.subr.bf16.mxu0 0
    %2321 = vmatpush1.bf16.msra.mxu0 0
    %2322 = vmatprep.subr.bf16.mxu0 0
    %2323 = vmatpush1.bf16.msra.mxu0 0
    %2324 = vmatprep.subr.bf16.mxu0 0
    %2325 = vmatpush1.bf16.msra.mxu0 0
    %2326 = vmatprep.subr.bf16.mxu0 0
    %2327 = vmatpush1.bf16.msra.mxu0 0
    %2328 = vmatprep.subr.bf16.mxu0 0
    %2329 = vmatpush1.bf16.msra.mxu0 0
    %2330 = vmatprep.subr.bf16.mxu0 0
    %2331 = vmatpush1.bf16.msra.mxu0 0
    %2332 = vmatprep.subr.bf16.mxu0 %v1486
    %2333 = vmatpush1.bf16.msra.mxu0 %v1485
    %2334 = vmatprep.subr.bf16.mxu0 %v1471
    %2335 = vmatpush1.bf16.msra.mxu0 %v1470
    %2336 = vmatprep.subr.bf16.mxu0 0
    %2337 = vmatpush2.bf16.msra.mxu0 0
    %2338 = vmatprep.subr.bf16.mxu0 0
    %2339 = vmatpush2.bf16.msra.mxu0 0
    %2340 = vmatprep.subr.bf16.mxu0 0
    %2341 = vmatpush2.bf16.msra.mxu0 0
    %2342 = vmatprep.subr.bf16.mxu0 0
    %2343 = vmatpush2.bf16.msra.mxu0 0
    %2344 = vmatprep.subr.bf16.mxu0 0
    %2345 = vmatpush2.bf16.msra.mxu0 0
    %2346 = vmatprep.subr.bf16.mxu0 0
    %2347 = vmatpush2.bf16.msra.mxu0 0
    %2348 = vmatprep.subr.bf16.mxu0 0
    %2349 = vmatpush2.bf16.msra.mxu0 0
    %2350 = vmatprep.subr.bf16.mxu0 0
    %2351 = vmatpush2.bf16.msra.mxu0 0
    %2352 = vmatprep.mubr.bf16.mxu0 0
    %2353 = vmatmul.mubr.bf16.gmra.mxu0 %v1759
    %v2354 = vpop.f32.mrf.mxu0
    %v2355 = vadd.f32 %v2312, %v2354
    %v2356 = vpop.f32.mrf.mxu0
    %v2357 = vadd.f32 %v2314, %v2356
    %v2358 = vpop.f32.mrf.mxu0
    %v2359 = vadd.f32 %v2316, %v2358
    %v2360 = vpop.f32.mrf.mxu0
    %v2361 = vadd.f32 %v2318, %v2360
    %2362 = vdwg.mxu0
    %2363 = vmatprep.subr.bf16.mxu0 0
    %2364 = vmatpush1.bf16.msra.mxu0 %v1337
    %2365 = vmatprep.subr.bf16.mxu0 0
    %2366 = vmatpush1.bf16.msra.mxu0 %v1322
    %2367 = vmatprep.subr.bf16.mxu0 0
    %2368 = vmatpush1.bf16.msra.mxu0 %v1307
    %2369 = vmatprep.subr.bf16.mxu0 0
    %2370 = vmatpush1.bf16.msra.mxu0 %v1292
    %2371 = vmatprep.subr.bf16.mxu0 0
    %2372 = vmatpush1.bf16.msra.mxu0 %v1277
    %2373 = vmatprep.subr.bf16.mxu0 0
    %2374 = vmatpush1.bf16.msra.mxu0 %v1262
    %2375 = vmatprep.subr.bf16.mxu0 0
    %2376 = vmatpush1.bf16.msra.mxu0 %v1247
    %2377 = vmatprep.subr.bf16.mxu0 0
    %2378 = vmatpush1.bf16.msra.mxu0 %v1232
    %2379 = vmatprep.subr.bf16.mxu0 0
    %2380 = vmatpush2.bf16.msra.mxu0 %v1457
    %2381 = vmatprep.subr.bf16.mxu0 0
    %2382 = vmatpush2.bf16.msra.mxu0 %v1442
    %2383 = vmatprep.subr.bf16.mxu0 0
    %2384 = vmatpush2.bf16.msra.mxu0 %v1427
    %2385 = vmatprep.subr.bf16.mxu0 0
    %2386 = vmatpush2.bf16.msra.mxu0 %v1412
    %2387 = vmatprep.subr.bf16.mxu0 0
    %2388 = vmatpush2.bf16.msra.mxu0 %v1397
    %2389 = vmatprep.subr.bf16.mxu0 0
    %2390 = vmatpush2.bf16.msra.mxu0 %v1382
    %2391 = vmatprep.subr.bf16.mxu0 0
    %2392 = vmatpush2.bf16.msra.mxu0 %v1367
    %2393 = vmatprep.subr.bf16.mxu0 0
    %2394 = vmatpush2.bf16.msra.mxu0 %v1352
    %2395 = vmatprep.mubr.bf16.mxu0 %v100
    %2396 = vmatmul.mubr.bf16.gmra.mxu0 %v96
    %v2397 = vpop.f32.mrf.mxu0
    %v2398 = vadd.f32 0.0, %v2397
    %v2399 = vpop.f32.mrf.mxu0
    %v2400 = vpop.f32.mrf.mxu0
    %v2401 = vadd.f32 0.0, %v2400
    %v2402 = vpop.f32.mrf.mxu0
    %2403 = vdwg.mxu0
    %2404 = vmatprep.subr.bf16.mxu0 0
    %2405 = vmatpush1.bf16.msra.mxu0 0
    %2406 = vmatprep.subr.bf16.mxu0 0
    %2407 = vmatpush1.bf16.msra.mxu0 0
    %2408 = vmatprep.subr.bf16.mxu0 0
    %2409 = vmatpush1.bf16.msra.mxu0 0
    %2410 = vmatprep.subr.bf16.mxu0 0
    %2411 = vmatpush1.bf16.msra.mxu0 0
    %2412 = vmatprep.subr.bf16.mxu0 0
    %2413 = vmatpush1.bf16.msra.mxu0 0
    %2414 = vmatprep.subr.bf16.mxu0 0
    %2415 = vmatpush1.bf16.msra.mxu0 0
    %2416 = vmatprep.subr.bf16.mxu0 0
    %2417 = vmatpush1.bf16.msra.mxu0 %v1487
    %2418 = vmatprep.subr.bf16.mxu0 0
    %2419 = vmatpush1.bf16.msra.mxu0 %v1472
    %2420 = vmatprep.subr.bf16.mxu0 0
    %2421 = vmatpush2.bf16.msra.mxu0 0
    %2422 = vmatprep.subr.bf16.mxu0 0
    %2423 = vmatpush2.bf16.msra.mxu0 0
    %2424 = vmatprep.subr.bf16.mxu0 0
    %2425 = vmatpush2.bf16.msra.mxu0 0
    %2426 = vmatprep.subr.bf16.mxu0 0
    %2427 = vmatpush2.bf16.msra.mxu0 0
    %2428 = vmatprep.subr.bf16.mxu0 0
    %2429 = vmatpush2.bf16.msra.mxu0 0
    %2430 = vmatprep.subr.bf16.mxu0 0
    %2431 = vmatpush2.bf16.msra.mxu0 0
    %2432 = vmatprep.subr.bf16.mxu0 0
    %2433 = vmatpush2.bf16.msra.mxu0 0
    %2434 = vmatprep.subr.bf16.mxu0 0
    %2435 = vmatpush2.bf16.msra.mxu0 0
    %2436 = vmatprep.mubr.bf16.mxu0 0
    %2437 = vmatmul.mubr.bf16.gmra.mxu0 %v1759
    %v2438 = vpop.f32.mrf.mxu0
    %v2439 = vadd.f32 %v2398, %v2438
    %v2440 = vpop.f32.mrf.mxu0
    %v2441 = vpop.f32.mrf.mxu0
    %v2442 = vadd.f32 %v2401, %v2441
    %v2443 = vpop.f32.mrf.mxu0
    %2444 = vdwg.mxu0
    %v2445 = vld [vmem:[#allocation7] sm:$0xff]
    %v2446 = vld [vmem:[#allocation7 + $0x8] sm:$0xff]
    %v2449 = vlaneseq
    %v2450 = vshrl.u32 %v2449, 7
    %v2451 = vsub.s32 0, %v2450
    %v2452 = vrot.slane %v2445, %v2451
    %v2453 = vlaneseq
    %v2454 = vshrl.u32 %v2453, 7
    %v2455 = vsub.s32 1, %v2454
    %v2456 = vrot.slane %v2445, %v2455
    %v2457 = vlaneseq
    %v2458 = vshrl.u32 %v2457, 7
    %v2459 = vsub.s32 2, %v2458
    %v2460 = vrot.slane %v2445, %v2459
    %v2461 = vlaneseq
    %v2462 = vshrl.u32 %v2461, 7
    %v2463 = vsub.s32 3, %v2462
    %v2464 = vrot.slane %v2445, %v2463
    %v2465 = vlaneseq
    %v2466 = vshrl.u32 %v2465, 7
    %v2467 = vsub.s32 4, %v2466
    %v2468 = vrot.slane %v2445, %v2467
    %v2469 = vlaneseq
    %v2470 = vshrl.u32 %v2469, 7
    %v2471 = vsub.s32 5, %v2470
    %v2472 = vrot.slane %v2445, %v2471
    %v2473 = vlaneseq
    %v2474 = vshrl.u32 %v2473, 7
    %v2475 = vsub.s32 6, %v2474
    %v2476 = vrot.slane %v2445, %v2475
    %v2477 = vlaneseq
    %v2478 = vshrl.u32 %v2477, 7
    %v2479 = vsub.s32 7, %v2478
    %v2480 = vrot.slane %v2445, %v2479
    %v2481 = vlaneseq
    %v2482 = vshrl.u32 %v2481, 7
    %v2483 = vsub.s32 0, %v2482
    %v2484 = vrot.slane %v2446, %v2483
    %v2485 = vlaneseq
    %v2486 = vshrl.u32 %v2485, 7
    %v2487 = vsub.s32 1, %v2486
    %v2488 = vrot.slane %v2446, %v2487
    %v2489 = vlaneseq
    %v2490 = vshrl.u32 %v2489, 7
    %v2491 = vsub.s32 2, %v2490
    %v2492 = vrot.slane %v2446, %v2491
    %v2493 = vlaneseq
    %v2494 = vshrl.u32 %v2493, 7
    %v2495 = vsub.s32 3, %v2494
    %v2496 = vrot.slane %v2446, %v2495
    %v2497 = vlaneseq
    %v2498 = vshrl.u32 %v2497, 7
    %v2499 = vsub.s32 4, %v2498
    %v2500 = vrot.slane %v2446, %v2499
    %v2501 = vlaneseq
    %v2502 = vshrl.u32 %v2501, 7
    %v2503 = vsub.s32 5, %v2502
    %v2504 = vrot.slane %v2446, %v2503
    %v2505 = vlaneseq
    %v2506 = vshrl.u32 %v2505, 7
    %v2507 = vsub.s32 6, %v2506
    %v2508 = vrot.slane %v2446, %v2507
    %v2524 = vmul.f32 %v1839, %v2452
    %v2525 = vmul.f32 %v1841, %v2456
    %v2526 = vmul.f32 %v1925, %v2460
    %v2527 = vmul.f32 %v1927, %v2464
    %v2528 = vmul.f32 %v2011, %v2468
    %v2529 = vmul.f32 %v2013, %v2472
    %v2530 = vmul.f32 %v2097, %v2476
    %v2531 = vmul.f32 %v2099, %v2480
    %v2532 = vmul.f32 %v2183, %v2484
    %v2533 = vmul.f32 %v2185, %v2488
    %v2534 = vmul.f32 %v2269, %v2492
    %v2535 = vmul.f32 %v2271, %v2496
    %v2536 = vmul.f32 %v2355, %v2500
    %v2537 = vmul.f32 %v2357, %v2504
    %v2538 = vmul.f32 %v2439, %v2508
    %v2539 = vmul.f32 %v1843, %v2452
    %v2540 = vmul.f32 %v1845, %v2456
    %v2541 = vmul.f32 %v1929, %v2460
    %v2542 = vmul.f32 %v1931, %v2464
    %v2543 = vmul.f32 %v2015, %v2468
    %v2544 = vmul.f32 %v2017, %v2472
    %v2545 = vmul.f32 %v2101, %v2476
    %v2546 = vmul.f32 %v2103, %v2480
    %v2547 = vmul.f32 %v2187, %v2484
    %v2548 = vmul.f32 %v2189, %v2488
    %v2549 = vmul.f32 %v2273, %v2492
    %v2550 = vmul.f32 %v2275, %v2496
    %v2551 = vmul.f32 %v2359, %v2500
    %v2552 = vmul.f32 %v2361, %v2504
    %v2553 = vmul.f32 %v2442, %v2508
    %v2554 = vld [vmem:[#allocation8] sm:$0xff]
    %v2555 = vld [vmem:[#allocation8 + $0x8] sm:$0xff]
    %v2558 = vlaneseq
    %v2559 = vshrl.u32 %v2558, 7
    %v2560 = vsub.s32 0, %v2559
    %v2561 = vrot.slane %v2554, %v2560
    %v2562 = vlaneseq
    %v2563 = vshrl.u32 %v2562, 7
    %v2564 = vsub.s32 1, %v2563
    %v2565 = vrot.slane %v2554, %v2564
    %v2566 = vlaneseq
    %v2567 = vshrl.u32 %v2566, 7
    %v2568 = vsub.s32 2, %v2567
    %v2569 = vrot.slane %v2554, %v2568
    %v2570 = vlaneseq
    %v2571 = vshrl.u32 %v2570, 7
    %v2572 = vsub.s32 3, %v2571
    %v2573 = vrot.slane %v2554, %v2572
    %v2574 = vlaneseq
    %v2575 = vshrl.u32 %v2574, 7
    %v2576 = vsub.s32 4, %v2575
    %v2577 = vrot.slane %v2554, %v2576
    %v2578 = vlaneseq
    %v2579 = vshrl.u32 %v2578, 7
    %v2580 = vsub.s32 5, %v2579
    %v2581 = vrot.slane %v2554, %v2580
    %v2582 = vlaneseq
    %v2583 = vshrl.u32 %v2582, 7
    %v2584 = vsub.s32 6, %v2583
    %v2585 = vrot.slane %v2554, %v2584
    %v2586 = vlaneseq
    %v2587 = vshrl.u32 %v2586, 7
    %v2588 = vsub.s32 7, %v2587
    %v2589 = vrot.slane %v2554, %v2588
    %v2590 = vlaneseq
    %v2591 = vshrl.u32 %v2590, 7
    %v2592 = vsub.s32 0, %v2591
    %v2593 = vrot.slane %v2555, %v2592
    %v2594 = vlaneseq
    %v2595 = vshrl.u32 %v2594, 7
    %v2596 = vsub.s32 1, %v2595
    %v2597 = vrot.slane %v2555, %v2596
    %v2598 = vlaneseq
    %v2599 = vshrl.u32 %v2598, 7
    %v2600 = vsub.s32 2, %v2599
    %v2601 = vrot.slane %v2555, %v2600
    %v2602 = vlaneseq
    %v2603 = vshrl.u32 %v2602, 7
    %v2604 = vsub.s32 3, %v2603
    %v2605 = vrot.slane %v2555, %v2604
    %v2606 = vlaneseq
    %v2607 = vshrl.u32 %v2606, 7
    %v2608 = vsub.s32 4, %v2607
    %v2609 = vrot.slane %v2555, %v2608
    %v2610 = vlaneseq
    %v2611 = vshrl.u32 %v2610, 7
    %v2612 = vsub.s32 5, %v2611
    %v2613 = vrot.slane %v2555, %v2612
    %v2614 = vlaneseq
    %v2615 = vshrl.u32 %v2614, 7
    %v2616 = vsub.s32 6, %v2615
    %v2617 = vrot.slane %v2555, %v2616
    %v2633 = vadd.f32 %v2524, %v2561
    %v2634 = vadd.f32 %v2525, %v2565
    %v2635 = vadd.f32 %v2526, %v2569
    %v2636 = vadd.f32 %v2527, %v2573
    %v2637 = vadd.f32 %v2528, %v2577
    %v2638 = vadd.f32 %v2529, %v2581
    %v2639 = vadd.f32 %v2530, %v2585
    %v2640 = vadd.f32 %v2531, %v2589
    %v2641 = vadd.f32 %v2532, %v2593
    %v2642 = vadd.f32 %v2533, %v2597
    %v2643 = vadd.f32 %v2534, %v2601
    %v2644 = vadd.f32 %v2535, %v2605
    %v2645 = vadd.f32 %v2536, %v2609
    %v2646 = vadd.f32 %v2537, %v2613
    %v2647 = vadd.f32 %v2538, %v2617
    %v2648 = vadd.f32 %v2539, %v2561
    %v2649 = vadd.f32 %v2540, %v2565
    %v2650 = vadd.f32 %v2541, %v2569
    %v2651 = vadd.f32 %v2542, %v2573
    %v2652 = vadd.f32 %v2543, %v2577
    %v2653 = vadd.f32 %v2544, %v2581
    %v2654 = vadd.f32 %v2545, %v2585
    %v2655 = vadd.f32 %v2546, %v2589
    %v2656 = vadd.f32 %v2547, %v2593
    %v2657 = vadd.f32 %v2548, %v2597
    %v2658 = vadd.f32 %v2549, %v2601
    %v2659 = vadd.f32 %v2550, %v2605
    %v2660 = vadd.f32 %v2551, %v2609
    %v2661 = vadd.f32 %v2552, %v2613
    %v2662 = vadd.f32 %v2553, %v2617
    %v2663 = vand.u32 2147483647, %v2633
    %vm2664 = vcmp.le.f32.partialorder %v2663, 0.7853982
    %vm2665 = vcmp.lt.s32.totalorder %v2633, 0
    %v2666 = vand.u32 %v2633, 2139095040
    %v2667 = vshrl.u32 %v2666, 23
    %v2668 = vsub.s32 %v2667, 127
    %v2669 = vand.u32 2147483647, %v2633
    %v2670 = vand.u32 %v2669, 8388607
    %v2671 = vor.u32 %v2670, 8388608
    %v2672 = vsub.s32 0, %v2671
    %v2673 = vadd.s32 %v2668, 1
    %vm2674 = vcmp.gt.s32.totalorder %v2673, 0
    %v2675 = vsel %vm2674, %v2673, 0
    %v2676 = vshrl.u32 %v2675, 5
    %v2677 = vand.u32 %v2675, 31
    %v2678 = vsub.s32 32, %v2677
    %v2679 = vshrl.u32 683565275, %v2678
    %v2680 = vshll.u32 683565275, %v2677
    %v2681 = vshrl.u32 2475754826, %v2678
    %v2682 = vor.u32 %v2680, %v2681
    %v2683 = vshll.u32 2475754826, %v2677
    %v2684 = vshrl.u32 2131351028, %v2678
    %v2685 = vor.u32 %v2683, %v2684
    %v2686 = vshll.u32 2131351028, %v2677
    %v2687 = vshrl.u32 2102212464, %v2678
    %v2688 = vor.u32 %v2686, %v2687
    %v2689 = vshll.u32 2102212464, %v2677
    %v2690 = vshrl.u32 920167782, %v2678
    %v2691 = vor.u32 %v2689, %v2690
    %v2692 = vshll.u32 920167782, %v2677
    %v2693 = vshrl.u32 1326507024, %v2678
    %v2694 = vor.u32 %v2692, %v2693
    %vm2695 = vcmp.lt.s32.totalorder %v2676, 1
    %vm2696 = vcmp.lt.s32.totalorder %v2676, 2
    %vm2697 = vcmp.lt.s32.totalorder %v2676, 3
    %vm2698 = vcmp.lt.s32.totalorder %v2676, 4
    %v2699 = vsel %vm2695, %v2679, %v2682
    %v2700 = vsel %vm2698, %v2688, 2102212464
    %v2701 = vsel %vm2697, %v2685, %v2700
    %v2702 = vsel %vm2696, %v2699, %v2701
    %v2703 = vsel %vm2695, %v2682, %v2685
    %v2704 = vsel %vm2698, %v2691, 920167782
    %v2705 = vsel %vm2697, %v2688, %v2704
    %v2706 = vsel %vm2696, %v2703, %v2705
    %v2707 = vsel %vm2695, %v2685, %v2688
    %v2708 = vsel %vm2698, %v2694, 1326507024
    %v2709 = vsel %vm2697, %v2691, %v2708
    %v2710 = vsel %vm2696, %v2707, %v2709
    %v2711 = vshll.u32 %v2671, 8
    %v2712 = vmul.u32.u64.compose %v2711, %v2710
    %v2713 = vextract.low.u32 %v2712
    %v2714 = vextract.high.u32 %v2712
    %v2715 = vmul.u32.u64.compose %v2711, %v2706
    %v2716 = vextract.low.u32 %v2715
    %v2717 = vextract.high.u32 %v2715
    %v2718 = vmul.u32 %v2711, %v2702
    %v2719 = vadd.s32 %v2714, %v2716
    %vm2720 = vc.u32 %v2714, %v2716
    %v2721 = vadd.s32 %v2717, 1
    %v2722 = vsel %vm2720, %v2721, %v2717
    %v2723 = vadd.s32 %v2718, %v2722
    %v2724 = vadd.s32 %v2723, 536870912
    %v2725 = vshrl.u32 %v2724, 30
    %v2726 = vshll.u32 %v2725, 30
    %v2727 = vsub.s32 %v2723, %v2726
    %vm2728 = vcmp.lt.s32.totalorder %v2727, 0
    %v2729 = vsub.s32 0, %v2727
    %v2730 = vsel %vm2728, %v2729, %v2727
    %v2731 = vclz %v2730
    %v2732 = vsub.s32 %v2731, 2
    %vm2733 = vcmp.gt.s32.totalorder 0, %v2732
    %v2734 = vsel %vm2733, 0, %v2732
    %v2735 = vsub.s32 32, %v2734
    %v2736 = vshll.u32 %v2727, %v2734
    %v2737 = vshrl.u32 %v2719, %v2735
    %v2738 = vor.u32 %v2736, %v2737
    %v2739 = vsub.s32 4294967266, %v2734
    %v2740 = vadd.s32 %v2739, 127
    %v2741 = vshll.u32 %v2740, 23
    %v2742 = vor.u32 4788187, %v2741
    %v2743 = vand.u32 2147483647, %v2742
    %v2745 = vcvt.s32.f32 %v2738
    %v2746 = vmul.f32 %v2745, %v2743
    %v2747 = vxor.u32 %v2746, 2147483648
    %v2748 = vsel %vm2665, %v2747, %v2746
    %v2749 = vsub.s32 4, %v2725
    %v2750 = vsel %vm2665, %v2749, %v2725
    %v2751 = vsel %vm2664, %v2633, %v2748
    %v2752 = vsel %vm2664, 0, %v2750
    %v2753 = vcosq.f32.pop %v2751
    %v2754 = vsinq.f32.pop %v2751
    %vm2755 = vweird.f32 %v2633
    %v2756 = vadd.s32 %v2752, 3
    %v2757 = vand.u32 %v2756, 3
    %vm2758 = vcmp.lt.s32.totalorder %v2757, 2
    %vm2759 = vcmp.eq.s32.totalorder %v2757, 0
    %v2760 = vxor.u32 %v2754, 2147483648
    %v2761 = vsel %vm2759, %v2753, %v2760
    %vm2762 = vcmp.eq.s32.totalorder %v2757, 2
    %v2763 = vxor.u32 %v2753, 2147483648
    %v2764 = vsel %vm2762, %v2763, %v2754
    %v2765 = vsel %vm2758, %v2761, %v2764
    %v2766 = vsel %vm2755, nan, %v2765
    %v2767 = vand.u32 2147483647, %v2634
    %vm2768 = vcmp.le.f32.partialorder %v2767, 0.7853982
    %vm2769 = vcmp.lt.s32.totalorder %v2634, 0
    %v2770 = vand.u32 %v2634, 2139095040
    %v2771 = vshrl.u32 %v2770, 23
    %v2772 = vsub.s32 %v2771, 127
    %v2773 = vand.u32 2147483647, %v2634
    %v2774 = vand.u32 %v2773, 8388607
    %v2775 = vor.u32 %v2774, 8388608
    %v2776 = vsub.s32 0, %v2775
    %v2777 = vadd.s32 %v2772, 1
    %vm2778 = vcmp.gt.s32.totalorder %v2777, 0
    %v2779 = vsel %vm2778, %v2777, 0
    %v2780 = vshrl.u32 %v2779, 5
    %v2781 = vand.u32 %v2779, 31
    %v2782 = vsub.s32 32, %v2781
    %v2783 = vshrl.u32 683565275, %v2782
    %v2784 = vshll.u32 683565275, %v2781
    %v2785 = vshrl.u32 2475754826, %v2782
    %v2786 = vor.u32 %v2784, %v2785
    %v2787 = vshll.u32 2475754826, %v2781
    %v2788 = vshrl.u32 2131351028, %v2782
    %v2789 = vor.u32 %v2787, %v2788
    %v2790 = vshll.u32 2131351028, %v2781
    %v2791 = vshrl.u32 2102212464, %v2782
    %v2792 = vor.u32 %v2790, %v2791
    %v2793 = vshll.u32 2102212464, %v2781
    %v2794 = vshrl.u32 920167782, %v2782
    %v2795 = vor.u32 %v2793, %v2794
    %v2796 = vshll.u32 920167782, %v2781
    %v2797 = vshrl.u32 1326507024, %v2782
    %v2798 = vor.u32 %v2796, %v2797
    %vm2799 = vcmp.lt.s32.totalorder %v2780, 1
    %vm2800 = vcmp.lt.s32.totalorder %v2780, 2
    %vm2801 = vcmp.lt.s32.totalorder %v2780, 3
    %vm2802 = vcmp.lt.s32.totalorder %v2780, 4
    %v2803 = vsel %vm2799, %v2783, %v2786
    %v2804 = vsel %vm2802, %v2792, 2102212464
    %v2805 = vsel %vm2801, %v2789, %v2804
    %v2806 = vsel %vm2800, %v2803, %v2805
    %v2807 = vsel %vm2799, %v2786, %v2789
    %v2808 = vsel %vm2802, %v2795, 920167782
    %v2809 = vsel %vm2801, %v2792, %v2808
    %v2810 = vsel %vm2800, %v2807, %v2809
    %v2811 = vsel %vm2799, %v2789, %v2792
    %v2812 = vsel %vm2802, %v2798, 1326507024
    %v2813 = vsel %vm2801, %v2795, %v2812
    %v2814 = vsel %vm2800, %v2811, %v2813
    %v2815 = vshll.u32 %v2775, 8
    %v2816 = vmul.u32.u64.compose %v2815, %v2814
    %v2817 = vextract.low.u32 %v2816
    %v2818 = vextract.high.u32 %v2816
    %v2819 = vmul.u32.u64.compose %v2815, %v2810
    %v2820 = vextract.low.u32 %v2819
    %v2821 = vextract.high.u32 %v2819
    %v2822 = vmul.u32 %v2815, %v2806
    %v2823 = vadd.s32 %v2818, %v2820
    %vm2824 = vc.u32 %v2818, %v2820
    %v2825 = vadd.s32 %v2821, 1
    %v2826 = vsel %vm2824, %v2825, %v2821
    %v2827 = vadd.s32 %v2822, %v2826
    %v2828 = vadd.s32 %v2827, 536870912
    %v2829 = vshrl.u32 %v2828, 30
    %v2830 = vshll.u32 %v2829, 30
    %v2831 = vsub.s32 %v2827, %v2830
    %vm2832 = vcmp.lt.s32.totalorder %v2831, 0
    %v2833 = vsub.s32 0, %v2831
    %v2834 = vsel %vm2832, %v2833, %v2831
    %v2835 = vclz %v2834
    %v2836 = vsub.s32 %v2835, 2
    %vm2837 = vcmp.gt.s32.totalorder 0, %v2836
    %v2838 = vsel %vm2837, 0, %v2836
    %v2839 = vsub.s32 32, %v2838
    %v2840 = vshll.u32 %v2831, %v2838
    %v2841 = vshrl.u32 %v2823, %v2839
    %v2842 = vor.u32 %v2840, %v2841
    %v2843 = vsub.s32 4294967266, %v2838
    %v2844 = vadd.s32 %v2843, 127
    %v2845 = vshll.u32 %v2844, 23
    %v2846 = vor.u32 4788187, %v2845
    %v2847 = vand.u32 2147483647, %v2846
    %v2849 = vcvt.s32.f32 %v2842
    %v2850 = vmul.f32 %v2849, %v2847
    %v2851 = vxor.u32 %v2850, 2147483648
    %v2852 = vsel %vm2769, %v2851, %v2850
    %v2853 = vsub.s32 4, %v2829
    %v2854 = vsel %vm2769, %v2853, %v2829
    %v2855 = vsel %vm2768, %v2634, %v2852
    %v2856 = vsel %vm2768, 0, %v2854
    %v2857 = vcosq.f32.pop %v2855
    %v2858 = vsinq.f32.pop %v2855
    %vm2859 = vweird.f32 %v2634
    %v2860 = vadd.s32 %v2856, 3
    %v2861 = vand.u32 %v2860, 3
    %vm2862 = vcmp.lt.s32.totalorder %v2861, 2
    %vm2863 = vcmp.eq.s32.totalorder %v2861, 0
    %v2864 = vxor.u32 %v2858, 2147483648
    %v2865 = vsel %vm2863, %v2857, %v2864
    %vm2866 = vcmp.eq.s32.totalorder %v2861, 2
    %v2867 = vxor.u32 %v2857, 2147483648
    %v2868 = vsel %vm2866, %v2867, %v2858
    %v2869 = vsel %vm2862, %v2865, %v2868
    %v2870 = vsel %vm2859, nan, %v2869
    %v2871 = vand.u32 2147483647, %v2635
    %vm2872 = vcmp.le.f32.partialorder %v2871, 0.7853982
    %vm2873 = vcmp.lt.s32.totalorder %v2635, 0
    %v2874 = vand.u32 %v2635, 2139095040
    %v2875 = vshrl.u32 %v2874, 23
    %v2876 = vsub.s32 %v2875, 127
    %v2877 = vand.u32 2147483647, %v2635
    %v2878 = vand.u32 %v2877, 8388607
    %v2879 = vor.u32 %v2878, 8388608
    %v2880 = vsub.s32 0, %v2879
    %v2881 = vadd.s32 %v2876, 1
    %vm2882 = vcmp.gt.s32.totalorder %v2881, 0
    %v2883 = vsel %vm2882, %v2881, 0
    %v2884 = vshrl.u32 %v2883, 5
    %v2885 = vand.u32 %v2883, 31
    %v2886 = vsub.s32 32, %v2885
    %v2887 = vshrl.u32 683565275, %v2886
    %v2888 = vshll.u32 683565275, %v2885
    %v2889 = vshrl.u32 2475754826, %v2886
    %v2890 = vor.u32 %v2888, %v2889
    %v2891 = vshll.u32 2475754826, %v2885
    %v2892 = vshrl.u32 2131351028, %v2886
    %v2893 = vor.u32 %v2891, %v2892
    %v2894 = vshll.u32 2131351028, %v2885
    %v2895 = vshrl.u32 2102212464, %v2886
    %v2896 = vor.u32 %v2894, %v2895
    %v2897 = vshll.u32 2102212464, %v2885
    %v2898 = vshrl.u32 920167782, %v2886
    %v2899 = vor.u32 %v2897, %v2898
    %v2900 = vshll.u32 920167782, %v2885
    %v2901 = vshrl.u32 1326507024, %v2886
    %v2902 = vor.u32 %v2900, %v2901
    %vm2903 = vcmp.lt.s32.totalorder %v2884, 1
    %vm2904 = vcmp.lt.s32.totalorder %v2884, 2
    %vm2905 = vcmp.lt.s32.totalorder %v2884, 3
    %vm2906 = vcmp.lt.s32.totalorder %v2884, 4
    %v2907 = vsel %vm2903, %v2887, %v2890
    %v2908 = vsel %vm2906, %v2896, 2102212464
    %v2909 = vsel %vm2905, %v2893, %v2908
    %v2910 = vsel %vm2904, %v2907, %v2909
    %v2911 = vsel %vm2903, %v2890, %v2893
    %v2912 = vsel %vm2906, %v2899, 920167782
    %v2913 = vsel %vm2905, %v2896, %v2912
    %v2914 = vsel %vm2904, %v2911, %v2913
    %v2915 = vsel %vm2903, %v2893, %v2896
    %v2916 = vsel %vm2906, %v2902, 1326507024
    %v2917 = vsel %vm2905, %v2899, %v2916
    %v2918 = vsel %vm2904, %v2915, %v2917
    %v2919 = vshll.u32 %v2879, 8
    %v2920 = vmul.u32.u64.compose %v2919, %v2918
    %v2921 = vextract.low.u32 %v2920
    %v2922 = vextract.high.u32 %v2920
    %v2923 = vmul.u32.u64.compose %v2919, %v2914
    %v2924 = vextract.low.u32 %v2923
    %v2925 = vextract.high.u32 %v2923
    %v2926 = vmul.u32 %v2919, %v2910
    %v2927 = vadd.s32 %v2922, %v2924
    %vm2928 = vc.u32 %v2922, %v2924
    %v2929 = vadd.s32 %v2925, 1
    %v2930 = vsel %vm2928, %v2929, %v2925
    %v2931 = vadd.s32 %v2926, %v2930
    %v2932 = vadd.s32 %v2931, 536870912
    %v2933 = vshrl.u32 %v2932, 30
    %v2934 = vshll.u32 %v2933, 30
    %v2935 = vsub.s32 %v2931, %v2934
    %vm2936 = vcmp.lt.s32.totalorder %v2935, 0
    %v2937 = vsub.s32 0, %v2935
    %v2938 = vsel %vm2936, %v2937, %v2935
    %v2939 = vclz %v2938
    %v2940 = vsub.s32 %v2939, 2
    %vm2941 = vcmp.gt.s32.totalorder 0, %v2940
    %v2942 = vsel %vm2941, 0, %v2940
    %v2943 = vsub.s32 32, %v2942
    %v2944 = vshll.u32 %v2935, %v2942
    %v2945 = vshrl.u32 %v2927, %v2943
    %v2946 = vor.u32 %v2944, %v2945
    %v2947 = vsub.s32 4294967266, %v2942
    %v2948 = vadd.s32 %v2947, 127
    %v2949 = vshll.u32 %v2948, 23
    %v2950 = vor.u32 4788187, %v2949
    %v2951 = vand.u32 2147483647, %v2950
    %v2953 = vcvt.s32.f32 %v2946
    %v2954 = vmul.f32 %v2953, %v2951
    %v2955 = vxor.u32 %v2954, 2147483648
    %v2956 = vsel %vm2873, %v2955, %v2954
    %v2957 = vsub.s32 4, %v2933
    %v2958 = vsel %vm2873, %v2957, %v2933
    %v2959 = vsel %vm2872, %v2635, %v2956
    %v2960 = vsel %vm2872, 0, %v2958
    %v2961 = vcosq.f32.pop %v2959
    %v2962 = vsinq.f32.pop %v2959
    %vm2963 = vweird.f32 %v2635
    %v2964 = vadd.s32 %v2960, 3
    %v2965 = vand.u32 %v2964, 3
    %vm2966 = vcmp.lt.s32.totalorder %v2965, 2
    %vm2967 = vcmp.eq.s32.totalorder %v2965, 0
    %v2968 = vxor.u32 %v2962, 2147483648
    %v2969 = vsel %vm2967, %v2961, %v2968
    %vm2970 = vcmp.eq.s32.totalorder %v2965, 2
    %v2971 = vxor.u32 %v2961, 2147483648
    %v2972 = vsel %vm2970, %v2971, %v2962
    %v2973 = vsel %vm2966, %v2969, %v2972
    %v2974 = vsel %vm2963, nan, %v2973
    %v2975 = vand.u32 2147483647, %v2636
    %vm2976 = vcmp.le.f32.partialorder %v2975, 0.7853982
    %vm2977 = vcmp.lt.s32.totalorder %v2636, 0
    %v2978 = vand.u32 %v2636, 2139095040
    %v2979 = vshrl.u32 %v2978, 23
    %v2980 = vsub.s32 %v2979, 127
    %v2981 = vand.u32 2147483647, %v2636
    %v2982 = vand.u32 %v2981, 8388607
    %v2983 = vor.u32 %v2982, 8388608
    %v2984 = vsub.s32 0, %v2983
    %v2985 = vadd.s32 %v2980, 1
    %vm2986 = vcmp.gt.s32.totalorder %v2985, 0
    %v2987 = vsel %vm2986, %v2985, 0
    %v2988 = vshrl.u32 %v2987, 5
    %v2989 = vand.u32 %v2987, 31
    %v2990 = vsub.s32 32, %v2989
    %v2991 = vshrl.u32 683565275, %v2990
    %v2992 = vshll.u32 683565275, %v2989
    %v2993 = vshrl.u32 2475754826, %v2990
    %v2994 = vor.u32 %v2992, %v2993
    %v2995 = vshll.u32 2475754826, %v2989
    %v2996 = vshrl.u32 2131351028, %v2990
    %v2997 = vor.u32 %v2995, %v2996
    %v2998 = vshll.u32 2131351028, %v2989
    %v2999 = vshrl.u32 2102212464, %v2990
    %v3000 = vor.u32 %v2998, %v2999
    %v3001 = vshll.u32 2102212464, %v2989
    %v3002 = vshrl.u32 920167782, %v2990
    %v3003 = vor.u32 %v3001, %v3002
    %v3004 = vshll.u32 920167782, %v2989
    %v3005 = vshrl.u32 1326507024, %v2990
    %v3006 = vor.u32 %v3004, %v3005
    %vm3007 = vcmp.lt.s32.totalorder %v2988, 1
    %vm3008 = vcmp.lt.s32.totalorder %v2988, 2
    %vm3009 = vcmp.lt.s32.totalorder %v2988, 3
    %vm3010 = vcmp.lt.s32.totalorder %v2988, 4
    %v3011 = vsel %vm3007, %v2991, %v2994
    %v3012 = vsel %vm3010, %v3000, 2102212464
    %v3013 = vsel %vm3009, %v2997, %v3012
    %v3014 = vsel %vm3008, %v3011, %v3013
    %v3015 = vsel %vm3007, %v2994, %v2997
    %v3016 = vsel %vm3010, %v3003, 920167782
    %v3017 = vsel %vm3009, %v3000, %v3016
    %v3018 = vsel %vm3008, %v3015, %v3017
    %v3019 = vsel %vm3007, %v2997, %v3000
    %v3020 = vsel %vm3010, %v3006, 1326507024
    %v3021 = vsel %vm3009, %v3003, %v3020
    %v3022 = vsel %vm3008, %v3019, %v3021
    %v3023 = vshll.u32 %v2983, 8
    %v3024 = vmul.u32.u64.compose %v3023, %v3022
    %v3025 = vextract.low.u32 %v3024
    %v3026 = vextract.high.u32 %v3024
    %v3027 = vmul.u32.u64.compose %v3023, %v3018
    %v3028 = vextract.low.u32 %v3027
    %v3029 = vextract.high.u32 %v3027
    %v3030 = vmul.u32 %v3023, %v3014
    %v3031 = vadd.s32 %v3026, %v3028
    %vm3032 = vc.u32 %v3026, %v3028
    %v3033 = vadd.s32 %v3029, 1
    %v3034 = vsel %vm3032, %v3033, %v3029
    %v3035 = vadd.s32 %v3030, %v3034
    %v3036 = vadd.s32 %v3035, 536870912
    %v3037 = vshrl.u32 %v3036, 30
    %v3038 = vshll.u32 %v3037, 30
    %v3039 = vsub.s32 %v3035, %v3038
    %vm3040 = vcmp.lt.s32.totalorder %v3039, 0
    %v3041 = vsub.s32 0, %v3039
    %v3042 = vsel %vm3040, %v3041, %v3039
    %v3043 = vclz %v3042
    %v3044 = vsub.s32 %v3043, 2
    %vm3045 = vcmp.gt.s32.totalorder 0, %v3044
    %v3046 = vsel %vm3045, 0, %v3044
    %v3047 = vsub.s32 32, %v3046
    %v3048 = vshll.u32 %v3039, %v3046
    %v3049 = vshrl.u32 %v3031, %v3047
    %v3050 = vor.u32 %v3048, %v3049
    %v3051 = vsub.s32 4294967266, %v3046
    %v3052 = vadd.s32 %v3051, 127
    %v3053 = vshll.u32 %v3052, 23
    %v3054 = vor.u32 4788187, %v3053
    %v3055 = vand.u32 2147483647, %v3054
    %v3057 = vcvt.s32.f32 %v3050
    %v3058 = vmul.f32 %v3057, %v3055
    %v3059 = vxor.u32 %v3058, 2147483648
    %v3060 = vsel %vm2977, %v3059, %v3058
    %v3061 = vsub.s32 4, %v3037
    %v3062 = vsel %vm2977, %v3061, %v3037
    %v3063 = vsel %vm2976, %v2636, %v3060
    %v3064 = vsel %vm2976, 0, %v3062
    %v3065 = vcosq.f32.pop %v3063
    %v3066 = vsinq.f32.pop %v3063
    %vm3067 = vweird.f32 %v2636
    %v3068 = vadd.s32 %v3064, 3
    %v3069 = vand.u32 %v3068, 3
    %vm3070 = vcmp.lt.s32.totalorder %v3069, 2
    %vm3071 = vcmp.eq.s32.totalorder %v3069, 0
    %v3072 = vxor.u32 %v3066, 2147483648
    %v3073 = vsel %vm3071, %v3065, %v3072
    %vm3074 = vcmp.eq.s32.totalorder %v3069, 2
    %v3075 = vxor.u32 %v3065, 2147483648
    %v3076 = vsel %vm3074, %v3075, %v3066
    %v3077 = vsel %vm3070, %v3073, %v3076
    %v3078 = vsel %vm3067, nan, %v3077
    %v3079 = vand.u32 2147483647, %v2637
    %vm3080 = vcmp.le.f32.partialorder %v3079, 0.7853982
    %vm3081 = vcmp.lt.s32.totalorder %v2637, 0
    %v3082 = vand.u32 %v2637, 2139095040
    %v3083 = vshrl.u32 %v3082, 23
    %v3084 = vsub.s32 %v3083, 127
    %v3085 = vand.u32 2147483647, %v2637
    %v3086 = vand.u32 %v3085, 8388607
    %v3087 = vor.u32 %v3086, 8388608
    %v3088 = vsub.s32 0, %v3087
    %v3089 = vadd.s32 %v3084, 1
    %vm3090 = vcmp.gt.s32.totalorder %v3089, 0
    %v3091 = vsel %vm3090, %v3089, 0
    %v3092 = vshrl.u32 %v3091, 5
    %v3093 = vand.u32 %v3091, 31
    %v3094 = vsub.s32 32, %v3093
    %v3095 = vshrl.u32 683565275, %v3094
    %v3096 = vshll.u32 683565275, %v3093
    %v3097 = vshrl.u32 2475754826, %v3094
    %v3098 = vor.u32 %v3096, %v3097
    %v3099 = vshll.u32 2475754826, %v3093
    %v3100 = vshrl.u32 2131351028, %v3094
    %v3101 = vor.u32 %v3099, %v3100
    %v3102 = vshll.u32 2131351028, %v3093
    %v3103 = vshrl.u32 2102212464, %v3094
    %v3104 = vor.u32 %v3102, %v3103
    %v3105 = vshll.u32 2102212464, %v3093
    %v3106 = vshrl.u32 920167782, %v3094
    %v3107 = vor.u32 %v3105, %v3106
    %v3108 = vshll.u32 920167782, %v3093
    %v3109 = vshrl.u32 1326507024, %v3094
    %v3110 = vor.u32 %v3108, %v3109
    %vm3111 = vcmp.lt.s32.totalorder %v3092, 1
    %vm3112 = vcmp.lt.s32.totalorder %v3092, 2
    %vm3113 = vcmp.lt.s32.totalorder %v3092, 3
    %vm3114 = vcmp.lt.s32.totalorder %v3092, 4
    %v3115 = vsel %vm3111, %v3095, %v3098
    %v3116 = vsel %vm3114, %v3104, 2102212464
    %v3117 = vsel %vm3113, %v3101, %v3116
    %v3118 = vsel %vm3112, %v3115, %v3117
    %v3119 = vsel %vm3111, %v3098, %v3101
    %v3120 = vsel %vm3114, %v3107, 920167782
    %v3121 = vsel %vm3113, %v3104, %v3120
    %v3122 = vsel %vm3112, %v3119, %v3121
    %v3123 = vsel %vm3111, %v3101, %v3104
    %v3124 = vsel %vm3114, %v3110, 1326507024
    %v3125 = vsel %vm3113, %v3107, %v3124
    %v3126 = vsel %vm3112, %v3123, %v3125
    %v3127 = vshll.u32 %v3087, 8
    %v3128 = vmul.u32.u64.compose %v3127, %v3126
    %v3129 = vextract.low.u32 %v3128
    %v3130 = vextract.high.u32 %v3128
    %v3131 = vmul.u32.u64.compose %v3127, %v3122
    %v3132 = vextract.low.u32 %v3131
    %v3133 = vextract.high.u32 %v3131
    %v3134 = vmul.u32 %v3127, %v3118
    %v3135 = vadd.s32 %v3130, %v3132
    %vm3136 = vc.u32 %v3130, %v3132
    %v3137 = vadd.s32 %v3133, 1
    %v3138 = vsel %vm3136, %v3137, %v3133
    %v3139 = vadd.s32 %v3134, %v3138
    %v3140 = vadd.s32 %v3139, 536870912
    %v3141 = vshrl.u32 %v3140, 30
    %v3142 = vshll.u32 %v3141, 30
    %v3143 = vsub.s32 %v3139, %v3142
    %vm3144 = vcmp.lt.s32.totalorder %v3143, 0
    %v3145 = vsub.s32 0, %v3143
    %v3146 = vsel %vm3144, %v3145, %v3143
    %v3147 = vclz %v3146
    %v3148 = vsub.s32 %v3147, 2
    %vm3149 = vcmp.gt.s32.totalorder 0, %v3148
    %v3150 = vsel %vm3149, 0, %v3148
    %v3151 = vsub.s32 32, %v3150
    %v3152 = vshll.u32 %v3143, %v3150
    %v3153 = vshrl.u32 %v3135, %v3151
    %v3154 = vor.u32 %v3152, %v3153
    %v3155 = vsub.s32 4294967266, %v3150
    %v3156 = vadd.s32 %v3155, 127
    %v3157 = vshll.u32 %v3156, 23
    %v3158 = vor.u32 4788187, %v3157
    %v3159 = vand.u32 2147483647, %v3158
    %v3161 = vcvt.s32.f32 %v3154
    %v3162 = vmul.f32 %v3161, %v3159
    %v3163 = vxor.u32 %v3162, 2147483648
    %v3164 = vsel %vm3081, %v3163, %v3162
    %v3165 = vsub.s32 4, %v3141
    %v3166 = vsel %vm3081, %v3165, %v3141
    %v3167 = vsel %vm3080, %v2637, %v3164
    %v3168 = vsel %vm3080, 0, %v3166
    %v3169 = vcosq.f32.pop %v3167
    %v3170 = vsinq.f32.pop %v3167
    %vm3171 = vweird.f32 %v2637
    %v3172 = vadd.s32 %v3168, 3
    %v3173 = vand.u32 %v3172, 3
    %vm3174 = vcmp.lt.s32.totalorder %v3173, 2
    %vm3175 = vcmp.eq.s32.totalorder %v3173, 0
    %v3176 = vxor.u32 %v3170, 2147483648
    %v3177 = vsel %vm3175, %v3169, %v3176
    %vm3178 = vcmp.eq.s32.totalorder %v3173, 2
    %v3179 = vxor.u32 %v3169, 2147483648
    %v3180 = vsel %vm3178, %v3179, %v3170
    %v3181 = vsel %vm3174, %v3177, %v3180
    %v3182 = vsel %vm3171, nan, %v3181
    %v3183 = vand.u32 2147483647, %v2638
    %vm3184 = vcmp.le.f32.partialorder %v3183, 0.7853982
    %vm3185 = vcmp.lt.s32.totalorder %v2638, 0
    %v3186 = vand.u32 %v2638, 2139095040
    %v3187 = vshrl.u32 %v3186, 23
    %v3188 = vsub.s32 %v3187, 127
    %v3189 = vand.u32 2147483647, %v2638
    %v3190 = vand.u32 %v3189, 8388607
    %v3191 = vor.u32 %v3190, 8388608
    %v3192 = vsub.s32 0, %v3191
    %v3193 = vadd.s32 %v3188, 1
    %vm3194 = vcmp.gt.s32.totalorder %v3193, 0
    %v3195 = vsel %vm3194, %v3193, 0
    %v3196 = vshrl.u32 %v3195, 5
    %v3197 = vand.u32 %v3195, 31
    %v3198 = vsub.s32 32, %v3197
    %v3199 = vshrl.u32 683565275, %v3198
    %v3200 = vshll.u32 683565275, %v3197
    %v3201 = vshrl.u32 2475754826, %v3198
    %v3202 = vor.u32 %v3200, %v3201
    %v3203 = vshll.u32 2475754826, %v3197
    %v3204 = vshrl.u32 2131351028, %v3198
    %v3205 = vor.u32 %v3203, %v3204
    %v3206 = vshll.u32 2131351028, %v3197
    %v3207 = vshrl.u32 2102212464, %v3198
    %v3208 = vor.u32 %v3206, %v3207
    %v3209 = vshll.u32 2102212464, %v3197
    %v3210 = vshrl.u32 920167782, %v3198
    %v3211 = vor.u32 %v3209, %v3210
    %v3212 = vshll.u32 920167782, %v3197
    %v3213 = vshrl.u32 1326507024, %v3198
    %v3214 = vor.u32 %v3212, %v3213
    %vm3215 = vcmp.lt.s32.totalorder %v3196, 1
    %vm3216 = vcmp.lt.s32.totalorder %v3196, 2
    %vm3217 = vcmp.lt.s32.totalorder %v3196, 3
    %vm3218 = vcmp.lt.s32.totalorder %v3196, 4
    %v3219 = vsel %vm3215, %v3199, %v3202
    %v3220 = vsel %vm3218, %v3208, 2102212464
    %v3221 = vsel %vm3217, %v3205, %v3220
    %v3222 = vsel %vm3216, %v3219, %v3221
    %v3223 = vsel %vm3215, %v3202, %v3205
    %v3224 = vsel %vm3218, %v3211, 920167782
    %v3225 = vsel %vm3217, %v3208, %v3224
    %v3226 = vsel %vm3216, %v3223, %v3225
    %v3227 = vsel %vm3215, %v3205, %v3208
    %v3228 = vsel %vm3218, %v3214, 1326507024
    %v3229 = vsel %vm3217, %v3211, %v3228
    %v3230 = vsel %vm3216, %v3227, %v3229
    %v3231 = vshll.u32 %v3191, 8
    %v3232 = vmul.u32.u64.compose %v3231, %v3230
    %v3233 = vextract.low.u32 %v3232
    %v3234 = vextract.high.u32 %v3232
    %v3235 = vmul.u32.u64.compose %v3231, %v3226
    %v3236 = vextract.low.u32 %v3235
    %v3237 = vextract.high.u32 %v3235
    %v3238 = vmul.u32 %v3231, %v3222
    %v3239 = vadd.s32 %v3234, %v3236
    %vm3240 = vc.u32 %v3234, %v3236
    %v3241 = vadd.s32 %v3237, 1
    %v3242 = vsel %vm3240, %v3241, %v3237
    %v3243 = vadd.s32 %v3238, %v3242
    %v3244 = vadd.s32 %v3243, 536870912
    %v3245 = vshrl.u32 %v3244, 30
    %v3246 = vshll.u32 %v3245, 30
    %v3247 = vsub.s32 %v3243, %v3246
    %vm3248 = vcmp.lt.s32.totalorder %v3247, 0
    %v3249 = vsub.s32 0, %v3247
    %v3250 = vsel %vm3248, %v3249, %v3247
    %v3251 = vclz %v3250
    %v3252 = vsub.s32 %v3251, 2
    %vm3253 = vcmp.gt.s32.totalorder 0, %v3252
    %v3254 = vsel %vm3253, 0, %v3252
    %v3255 = vsub.s32 32, %v3254
    %v3256 = vshll.u32 %v3247, %v3254
    %v3257 = vshrl.u32 %v3239, %v3255
    %v3258 = vor.u32 %v3256, %v3257
    %v3259 = vsub.s32 4294967266, %v3254
    %v3260 = vadd.s32 %v3259, 127
    %v3261 = vshll.u32 %v3260, 23
    %v3262 = vor.u32 4788187, %v3261
    %v3263 = vand.u32 2147483647, %v3262
    %v3265 = vcvt.s32.f32 %v3258
    %v3266 = vmul.f32 %v3265, %v3263
    %v3267 = vxor.u32 %v3266, 2147483648
    %v3268 = vsel %vm3185, %v3267, %v3266
    %v3269 = vsub.s32 4, %v3245
    %v3270 = vsel %vm3185, %v3269, %v3245
    %v3271 = vsel %vm3184, %v2638, %v3268
    %v3272 = vsel %vm3184, 0, %v3270
    %v3273 = vcosq.f32.pop %v3271
    %v3274 = vsinq.f32.pop %v3271
    %vm3275 = vweird.f32 %v2638
    %v3276 = vadd.s32 %v3272, 3
    %v3277 = vand.u32 %v3276, 3
    %vm3278 = vcmp.lt.s32.totalorder %v3277, 2
    %vm3279 = vcmp.eq.s32.totalorder %v3277, 0
    %v3280 = vxor.u32 %v3274, 2147483648
    %v3281 = vsel %vm3279, %v3273, %v3280
    %vm3282 = vcmp.eq.s32.totalorder %v3277, 2
    %v3283 = vxor.u32 %v3273, 2147483648
    %v3284 = vsel %vm3282, %v3283, %v3274
    %v3285 = vsel %vm3278, %v3281, %v3284
    %v3286 = vsel %vm3275, nan, %v3285
    %v3287 = vand.u32 2147483647, %v2639
    %vm3288 = vcmp.le.f32.partialorder %v3287, 0.7853982
    %vm3289 = vcmp.lt.s32.totalorder %v2639, 0
    %v3290 = vand.u32 %v2639, 2139095040
    %v3291 = vshrl.u32 %v3290, 23
    %v3292 = vsub.s32 %v3291, 127
    %v3293 = vand.u32 2147483647, %v2639
    %v3294 = vand.u32 %v3293, 8388607
    %v3295 = vor.u32 %v3294, 8388608
    %v3296 = vsub.s32 0, %v3295
    %v3297 = vadd.s32 %v3292, 1
    %vm3298 = vcmp.gt.s32.totalorder %v3297, 0
    %v3299 = vsel %vm3298, %v3297, 0
    %v3300 = vshrl.u32 %v3299, 5
    %v3301 = vand.u32 %v3299, 31
    %v3302 = vsub.s32 32, %v3301
    %v3303 = vshrl.u32 683565275, %v3302
    %v3304 = vshll.u32 683565275, %v3301
    %v3305 = vshrl.u32 2475754826, %v3302
    %v3306 = vor.u32 %v3304, %v3305
    %v3307 = vshll.u32 2475754826, %v3301
    %v3308 = vshrl.u32 2131351028, %v3302
    %v3309 = vor.u32 %v3307, %v3308
    %v3310 = vshll.u32 2131351028, %v3301
    %v3311 = vshrl.u32 2102212464, %v3302
    %v3312 = vor.u32 %v3310, %v3311
    %v3313 = vshll.u32 2102212464, %v3301
    %v3314 = vshrl.u32 920167782, %v3302
    %v3315 = vor.u32 %v3313, %v3314
    %v3316 = vshll.u32 920167782, %v3301
    %v3317 = vshrl.u32 1326507024, %v3302
    %v3318 = vor.u32 %v3316, %v3317
    %vm3319 = vcmp.lt.s32.totalorder %v3300, 1
    %vm3320 = vcmp.lt.s32.totalorder %v3300, 2
    %vm3321 = vcmp.lt.s32.totalorder %v3300, 3
    %vm3322 = vcmp.lt.s32.totalorder %v3300, 4
    %v3323 = vsel %vm3319, %v3303, %v3306
    %v3324 = vsel %vm3322, %v3312, 2102212464
    %v3325 = vsel %vm3321, %v3309, %v3324
    %v3326 = vsel %vm3320, %v3323, %v3325
    %v3327 = vsel %vm3319, %v3306, %v3309
    %v3328 = vsel %vm3322, %v3315, 920167782
    %v3329 = vsel %vm3321, %v3312, %v3328
    %v3330 = vsel %vm3320, %v3327, %v3329
    %v3331 = vsel %vm3319, %v3309, %v3312
    %v3332 = vsel %vm3322, %v3318, 1326507024
    %v3333 = vsel %vm3321, %v3315, %v3332
    %v3334 = vsel %vm3320, %v3331, %v3333
    %v3335 = vshll.u32 %v3295, 8
    %v3336 = vmul.u32.u64.compose %v3335, %v3334
    %v3337 = vextract.low.u32 %v3336
    %v3338 = vextract.high.u32 %v3336
    %v3339 = vmul.u32.u64.compose %v3335, %v3330
    %v3340 = vextract.low.u32 %v3339
    %v3341 = vextract.high.u32 %v3339
    %v3342 = vmul.u32 %v3335, %v3326
    %v3343 = vadd.s32 %v3338, %v3340
    %vm3344 = vc.u32 %v3338, %v3340
    %v3345 = vadd.s32 %v3341, 1
    %v3346 = vsel %vm3344, %v3345, %v3341
    %v3347 = vadd.s32 %v3342, %v3346
    %v3348 = vadd.s32 %v3347, 536870912
    %v3349 = vshrl.u32 %v3348, 30
    %v3350 = vshll.u32 %v3349, 30
    %v3351 = vsub.s32 %v3347, %v3350
    %vm3352 = vcmp.lt.s32.totalorder %v3351, 0
    %v3353 = vsub.s32 0, %v3351
    %v3354 = vsel %vm3352, %v3353, %v3351
    %v3355 = vclz %v3354
    %v3356 = vsub.s32 %v3355, 2
    %vm3357 = vcmp.gt.s32.totalorder 0, %v3356
    %v3358 = vsel %vm3357, 0, %v3356
    %v3359 = vsub.s32 32, %v3358
    %v3360 = vshll.u32 %v3351, %v3358
    %v3361 = vshrl.u32 %v3343, %v3359
    %v3362 = vor.u32 %v3360, %v3361
    %v3363 = vsub.s32 4294967266, %v3358
    %v3364 = vadd.s32 %v3363, 127
    %v3365 = vshll.u32 %v3364, 23
    %v3366 = vor.u32 4788187, %v3365
    %v3367 = vand.u32 2147483647, %v3366
    %v3369 = vcvt.s32.f32 %v3362
    %v3370 = vmul.f32 %v3369, %v3367
    %v3371 = vxor.u32 %v3370, 2147483648
    %v3372 = vsel %vm3289, %v3371, %v3370
    %v3373 = vsub.s32 4, %v3349
    %v3374 = vsel %vm3289, %v3373, %v3349
    %v3375 = vsel %vm3288, %v2639, %v3372
    %v3376 = vsel %vm3288, 0, %v3374
    %v3377 = vcosq.f32.pop %v3375
    %v3378 = vsinq.f32.pop %v3375
    %vm3379 = vweird.f32 %v2639
    %v3380 = vadd.s32 %v3376, 3
    %v3381 = vand.u32 %v3380, 3
    %vm3382 = vcmp.lt.s32.totalorder %v3381, 2
    %vm3383 = vcmp.eq.s32.totalorder %v3381, 0
    %v3384 = vxor.u32 %v3378, 2147483648
    %v3385 = vsel %vm3383, %v3377, %v3384
    %vm3386 = vcmp.eq.s32.totalorder %v3381, 2
    %v3387 = vxor.u32 %v3377, 2147483648
    %v3388 = vsel %vm3386, %v3387, %v3378
    %v3389 = vsel %vm3382, %v3385, %v3388
    %v3390 = vsel %vm3379, nan, %v3389
    %v3391 = vand.u32 2147483647, %v2640
    %vm3392 = vcmp.le.f32.partialorder %v3391, 0.7853982
    %vm3393 = vcmp.lt.s32.totalorder %v2640, 0
    %v3394 = vand.u32 %v2640, 2139095040
    %v3395 = vshrl.u32 %v3394, 23
    %v3396 = vsub.s32 %v3395, 127
    %v3397 = vand.u32 2147483647, %v2640
    %v3398 = vand.u32 %v3397, 8388607
    %v3399 = vor.u32 %v3398, 8388608
    %v3400 = vsub.s32 0, %v3399
    %v3401 = vadd.s32 %v3396, 1
    %vm3402 = vcmp.gt.s32.totalorder %v3401, 0
    %v3403 = vsel %vm3402, %v3401, 0
    %v3404 = vshrl.u32 %v3403, 5
    %v3405 = vand.u32 %v3403, 31
    %v3406 = vsub.s32 32, %v3405
    %v3407 = vshrl.u32 683565275, %v3406
    %v3408 = vshll.u32 683565275, %v3405
    %v3409 = vshrl.u32 2475754826, %v3406
    %v3410 = vor.u32 %v3408, %v3409
    %v3411 = vshll.u32 2475754826, %v3405
    %v3412 = vshrl.u32 2131351028, %v3406
    %v3413 = vor.u32 %v3411, %v3412
    %v3414 = vshll.u32 2131351028, %v3405
    %v3415 = vshrl.u32 2102212464, %v3406
    %v3416 = vor.u32 %v3414, %v3415
    %v3417 = vshll.u32 2102212464, %v3405
    %v3418 = vshrl.u32 920167782, %v3406
    %v3419 = vor.u32 %v3417, %v3418
    %v3420 = vshll.u32 920167782, %v3405
    %v3421 = vshrl.u32 1326507024, %v3406
    %v3422 = vor.u32 %v3420, %v3421
    %vm3423 = vcmp.lt.s32.totalorder %v3404, 1
    %vm3424 = vcmp.lt.s32.totalorder %v3404, 2
    %vm3425 = vcmp.lt.s32.totalorder %v3404, 3
    %vm3426 = vcmp.lt.s32.totalorder %v3404, 4
    %v3427 = vsel %vm3423, %v3407, %v3410
    %v3428 = vsel %vm3426, %v3416, 2102212464
    %v3429 = vsel %vm3425, %v3413, %v3428
    %v3430 = vsel %vm3424, %v3427, %v3429
    %v3431 = vsel %vm3423, %v3410, %v3413
    %v3432 = vsel %vm3426, %v3419, 920167782
    %v3433 = vsel %vm3425, %v3416, %v3432
    %v3434 = vsel %vm3424, %v3431, %v3433
    %v3435 = vsel %vm3423, %v3413, %v3416
    %v3436 = vsel %vm3426, %v3422, 1326507024
    %v3437 = vsel %vm3425, %v3419, %v3436
    %v3438 = vsel %vm3424, %v3435, %v3437
    %v3439 = vshll.u32 %v3399, 8
    %v3440 = vmul.u32.u64.compose %v3439, %v3438
    %v3441 = vextract.low.u32 %v3440
    %v3442 = vextract.high.u32 %v3440
    %v3443 = vmul.u32.u64.compose %v3439, %v3434
    %v3444 = vextract.low.u32 %v3443
    %v3445 = vextract.high.u32 %v3443
    %v3446 = vmul.u32 %v3439, %v3430
    %v3447 = vadd.s32 %v3442, %v3444
    %vm3448 = vc.u32 %v3442, %v3444
    %v3449 = vadd.s32 %v3445, 1
    %v3450 = vsel %vm3448, %v3449, %v3445
    %v3451 = vadd.s32 %v3446, %v3450
    %v3452 = vadd.s32 %v3451, 536870912
    %v3453 = vshrl.u32 %v3452, 30
    %v3454 = vshll.u32 %v3453, 30
    %v3455 = vsub.s32 %v3451, %v3454
    %vm3456 = vcmp.lt.s32.totalorder %v3455, 0
    %v3457 = vsub.s32 0, %v3455
    %v3458 = vsel %vm3456, %v3457, %v3455
    %v3459 = vclz %v3458
    %v3460 = vsub.s32 %v3459, 2
    %vm3461 = vcmp.gt.s32.totalorder 0, %v3460
    %v3462 = vsel %vm3461, 0, %v3460
    %v3463 = vsub.s32 32, %v3462
    %v3464 = vshll.u32 %v3455, %v3462
    %v3465 = vshrl.u32 %v3447, %v3463
    %v3466 = vor.u32 %v3464, %v3465
    %v3467 = vsub.s32 4294967266, %v3462
    %v3468 = vadd.s32 %v3467, 127
    %v3469 = vshll.u32 %v3468, 23
    %v3470 = vor.u32 4788187, %v3469
    %v3471 = vand.u32 2147483647, %v3470
    %v3473 = vcvt.s32.f32 %v3466
    %v3474 = vmul.f32 %v3473, %v3471
    %v3475 = vxor.u32 %v3474, 2147483648
    %v3476 = vsel %vm3393, %v3475, %v3474
    %v3477 = vsub.s32 4, %v3453
    %v3478 = vsel %vm3393, %v3477, %v3453
    %v3479 = vsel %vm3392, %v2640, %v3476
    %v3480 = vsel %vm3392, 0, %v3478
    %v3481 = vcosq.f32.pop %v3479
    %v3482 = vsinq.f32.pop %v3479
    %vm3483 = vweird.f32 %v2640
    %v3484 = vadd.s32 %v3480, 3
    %v3485 = vand.u32 %v3484, 3
    %vm3486 = vcmp.lt.s32.totalorder %v3485, 2
    %vm3487 = vcmp.eq.s32.totalorder %v3485, 0
    %v3488 = vxor.u32 %v3482, 2147483648
    %v3489 = vsel %vm3487, %v3481, %v3488
    %vm3490 = vcmp.eq.s32.totalorder %v3485, 2
    %v3491 = vxor.u32 %v3481, 2147483648
    %v3492 = vsel %vm3490, %v3491, %v3482
    %v3493 = vsel %vm3486, %v3489, %v3492
    %v3494 = vsel %vm3483, nan, %v3493
    %v3495 = vand.u32 2147483647, %v2641
    %vm3496 = vcmp.le.f32.partialorder %v3495, 0.7853982
    %vm3497 = vcmp.lt.s32.totalorder %v2641, 0
    %v3498 = vand.u32 %v2641, 2139095040
    %v3499 = vshrl.u32 %v3498, 23
    %v3500 = vsub.s32 %v3499, 127
    %v3501 = vand.u32 2147483647, %v2641
    %v3502 = vand.u32 %v3501, 8388607
    %v3503 = vor.u32 %v3502, 8388608
    %v3504 = vsub.s32 0, %v3503
    %v3505 = vadd.s32 %v3500, 1
    %vm3506 = vcmp.gt.s32.totalorder %v3505, 0
    %v3507 = vsel %vm3506, %v3505, 0
    %v3508 = vshrl.u32 %v3507, 5
    %v3509 = vand.u32 %v3507, 31
    %v3510 = vsub.s32 32, %v3509
    %v3511 = vshrl.u32 683565275, %v3510
    %v3512 = vshll.u32 683565275, %v3509
    %v3513 = vshrl.u32 2475754826, %v3510
    %v3514 = vor.u32 %v3512, %v3513
    %v3515 = vshll.u32 2475754826, %v3509
    %v3516 = vshrl.u32 2131351028, %v3510
    %v3517 = vor.u32 %v3515, %v3516
    %v3518 = vshll.u32 2131351028, %v3509
    %v3519 = vshrl.u32 2102212464, %v3510
    %v3520 = vor.u32 %v3518, %v3519
    %v3521 = vshll.u32 2102212464, %v3509
    %v3522 = vshrl.u32 920167782, %v3510
    %v3523 = vor.u32 %v3521, %v3522
    %v3524 = vshll.u32 920167782, %v3509
    %v3525 = vshrl.u32 1326507024, %v3510
    %v3526 = vor.u32 %v3524, %v3525
    %vm3527 = vcmp.lt.s32.totalorder %v3508, 1
    %vm3528 = vcmp.lt.s32.totalorder %v3508, 2
    %vm3529 = vcmp.lt.s32.totalorder %v3508, 3
    %vm3530 = vcmp.lt.s32.totalorder %v3508, 4
    %v3531 = vsel %vm3527, %v3511, %v3514
    %v3532 = vsel %vm3530, %v3520, 2102212464
    %v3533 = vsel %vm3529, %v3517, %v3532
    %v3534 = vsel %vm3528, %v3531, %v3533
    %v3535 = vsel %vm3527, %v3514, %v3517
    %v3536 = vsel %vm3530, %v3523, 920167782
    %v3537 = vsel %vm3529, %v3520, %v3536
    %v3538 = vsel %vm3528, %v3535, %v3537
    %v3539 = vsel %vm3527, %v3517, %v3520
    %v3540 = vsel %vm3530, %v3526, 1326507024
    %v3541 = vsel %vm3529, %v3523, %v3540
    %v3542 = vsel %vm3528, %v3539, %v3541
    %v3543 = vshll.u32 %v3503, 8
    %v3544 = vmul.u32.u64.compose %v3543, %v3542
    %v3545 = vextract.low.u32 %v3544
    %v3546 = vextract.high.u32 %v3544
    %v3547 = vmul.u32.u64.compose %v3543, %v3538
    %v3548 = vextract.low.u32 %v3547
    %v3549 = vextract.high.u32 %v3547
    %v3550 = vmul.u32 %v3543, %v3534
    %v3551 = vadd.s32 %v3546, %v3548
    %vm3552 = vc.u32 %v3546, %v3548
    %v3553 = vadd.s32 %v3549, 1
    %v3554 = vsel %vm3552, %v3553, %v3549
    %v3555 = vadd.s32 %v3550, %v3554
    %v3556 = vadd.s32 %v3555, 536870912
    %v3557 = vshrl.u32 %v3556, 30
    %v3558 = vshll.u32 %v3557, 30
    %v3559 = vsub.s32 %v3555, %v3558
    %vm3560 = vcmp.lt.s32.totalorder %v3559, 0
    %v3561 = vsub.s32 0, %v3559
    %v3562 = vsel %vm3560, %v3561, %v3559
    %v3563 = vclz %v3562
    %v3564 = vsub.s32 %v3563, 2
    %vm3565 = vcmp.gt.s32.totalorder 0, %v3564
    %v3566 = vsel %vm3565, 0, %v3564
    %v3567 = vsub.s32 32, %v3566
    %v3568 = vshll.u32 %v3559, %v3566
    %v3569 = vshrl.u32 %v3551, %v3567
    %v3570 = vor.u32 %v3568, %v3569
    %v3571 = vsub.s32 4294967266, %v3566
    %v3572 = vadd.s32 %v3571, 127
    %v3573 = vshll.u32 %v3572, 23
    %v3574 = vor.u32 4788187, %v3573
    %v3575 = vand.u32 2147483647, %v3574
    %v3577 = vcvt.s32.f32 %v3570
    %v3578 = vmul.f32 %v3577, %v3575
    %v3579 = vxor.u32 %v3578, 2147483648
    %v3580 = vsel %vm3497, %v3579, %v3578
    %v3581 = vsub.s32 4, %v3557
    %v3582 = vsel %vm3497, %v3581, %v3557
    %v3583 = vsel %vm3496, %v2641, %v3580
    %v3584 = vsel %vm3496, 0, %v3582
    %v3585 = vcosq.f32.pop %v3583
    %v3586 = vsinq.f32.pop %v3583
    %vm3587 = vweird.f32 %v2641
    %v3588 = vadd.s32 %v3584, 3
    %v3589 = vand.u32 %v3588, 3
    %vm3590 = vcmp.lt.s32.totalorder %v3589, 2
    %vm3591 = vcmp.eq.s32.totalorder %v3589, 0
    %v3592 = vxor.u32 %v3586, 2147483648
    %v3593 = vsel %vm3591, %v3585, %v3592
    %vm3594 = vcmp.eq.s32.totalorder %v3589, 2
    %v3595 = vxor.u32 %v3585, 2147483648
    %v3596 = vsel %vm3594, %v3595, %v3586
    %v3597 = vsel %vm3590, %v3593, %v3596
    %v3598 = vsel %vm3587, nan, %v3597
    %v3599 = vand.u32 2147483647, %v2642
    %vm3600 = vcmp.le.f32.partialorder %v3599, 0.7853982
    %vm3601 = vcmp.lt.s32.totalorder %v2642, 0
    %v3602 = vand.u32 %v2642, 2139095040
    %v3603 = vshrl.u32 %v3602, 23
    %v3604 = vsub.s32 %v3603, 127
    %v3605 = vand.u32 2147483647, %v2642
    %v3606 = vand.u32 %v3605, 8388607
    %v3607 = vor.u32 %v3606, 8388608
    %v3608 = vsub.s32 0, %v3607
    %v3609 = vadd.s32 %v3604, 1
    %vm3610 = vcmp.gt.s32.totalorder %v3609, 0
    %v3611 = vsel %vm3610, %v3609, 0
    %v3612 = vshrl.u32 %v3611, 5
    %v3613 = vand.u32 %v3611, 31
    %v3614 = vsub.s32 32, %v3613
    %v3615 = vshrl.u32 683565275, %v3614
    %v3616 = vshll.u32 683565275, %v3613
    %v3617 = vshrl.u32 2475754826, %v3614
    %v3618 = vor.u32 %v3616, %v3617
    %v3619 = vshll.u32 2475754826, %v3613
    %v3620 = vshrl.u32 2131351028, %v3614
    %v3621 = vor.u32 %v3619, %v3620
    %v3622 = vshll.u32 2131351028, %v3613
    %v3623 = vshrl.u32 2102212464, %v3614
    %v3624 = vor.u32 %v3622, %v3623
    %v3625 = vshll.u32 2102212464, %v3613
    %v3626 = vshrl.u32 920167782, %v3614
    %v3627 = vor.u32 %v3625, %v3626
    %v3628 = vshll.u32 920167782, %v3613
    %v3629 = vshrl.u32 1326507024, %v3614
    %v3630 = vor.u32 %v3628, %v3629
    %vm3631 = vcmp.lt.s32.totalorder %v3612, 1
    %vm3632 = vcmp.lt.s32.totalorder %v3612, 2
    %vm3633 = vcmp.lt.s32.totalorder %v3612, 3
    %vm3634 = vcmp.lt.s32.totalorder %v3612, 4
    %v3635 = vsel %vm3631, %v3615, %v3618
    %v3636 = vsel %vm3634, %v3624, 2102212464
    %v3637 = vsel %vm3633, %v3621, %v3636
    %v3638 = vsel %vm3632, %v3635, %v3637
    %v3639 = vsel %vm3631, %v3618, %v3621
    %v3640 = vsel %vm3634, %v3627, 920167782
    %v3641 = vsel %vm3633, %v3624, %v3640
    %v3642 = vsel %vm3632, %v3639, %v3641
    %v3643 = vsel %vm3631, %v3621, %v3624
    %v3644 = vsel %vm3634, %v3630, 1326507024
    %v3645 = vsel %vm3633, %v3627, %v3644
    %v3646 = vsel %vm3632, %v3643, %v3645
    %v3647 = vshll.u32 %v3607, 8
    %v3648 = vmul.u32.u64.compose %v3647, %v3646
    %v3649 = vextract.low.u32 %v3648
    %v3650 = vextract.high.u32 %v3648
    %v3651 = vmul.u32.u64.compose %v3647, %v3642
    %v3652 = vextract.low.u32 %v3651
    %v3653 = vextract.high.u32 %v3651
    %v3654 = vmul.u32 %v3647, %v3638
    %v3655 = vadd.s32 %v3650, %v3652
    %vm3656 = vc.u32 %v3650, %v3652
    %v3657 = vadd.s32 %v3653, 1
    %v3658 = vsel %vm3656, %v3657, %v3653
    %v3659 = vadd.s32 %v3654, %v3658
    %v3660 = vadd.s32 %v3659, 536870912
    %v3661 = vshrl.u32 %v3660, 30
    %v3662 = vshll.u32 %v3661, 30
    %v3663 = vsub.s32 %v3659, %v3662
    %vm3664 = vcmp.lt.s32.totalorder %v3663, 0
    %v3665 = vsub.s32 0, %v3663
    %v3666 = vsel %vm3664, %v3665, %v3663
    %v3667 = vclz %v3666
    %v3668 = vsub.s32 %v3667, 2
    %vm3669 = vcmp.gt.s32.totalorder 0, %v3668
    %v3670 = vsel %vm3669, 0, %v3668
    %v3671 = vsub.s32 32, %v3670
    %v3672 = vshll.u32 %v3663, %v3670
    %v3673 = vshrl.u32 %v3655, %v3671
    %v3674 = vor.u32 %v3672, %v3673
    %v3675 = vsub.s32 4294967266, %v3670
    %v3676 = vadd.s32 %v3675, 127
    %v3677 = vshll.u32 %v3676, 23
    %v3678 = vor.u32 4788187, %v3677
    %v3679 = vand.u32 2147483647, %v3678
    %v3681 = vcvt.s32.f32 %v3674
    %v3682 = vmul.f32 %v3681, %v3679
    %v3683 = vxor.u32 %v3682, 2147483648
    %v3684 = vsel %vm3601, %v3683, %v3682
    %v3685 = vsub.s32 4, %v3661
    %v3686 = vsel %vm3601, %v3685, %v3661
    %v3687 = vsel %vm3600, %v2642, %v3684
    %v3688 = vsel %vm3600, 0, %v3686
    %v3689 = vcosq.f32.pop %v3687
    %v3690 = vsinq.f32.pop %v3687
    %vm3691 = vweird.f32 %v2642
    %v3692 = vadd.s32 %v3688, 3
    %v3693 = vand.u32 %v3692, 3
    %vm3694 = vcmp.lt.s32.totalorder %v3693, 2
    %vm3695 = vcmp.eq.s32.totalorder %v3693, 0
    %v3696 = vxor.u32 %v3690, 2147483648
    %v3697 = vsel %vm3695, %v3689, %v3696
    %vm3698 = vcmp.eq.s32.totalorder %v3693, 2
    %v3699 = vxor.u32 %v3689, 2147483648
    %v3700 = vsel %vm3698, %v3699, %v3690
    %v3701 = vsel %vm3694, %v3697, %v3700
    %v3702 = vsel %vm3691, nan, %v3701
    %v3703 = vand.u32 2147483647, %v2643
    %vm3704 = vcmp.le.f32.partialorder %v3703, 0.7853982
    %vm3705 = vcmp.lt.s32.totalorder %v2643, 0
    %v3706 = vand.u32 %v2643, 2139095040
    %v3707 = vshrl.u32 %v3706, 23
    %v3708 = vsub.s32 %v3707, 127
    %v3709 = vand.u32 2147483647, %v2643
    %v3710 = vand.u32 %v3709, 8388607
    %v3711 = vor.u32 %v3710, 8388608
    %v3712 = vsub.s32 0, %v3711
    %v3713 = vadd.s32 %v3708, 1
    %vm3714 = vcmp.gt.s32.totalorder %v3713, 0
    %v3715 = vsel %vm3714, %v3713, 0
    %v3716 = vshrl.u32 %v3715, 5
    %v3717 = vand.u32 %v3715, 31
    %v3718 = vsub.s32 32, %v3717
    %v3719 = vshrl.u32 683565275, %v3718
    %v3720 = vshll.u32 683565275, %v3717
    %v3721 = vshrl.u32 2475754826, %v3718
    %v3722 = vor.u32 %v3720, %v3721
    %v3723 = vshll.u32 2475754826, %v3717
    %v3724 = vshrl.u32 2131351028, %v3718
    %v3725 = vor.u32 %v3723, %v3724
    %v3726 = vshll.u32 2131351028, %v3717
    %v3727 = vshrl.u32 2102212464, %v3718
    %v3728 = vor.u32 %v3726, %v3727
    %v3729 = vshll.u32 2102212464, %v3717
    %v3730 = vshrl.u32 920167782, %v3718
    %v3731 = vor.u32 %v3729, %v3730
    %v3732 = vshll.u32 920167782, %v3717
    %v3733 = vshrl.u32 1326507024, %v3718
    %v3734 = vor.u32 %v3732, %v3733
    %vm3735 = vcmp.lt.s32.totalorder %v3716, 1
    %vm3736 = vcmp.lt.s32.totalorder %v3716, 2
    %vm3737 = vcmp.lt.s32.totalorder %v3716, 3
    %vm3738 = vcmp.lt.s32.totalorder %v3716, 4
    %v3739 = vsel %vm3735, %v3719, %v3722
    %v3740 = vsel %vm3738, %v3728, 2102212464
    %v3741 = vsel %vm3737, %v3725, %v3740
    %v3742 = vsel %vm3736, %v3739, %v3741
    %v3743 = vsel %vm3735, %v3722, %v3725
    %v3744 = vsel %vm3738, %v3731, 920167782
    %v3745 = vsel %vm3737, %v3728, %v3744
    %v3746 = vsel %vm3736, %v3743, %v3745
    %v3747 = vsel %vm3735, %v3725, %v3728
    %v3748 = vsel %vm3738, %v3734, 1326507024
    %v3749 = vsel %vm3737, %v3731, %v3748
    %v3750 = vsel %vm3736, %v3747, %v3749
    %v3751 = vshll.u32 %v3711, 8
    %v3752 = vmul.u32.u64.compose %v3751, %v3750
    %v3753 = vextract.low.u32 %v3752
    %v3754 = vextract.high.u32 %v3752
    %v3755 = vmul.u32.u64.compose %v3751, %v3746
    %v3756 = vextract.low.u32 %v3755
    %v3757 = vextract.high.u32 %v3755
    %v3758 = vmul.u32 %v3751, %v3742
    %v3759 = vadd.s32 %v3754, %v3756
    %vm3760 = vc.u32 %v3754, %v3756
    %v3761 = vadd.s32 %v3757, 1
    %v3762 = vsel %vm3760, %v3761, %v3757
    %v3763 = vadd.s32 %v3758, %v3762
    %v3764 = vadd.s32 %v3763, 536870912
    %v3765 = vshrl.u32 %v3764, 30
    %v3766 = vshll.u32 %v3765, 30
    %v3767 = vsub.s32 %v3763, %v3766
    %vm3768 = vcmp.lt.s32.totalorder %v3767, 0
    %v3769 = vsub.s32 0, %v3767
    %v3770 = vsel %vm3768, %v3769, %v3767
    %v3771 = vclz %v3770
    %v3772 = vsub.s32 %v3771, 2
    %vm3773 = vcmp.gt.s32.totalorder 0, %v3772
    %v3774 = vsel %vm3773, 0, %v3772
    %v3775 = vsub.s32 32, %v3774
    %v3776 = vshll.u32 %v3767, %v3774
    %v3777 = vshrl.u32 %v3759, %v3775
    %v3778 = vor.u32 %v3776, %v3777
    %v3779 = vsub.s32 4294967266, %v3774
    %v3780 = vadd.s32 %v3779, 127
    %v3781 = vshll.u32 %v3780, 23
    %v3782 = vor.u32 4788187, %v3781
    %v3783 = vand.u32 2147483647, %v3782
    %v3785 = vcvt.s32.f32 %v3778
    %v3786 = vmul.f32 %v3785, %v3783
    %v3787 = vxor.u32 %v3786, 2147483648
    %v3788 = vsel %vm3705, %v3787, %v3786
    %v3789 = vsub.s32 4, %v3765
    %v3790 = vsel %vm3705, %v3789, %v3765
    %v3791 = vsel %vm3704, %v2643, %v3788
    %v3792 = vsel %vm3704, 0, %v3790
    %v3793 = vcosq.f32.pop %v3791
    %v3794 = vsinq.f32.pop %v3791
    %vm3795 = vweird.f32 %v2643
    %v3796 = vadd.s32 %v3792, 3
    %v3797 = vand.u32 %v3796, 3
    %vm3798 = vcmp.lt.s32.totalorder %v3797, 2
    %vm3799 = vcmp.eq.s32.totalorder %v3797, 0
    %v3800 = vxor.u32 %v3794, 2147483648
    %v3801 = vsel %vm3799, %v3793, %v3800
    %vm3802 = vcmp.eq.s32.totalorder %v3797, 2
    %v3803 = vxor.u32 %v3793, 2147483648
    %v3804 = vsel %vm3802, %v3803, %v3794
    %v3805 = vsel %vm3798, %v3801, %v3804
    %v3806 = vsel %vm3795, nan, %v3805
    %v3807 = vand.u32 2147483647, %v2644
    %vm3808 = vcmp.le.f32.partialorder %v3807, 0.7853982
    %vm3809 = vcmp.lt.s32.totalorder %v2644, 0
    %v3810 = vand.u32 %v2644, 2139095040
    %v3811 = vshrl.u32 %v3810, 23
    %v3812 = vsub.s32 %v3811, 127
    %v3813 = vand.u32 2147483647, %v2644
    %v3814 = vand.u32 %v3813, 8388607
    %v3815 = vor.u32 %v3814, 8388608
    %v3816 = vsub.s32 0, %v3815
    %v3817 = vadd.s32 %v3812, 1
    %vm3818 = vcmp.gt.s32.totalorder %v3817, 0
    %v3819 = vsel %vm3818, %v3817, 0
    %v3820 = vshrl.u32 %v3819, 5
    %v3821 = vand.u32 %v3819, 31
    %v3822 = vsub.s32 32, %v3821
    %v3823 = vshrl.u32 683565275, %v3822
    %v3824 = vshll.u32 683565275, %v3821
    %v3825 = vshrl.u32 2475754826, %v3822
    %v3826 = vor.u32 %v3824, %v3825
    %v3827 = vshll.u32 2475754826, %v3821
    %v3828 = vshrl.u32 2131351028, %v3822
    %v3829 = vor.u32 %v3827, %v3828
    %v3830 = vshll.u32 2131351028, %v3821
    %v3831 = vshrl.u32 2102212464, %v3822
    %v3832 = vor.u32 %v3830, %v3831
    %v3833 = vshll.u32 2102212464, %v3821
    %v3834 = vshrl.u32 920167782, %v3822
    %v3835 = vor.u32 %v3833, %v3834
    %v3836 = vshll.u32 920167782, %v3821
    %v3837 = vshrl.u32 1326507024, %v3822
    %v3838 = vor.u32 %v3836, %v3837
    %vm3839 = vcmp.lt.s32.totalorder %v3820, 1
    %vm3840 = vcmp.lt.s32.totalorder %v3820, 2
    %vm3841 = vcmp.lt.s32.totalorder %v3820, 3
    %vm3842 = vcmp.lt.s32.totalorder %v3820, 4
    %v3843 = vsel %vm3839, %v3823, %v3826
    %v3844 = vsel %vm3842, %v3832, 2102212464
    %v3845 = vsel %vm3841, %v3829, %v3844
    %v3846 = vsel %vm3840, %v3843, %v3845
    %v3847 = vsel %vm3839, %v3826, %v3829
    %v3848 = vsel %vm3842, %v3835, 920167782
    %v3849 = vsel %vm3841, %v3832, %v3848
    %v3850 = vsel %vm3840, %v3847, %v3849
    %v3851 = vsel %vm3839, %v3829, %v3832
    %v3852 = vsel %vm3842, %v3838, 1326507024
    %v3853 = vsel %vm3841, %v3835, %v3852
    %v3854 = vsel %vm3840, %v3851, %v3853
    %v3855 = vshll.u32 %v3815, 8
    %v3856 = vmul.u32.u64.compose %v3855, %v3854
    %v3857 = vextract.low.u32 %v3856
    %v3858 = vextract.high.u32 %v3856
    %v3859 = vmul.u32.u64.compose %v3855, %v3850
    %v3860 = vextract.low.u32 %v3859
    %v3861 = vextract.high.u32 %v3859
    %v3862 = vmul.u32 %v3855, %v3846
    %v3863 = vadd.s32 %v3858, %v3860
    %vm3864 = vc.u32 %v3858, %v3860
    %v3865 = vadd.s32 %v3861, 1
    %v3866 = vsel %vm3864, %v3865, %v3861
    %v3867 = vadd.s32 %v3862, %v3866
    %v3868 = vadd.s32 %v3867, 536870912
    %v3869 = vshrl.u32 %v3868, 30
    %v3870 = vshll.u32 %v3869, 30
    %v3871 = vsub.s32 %v3867, %v3870
    %vm3872 = vcmp.lt.s32.totalorder %v3871, 0
    %v3873 = vsub.s32 0, %v3871
    %v3874 = vsel %vm3872, %v3873, %v3871
    %v3875 = vclz %v3874
    %v3876 = vsub.s32 %v3875, 2
    %vm3877 = vcmp.gt.s32.totalorder 0, %v3876
    %v3878 = vsel %vm3877, 0, %v3876
    %v3879 = vsub.s32 32, %v3878
    %v3880 = vshll.u32 %v3871, %v3878
    %v3881 = vshrl.u32 %v3863, %v3879
    %v3882 = vor.u32 %v3880, %v3881
    %v3883 = vsub.s32 4294967266, %v3878
    %v3884 = vadd.s32 %v3883, 127
    %v3885 = vshll.u32 %v3884, 23
    %v3886 = vor.u32 4788187, %v3885
    %v3887 = vand.u32 2147483647, %v3886
    %v3889 = vcvt.s32.f32 %v3882
    %v3890 = vmul.f32 %v3889, %v3887
    %v3891 = vxor.u32 %v3890, 2147483648
    %v3892 = vsel %vm3809, %v3891, %v3890
    %v3893 = vsub.s32 4, %v3869
    %v3894 = vsel %vm3809, %v3893, %v3869
    %v3895 = vsel %vm3808, %v2644, %v3892
    %v3896 = vsel %vm3808, 0, %v3894
    %v3897 = vcosq.f32.pop %v3895
    %v3898 = vsinq.f32.pop %v3895
    %vm3899 = vweird.f32 %v2644
    %v3900 = vadd.s32 %v3896, 3
    %v3901 = vand.u32 %v3900, 3
    %vm3902 = vcmp.lt.s32.totalorder %v3901, 2
    %vm3903 = vcmp.eq.s32.totalorder %v3901, 0
    %v3904 = vxor.u32 %v3898, 2147483648
    %v3905 = vsel %vm3903, %v3897, %v3904
    %vm3906 = vcmp.eq.s32.totalorder %v3901, 2
    %v3907 = vxor.u32 %v3897, 2147483648
    %v3908 = vsel %vm3906, %v3907, %v3898
    %v3909 = vsel %vm3902, %v3905, %v3908
    %v3910 = vsel %vm3899, nan, %v3909
    %v3911 = vand.u32 2147483647, %v2645
    %vm3912 = vcmp.le.f32.partialorder %v3911, 0.7853982
    %vm3913 = vcmp.lt.s32.totalorder %v2645, 0
    %v3914 = vand.u32 %v2645, 2139095040
    %v3915 = vshrl.u32 %v3914, 23
    %v3916 = vsub.s32 %v3915, 127
    %v3917 = vand.u32 2147483647, %v2645
    %v3918 = vand.u32 %v3917, 8388607
    %v3919 = vor.u32 %v3918, 8388608
    %v3920 = vsub.s32 0, %v3919
    %v3921 = vadd.s32 %v3916, 1
    %vm3922 = vcmp.gt.s32.totalorder %v3921, 0
    %v3923 = vsel %vm3922, %v3921, 0
    %v3924 = vshrl.u32 %v3923, 5
    %v3925 = vand.u32 %v3923, 31
    %v3926 = vsub.s32 32, %v3925
    %v3927 = vshrl.u32 683565275, %v3926
    %v3928 = vshll.u32 683565275, %v3925
    %v3929 = vshrl.u32 2475754826, %v3926
    %v3930 = vor.u32 %v3928, %v3929
    %v3931 = vshll.u32 2475754826, %v3925
    %v3932 = vshrl.u32 2131351028, %v3926
    %v3933 = vor.u32 %v3931, %v3932
    %v3934 = vshll.u32 2131351028, %v3925
    %v3935 = vshrl.u32 2102212464, %v3926
    %v3936 = vor.u32 %v3934, %v3935
    %v3937 = vshll.u32 2102212464, %v3925
    %v3938 = vshrl.u32 920167782, %v3926
    %v3939 = vor.u32 %v3937, %v3938
    %v3940 = vshll.u32 920167782, %v3925
    %v3941 = vshrl.u32 1326507024, %v3926
    %v3942 = vor.u32 %v3940, %v3941
    %vm3943 = vcmp.lt.s32.totalorder %v3924, 1
    %vm3944 = vcmp.lt.s32.totalorder %v3924, 2
    %vm3945 = vcmp.lt.s32.totalorder %v3924, 3
    %vm3946 = vcmp.lt.s32.totalorder %v3924, 4
    %v3947 = vsel %vm3943, %v3927, %v3930
    %v3948 = vsel %vm3946, %v3936, 2102212464
    %v3949 = vsel %vm3945, %v3933, %v3948
    %v3950 = vsel %vm3944, %v3947, %v3949
    %v3951 = vsel %vm3943, %v3930, %v3933
    %v3952 = vsel %vm3946, %v3939, 920167782
    %v3953 = vsel %vm3945, %v3936, %v3952
    %v3954 = vsel %vm3944, %v3951, %v3953
    %v3955 = vsel %vm3943, %v3933, %v3936
    %v3956 = vsel %vm3946, %v3942, 1326507024
    %v3957 = vsel %vm3945, %v3939, %v3956
    %v3958 = vsel %vm3944, %v3955, %v3957
    %v3959 = vshll.u32 %v3919, 8
    %v3960 = vmul.u32.u64.compose %v3959, %v3958
    %v3961 = vextract.low.u32 %v3960
    %v3962 = vextract.high.u32 %v3960
    %v3963 = vmul.u32.u64.compose %v3959, %v3954
    %v3964 = vextract.low.u32 %v3963
    %v3965 = vextract.high.u32 %v3963
    %v3966 = vmul.u32 %v3959, %v3950
    %v3967 = vadd.s32 %v3962, %v3964
    %vm3968 = vc.u32 %v3962, %v3964
    %v3969 = vadd.s32 %v3965, 1
    %v3970 = vsel %vm3968, %v3969, %v3965
    %v3971 = vadd.s32 %v3966, %v3970
    %v3972 = vadd.s32 %v3971, 536870912
    %v3973 = vshrl.u32 %v3972, 30
    %v3974 = vshll.u32 %v3973, 30
    %v3975 = vsub.s32 %v3971, %v3974
    %vm3976 = vcmp.lt.s32.totalorder %v3975, 0
    %v3977 = vsub.s32 0, %v3975
    %v3978 = vsel %vm3976, %v3977, %v3975
    %v3979 = vclz %v3978
    %v3980 = vsub.s32 %v3979, 2
    %vm3981 = vcmp.gt.s32.totalorder 0, %v3980
    %v3982 = vsel %vm3981, 0, %v3980
    %v3983 = vsub.s32 32, %v3982
    %v3984 = vshll.u32 %v3975, %v3982
    %v3985 = vshrl.u32 %v3967, %v3983
    %v3986 = vor.u32 %v3984, %v3985
    %v3987 = vsub.s32 4294967266, %v3982
    %v3988 = vadd.s32 %v3987, 127
    %v3989 = vshll.u32 %v3988, 23
    %v3990 = vor.u32 4788187, %v3989
    %v3991 = vand.u32 2147483647, %v3990
    %v3993 = vcvt.s32.f32 %v3986
    %v3994 = vmul.f32 %v3993, %v3991
    %v3995 = vxor.u32 %v3994, 2147483648
    %v3996 = vsel %vm3913, %v3995, %v3994
    %v3997 = vsub.s32 4, %v3973
    %v3998 = vsel %vm3913, %v3997, %v3973
    %v3999 = vsel %vm3912, %v2645, %v3996
    %v4000 = vsel %vm3912, 0, %v3998
    %v4001 = vcosq.f32.pop %v3999
    %v4002 = vsinq.f32.pop %v3999
    %vm4003 = vweird.f32 %v2645
    %v4004 = vadd.s32 %v4000, 3
    %v4005 = vand.u32 %v4004, 3
    %vm4006 = vcmp.lt.s32.totalorder %v4005, 2
    %vm4007 = vcmp.eq.s32.totalorder %v4005, 0
    %v4008 = vxor.u32 %v4002, 2147483648
    %v4009 = vsel %vm4007, %v4001, %v4008
    %vm4010 = vcmp.eq.s32.totalorder %v4005, 2
    %v4011 = vxor.u32 %v4001, 2147483648
    %v4012 = vsel %vm4010, %v4011, %v4002
    %v4013 = vsel %vm4006, %v4009, %v4012
    %v4014 = vsel %vm4003, nan, %v4013
    %v4015 = vand.u32 2147483647, %v2646
    %vm4016 = vcmp.le.f32.partialorder %v4015, 0.7853982
    %vm4017 = vcmp.lt.s32.totalorder %v2646, 0
    %v4018 = vand.u32 %v2646, 2139095040
    %v4019 = vshrl.u32 %v4018, 23
    %v4020 = vsub.s32 %v4019, 127
    %v4021 = vand.u32 2147483647, %v2646
    %v4022 = vand.u32 %v4021, 8388607
    %v4023 = vor.u32 %v4022, 8388608
    %v4024 = vsub.s32 0, %v4023
    %v4025 = vadd.s32 %v4020, 1
    %vm4026 = vcmp.gt.s32.totalorder %v4025, 0
    %v4027 = vsel %vm4026, %v4025, 0
    %v4028 = vshrl.u32 %v4027, 5
    %v4029 = vand.u32 %v4027, 31
    %v4030 = vsub.s32 32, %v4029
    %v4031 = vshrl.u32 683565275, %v4030
    %v4032 = vshll.u32 683565275, %v4029
    %v4033 = vshrl.u32 2475754826, %v4030
    %v4034 = vor.u32 %v4032, %v4033
    %v4035 = vshll.u32 2475754826, %v4029
    %v4036 = vshrl.u32 2131351028, %v4030
    %v4037 = vor.u32 %v4035, %v4036
    %v4038 = vshll.u32 2131351028, %v4029
    %v4039 = vshrl.u32 2102212464, %v4030
    %v4040 = vor.u32 %v4038, %v4039
    %v4041 = vshll.u32 2102212464, %v4029
    %v4042 = vshrl.u32 920167782, %v4030
    %v4043 = vor.u32 %v4041, %v4042
    %v4044 = vshll.u32 920167782, %v4029
    %v4045 = vshrl.u32 1326507024, %v4030
    %v4046 = vor.u32 %v4044, %v4045
    %vm4047 = vcmp.lt.s32.totalorder %v4028, 1
    %vm4048 = vcmp.lt.s32.totalorder %v4028, 2
    %vm4049 = vcmp.lt.s32.totalorder %v4028, 3
    %vm4050 = vcmp.lt.s32.totalorder %v4028, 4
    %v4051 = vsel %vm4047, %v4031, %v4034
    %v4052 = vsel %vm4050, %v4040, 2102212464
    %v4053 = vsel %vm4049, %v4037, %v4052
    %v4054 = vsel %vm4048, %v4051, %v4053
    %v4055 = vsel %vm4047, %v4034, %v4037
    %v4056 = vsel %vm4050, %v4043, 920167782
    %v4057 = vsel %vm4049, %v4040, %v4056
    %v4058 = vsel %vm4048, %v4055, %v4057
    %v4059 = vsel %vm4047, %v4037, %v4040
    %v4060 = vsel %vm4050, %v4046, 1326507024
    %v4061 = vsel %vm4049, %v4043, %v4060
    %v4062 = vsel %vm4048, %v4059, %v4061
    %v4063 = vshll.u32 %v4023, 8
    %v4064 = vmul.u32.u64.compose %v4063, %v4062
    %v4065 = vextract.low.u32 %v4064
    %v4066 = vextract.high.u32 %v4064
    %v4067 = vmul.u32.u64.compose %v4063, %v4058
    %v4068 = vextract.low.u32 %v4067
    %v4069 = vextract.high.u32 %v4067
    %v4070 = vmul.u32 %v4063, %v4054
    %v4071 = vadd.s32 %v4066, %v4068
    %vm4072 = vc.u32 %v4066, %v4068
    %v4073 = vadd.s32 %v4069, 1
    %v4074 = vsel %vm4072, %v4073, %v4069
    %v4075 = vadd.s32 %v4070, %v4074
    %v4076 = vadd.s32 %v4075, 536870912
    %v4077 = vshrl.u32 %v4076, 30
    %v4078 = vshll.u32 %v4077, 30
    %v4079 = vsub.s32 %v4075, %v4078
    %vm4080 = vcmp.lt.s32.totalorder %v4079, 0
    %v4081 = vsub.s32 0, %v4079
    %v4082 = vsel %vm4080, %v4081, %v4079
    %v4083 = vclz %v4082
    %v4084 = vsub.s32 %v4083, 2
    %vm4085 = vcmp.gt.s32.totalorder 0, %v4084
    %v4086 = vsel %vm4085, 0, %v4084
    %v4087 = vsub.s32 32, %v4086
    %v4088 = vshll.u32 %v4079, %v4086
    %v4089 = vshrl.u32 %v4071, %v4087
    %v4090 = vor.u32 %v4088, %v4089
    %v4091 = vsub.s32 4294967266, %v4086
    %v4092 = vadd.s32 %v4091, 127
    %v4093 = vshll.u32 %v4092, 23
    %v4094 = vor.u32 4788187, %v4093
    %v4095 = vand.u32 2147483647, %v4094
    %v4097 = vcvt.s32.f32 %v4090
    %v4098 = vmul.f32 %v4097, %v4095
    %v4099 = vxor.u32 %v4098, 2147483648
    %v4100 = vsel %vm4017, %v4099, %v4098
    %v4101 = vsub.s32 4, %v4077
    %v4102 = vsel %vm4017, %v4101, %v4077
    %v4103 = vsel %vm4016, %v2646, %v4100
    %v4104 = vsel %vm4016, 0, %v4102
    %v4105 = vcosq.f32.pop %v4103
    %v4106 = vsinq.f32.pop %v4103
    %vm4107 = vweird.f32 %v2646
    %v4108 = vadd.s32 %v4104, 3
    %v4109 = vand.u32 %v4108, 3
    %vm4110 = vcmp.lt.s32.totalorder %v4109, 2
    %vm4111 = vcmp.eq.s32.totalorder %v4109, 0
    %v4112 = vxor.u32 %v4106, 2147483648
    %v4113 = vsel %vm4111, %v4105, %v4112
    %vm4114 = vcmp.eq.s32.totalorder %v4109, 2
    %v4115 = vxor.u32 %v4105, 2147483648
    %v4116 = vsel %vm4114, %v4115, %v4106
    %v4117 = vsel %vm4110, %v4113, %v4116
    %v4118 = vsel %vm4107, nan, %v4117
    %v4119 = vand.u32 2147483647, %v2647
    %vm4120 = vcmp.le.f32.partialorder %v4119, 0.7853982
    %vm4121 = vcmp.lt.s32.totalorder %v2647, 0
    %v4122 = vand.u32 %v2647, 2139095040
    %v4123 = vshrl.u32 %v4122, 23
    %v4124 = vsub.s32 %v4123, 127
    %v4125 = vand.u32 2147483647, %v2647
    %v4126 = vand.u32 %v4125, 8388607
    %v4127 = vor.u32 %v4126, 8388608
    %v4128 = vsub.s32 0, %v4127
    %v4129 = vadd.s32 %v4124, 1
    %vm4130 = vcmp.gt.s32.totalorder %v4129, 0
    %v4131 = vsel %vm4130, %v4129, 0
    %v4132 = vshrl.u32 %v4131, 5
    %v4133 = vand.u32 %v4131, 31
    %v4134 = vsub.s32 32, %v4133
    %v4135 = vshrl.u32 683565275, %v4134
    %v4136 = vshll.u32 683565275, %v4133
    %v4137 = vshrl.u32 2475754826, %v4134
    %v4138 = vor.u32 %v4136, %v4137
    %v4139 = vshll.u32 2475754826, %v4133
    %v4140 = vshrl.u32 2131351028, %v4134
    %v4141 = vor.u32 %v4139, %v4140
    %v4142 = vshll.u32 2131351028, %v4133
    %v4143 = vshrl.u32 2102212464, %v4134
    %v4144 = vor.u32 %v4142, %v4143
    %v4145 = vshll.u32 2102212464, %v4133
    %v4146 = vshrl.u32 920167782, %v4134
    %v4147 = vor.u32 %v4145, %v4146
    %v4148 = vshll.u32 920167782, %v4133
    %v4149 = vshrl.u32 1326507024, %v4134
    %v4150 = vor.u32 %v4148, %v4149
    %vm4151 = vcmp.lt.s32.totalorder %v4132, 1
    %vm4152 = vcmp.lt.s32.totalorder %v4132, 2
    %vm4153 = vcmp.lt.s32.totalorder %v4132, 3
    %vm4154 = vcmp.lt.s32.totalorder %v4132, 4
    %v4155 = vsel %vm4151, %v4135, %v4138
    %v4156 = vsel %vm4154, %v4144, 2102212464
    %v4157 = vsel %vm4153, %v4141, %v4156
    %v4158 = vsel %vm4152, %v4155, %v4157
    %v4159 = vsel %vm4151, %v4138, %v4141
    %v4160 = vsel %vm4154, %v4147, 920167782
    %v4161 = vsel %vm4153, %v4144, %v4160
    %v4162 = vsel %vm4152, %v4159, %v4161
    %v4163 = vsel %vm4151, %v4141, %v4144
    %v4164 = vsel %vm4154, %v4150, 1326507024
    %v4165 = vsel %vm4153, %v4147, %v4164
    %v4166 = vsel %vm4152, %v4163, %v4165
    %v4167 = vshll.u32 %v4127, 8
    %v4168 = vmul.u32.u64.compose %v4167, %v4166
    %v4169 = vextract.low.u32 %v4168
    %v4170 = vextract.high.u32 %v4168
    %v4171 = vmul.u32.u64.compose %v4167, %v4162
    %v4172 = vextract.low.u32 %v4171
    %v4173 = vextract.high.u32 %v4171
    %v4174 = vmul.u32 %v4167, %v4158
    %v4175 = vadd.s32 %v4170, %v4172
    %vm4176 = vc.u32 %v4170, %v4172
    %v4177 = vadd.s32 %v4173, 1
    %v4178 = vsel %vm4176, %v4177, %v4173
    %v4179 = vadd.s32 %v4174, %v4178
    %v4180 = vadd.s32 %v4179, 536870912
    %v4181 = vshrl.u32 %v4180, 30
    %v4182 = vshll.u32 %v4181, 30
    %v4183 = vsub.s32 %v4179, %v4182
    %vm4184 = vcmp.lt.s32.totalorder %v4183, 0
    %v4185 = vsub.s32 0, %v4183
    %v4186 = vsel %vm4184, %v4185, %v4183
    %v4187 = vclz %v4186
    %v4188 = vsub.s32 %v4187, 2
    %vm4189 = vcmp.gt.s32.totalorder 0, %v4188
    %v4190 = vsel %vm4189, 0, %v4188
    %v4191 = vsub.s32 32, %v4190
    %v4192 = vshll.u32 %v4183, %v4190
    %v4193 = vshrl.u32 %v4175, %v4191
    %v4194 = vor.u32 %v4192, %v4193
    %v4195 = vsub.s32 4294967266, %v4190
    %v4196 = vadd.s32 %v4195, 127
    %v4197 = vshll.u32 %v4196, 23
    %v4198 = vor.u32 4788187, %v4197
    %v4199 = vand.u32 2147483647, %v4198
    %v4201 = vcvt.s32.f32 %v4194
    %v4202 = vmul.f32 %v4201, %v4199
    %v4203 = vxor.u32 %v4202, 2147483648
    %v4204 = vsel %vm4121, %v4203, %v4202
    %v4205 = vsub.s32 4, %v4181
    %v4206 = vsel %vm4121, %v4205, %v4181
    %v4207 = vsel %vm4120, %v2647, %v4204
    %v4208 = vsel %vm4120, 0, %v4206
    %v4209 = vcosq.f32.pop %v4207
    %v4210 = vsinq.f32.pop %v4207
    %vm4211 = vweird.f32 %v2647
    %v4212 = vadd.s32 %v4208, 3
    %v4213 = vand.u32 %v4212, 3
    %vm4214 = vcmp.lt.s32.totalorder %v4213, 2
    %vm4215 = vcmp.eq.s32.totalorder %v4213, 0
    %v4216 = vxor.u32 %v4210, 2147483648
    %v4217 = vsel %vm4215, %v4209, %v4216
    %vm4218 = vcmp.eq.s32.totalorder %v4213, 2
    %v4219 = vxor.u32 %v4209, 2147483648
    %v4220 = vsel %vm4218, %v4219, %v4210
    %v4221 = vsel %vm4214, %v4217, %v4220
    %v4222 = vsel %vm4211, nan, %v4221
    %v4223 = vand.u32 2147483647, %v2648
    %vm4224 = vcmp.le.f32.partialorder %v4223, 0.7853982
    %vm4225 = vcmp.lt.s32.totalorder %v2648, 0
    %v4226 = vand.u32 %v2648, 2139095040
    %v4227 = vshrl.u32 %v4226, 23
    %v4228 = vsub.s32 %v4227, 127
    %v4229 = vand.u32 2147483647, %v2648
    %v4230 = vand.u32 %v4229, 8388607
    %v4231 = vor.u32 %v4230, 8388608
    %v4232 = vsub.s32 0, %v4231
    %v4233 = vadd.s32 %v4228, 1
    %vm4234 = vcmp.gt.s32.totalorder %v4233, 0
    %v4235 = vsel %vm4234, %v4233, 0
    %v4236 = vshrl.u32 %v4235, 5
    %v4237 = vand.u32 %v4235, 31
    %v4238 = vsub.s32 32, %v4237
    %v4239 = vshrl.u32 683565275, %v4238
    %v4240 = vshll.u32 683565275, %v4237
    %v4241 = vshrl.u32 2475754826, %v4238
    %v4242 = vor.u32 %v4240, %v4241
    %v4243 = vshll.u32 2475754826, %v4237
    %v4244 = vshrl.u32 2131351028, %v4238
    %v4245 = vor.u32 %v4243, %v4244
    %v4246 = vshll.u32 2131351028, %v4237
    %v4247 = vshrl.u32 2102212464, %v4238
    %v4248 = vor.u32 %v4246, %v4247
    %v4249 = vshll.u32 2102212464, %v4237
    %v4250 = vshrl.u32 920167782, %v4238
    %v4251 = vor.u32 %v4249, %v4250
    %v4252 = vshll.u32 920167782, %v4237
    %v4253 = vshrl.u32 1326507024, %v4238
    %v4254 = vor.u32 %v4252, %v4253
    %vm4255 = vcmp.lt.s32.totalorder %v4236, 1
    %vm4256 = vcmp.lt.s32.totalorder %v4236, 2
    %vm4257 = vcmp.lt.s32.totalorder %v4236, 3
    %vm4258 = vcmp.lt.s32.totalorder %v4236, 4
    %v4259 = vsel %vm4255, %v4239, %v4242
    %v4260 = vsel %vm4258, %v4248, 2102212464
    %v4261 = vsel %vm4257, %v4245, %v4260
    %v4262 = vsel %vm4256, %v4259, %v4261
    %v4263 = vsel %vm4255, %v4242, %v4245
    %v4264 = vsel %vm4258, %v4251, 920167782
    %v4265 = vsel %vm4257, %v4248, %v4264
    %v4266 = vsel %vm4256, %v4263, %v4265
    %v4267 = vsel %vm4255, %v4245, %v4248
    %v4268 = vsel %vm4258, %v4254, 1326507024
    %v4269 = vsel %vm4257, %v4251, %v4268
    %v4270 = vsel %vm4256, %v4267, %v4269
    %v4271 = vshll.u32 %v4231, 8
    %v4272 = vmul.u32.u64.compose %v4271, %v4270
    %v4273 = vextract.low.u32 %v4272
    %v4274 = vextract.high.u32 %v4272
    %v4275 = vmul.u32.u64.compose %v4271, %v4266
    %v4276 = vextract.low.u32 %v4275
    %v4277 = vextract.high.u32 %v4275
    %v4278 = vmul.u32 %v4271, %v4262
    %v4279 = vadd.s32 %v4274, %v4276
    %vm4280 = vc.u32 %v4274, %v4276
    %v4281 = vadd.s32 %v4277, 1
    %v4282 = vsel %vm4280, %v4281, %v4277
    %v4283 = vadd.s32 %v4278, %v4282
    %v4284 = vadd.s32 %v4283, 536870912
    %v4285 = vshrl.u32 %v4284, 30
    %v4286 = vshll.u32 %v4285, 30
    %v4287 = vsub.s32 %v4283, %v4286
    %vm4288 = vcmp.lt.s32.totalorder %v4287, 0
    %v4289 = vsub.s32 0, %v4287
    %v4290 = vsel %vm4288, %v4289, %v4287
    %v4291 = vclz %v4290
    %v4292 = vsub.s32 %v4291, 2
    %vm4293 = vcmp.gt.s32.totalorder 0, %v4292
    %v4294 = vsel %vm4293, 0, %v4292
    %v4295 = vsub.s32 32, %v4294
    %v4296 = vshll.u32 %v4287, %v4294
    %v4297 = vshrl.u32 %v4279, %v4295
    %v4298 = vor.u32 %v4296, %v4297
    %v4299 = vsub.s32 4294967266, %v4294
    %v4300 = vadd.s32 %v4299, 127
    %v4301 = vshll.u32 %v4300, 23
    %v4302 = vor.u32 4788187, %v4301
    %v4303 = vand.u32 2147483647, %v4302
    %v4305 = vcvt.s32.f32 %v4298
    %v4306 = vmul.f32 %v4305, %v4303
    %v4307 = vxor.u32 %v4306, 2147483648
    %v4308 = vsel %vm4225, %v4307, %v4306
    %v4309 = vsub.s32 4, %v4285
    %v4310 = vsel %vm4225, %v4309, %v4285
    %v4311 = vsel %vm4224, %v2648, %v4308
    %v4312 = vsel %vm4224, 0, %v4310
    %v4313 = vcosq.f32.pop %v4311
    %v4314 = vsinq.f32.pop %v4311
    %vm4315 = vweird.f32 %v2648
    %v4316 = vadd.s32 %v4312, 3
    %v4317 = vand.u32 %v4316, 3
    %vm4318 = vcmp.lt.s32.totalorder %v4317, 2
    %vm4319 = vcmp.eq.s32.totalorder %v4317, 0
    %v4320 = vxor.u32 %v4314, 2147483648
    %v4321 = vsel %vm4319, %v4313, %v4320
    %vm4322 = vcmp.eq.s32.totalorder %v4317, 2
    %v4323 = vxor.u32 %v4313, 2147483648
    %v4324 = vsel %vm4322, %v4323, %v4314
    %v4325 = vsel %vm4318, %v4321, %v4324
    %v4326 = vsel %vm4315, nan, %v4325
    %v4327 = vand.u32 2147483647, %v2649
    %vm4328 = vcmp.le.f32.partialorder %v4327, 0.7853982
    %vm4329 = vcmp.lt.s32.totalorder %v2649, 0
    %v4330 = vand.u32 %v2649, 2139095040
    %v4331 = vshrl.u32 %v4330, 23
    %v4332 = vsub.s32 %v4331, 127
    %v4333 = vand.u32 2147483647, %v2649
    %v4334 = vand.u32 %v4333, 8388607
    %v4335 = vor.u32 %v4334, 8388608
    %v4336 = vsub.s32 0, %v4335
    %v4337 = vadd.s32 %v4332, 1
    %vm4338 = vcmp.gt.s32.totalorder %v4337, 0
    %v4339 = vsel %vm4338, %v4337, 0
    %v4340 = vshrl.u32 %v4339, 5
    %v4341 = vand.u32 %v4339, 31
    %v4342 = vsub.s32 32, %v4341
    %v4343 = vshrl.u32 683565275, %v4342
    %v4344 = vshll.u32 683565275, %v4341
    %v4345 = vshrl.u32 2475754826, %v4342
    %v4346 = vor.u32 %v4344, %v4345
    %v4347 = vshll.u32 2475754826, %v4341
    %v4348 = vshrl.u32 2131351028, %v4342
    %v4349 = vor.u32 %v4347, %v4348
    %v4350 = vshll.u32 2131351028, %v4341
    %v4351 = vshrl.u32 2102212464, %v4342
    %v4352 = vor.u32 %v4350, %v4351
    %v4353 = vshll.u32 2102212464, %v4341
    %v4354 = vshrl.u32 920167782, %v4342
    %v4355 = vor.u32 %v4353, %v4354
    %v4356 = vshll.u32 920167782, %v4341
    %v4357 = vshrl.u32 1326507024, %v4342
    %v4358 = vor.u32 %v4356, %v4357
    %vm4359 = vcmp.lt.s32.totalorder %v4340, 1
    %vm4360 = vcmp.lt.s32.totalorder %v4340, 2
    %vm4361 = vcmp.lt.s32.totalorder %v4340, 3
    %vm4362 = vcmp.lt.s32.totalorder %v4340, 4
    %v4363 = vsel %vm4359, %v4343, %v4346
    %v4364 = vsel %vm4362, %v4352, 2102212464
    %v4365 = vsel %vm4361, %v4349, %v4364
    %v4366 = vsel %vm4360, %v4363, %v4365
    %v4367 = vsel %vm4359, %v4346, %v4349
    %v4368 = vsel %vm4362, %v4355, 920167782
    %v4369 = vsel %vm4361, %v4352, %v4368
    %v4370 = vsel %vm4360, %v4367, %v4369
    %v4371 = vsel %vm4359, %v4349, %v4352
    %v4372 = vsel %vm4362, %v4358, 1326507024
    %v4373 = vsel %vm4361, %v4355, %v4372
    %v4374 = vsel %vm4360, %v4371, %v4373
    %v4375 = vshll.u32 %v4335, 8
    %v4376 = vmul.u32.u64.compose %v4375, %v4374
    %v4377 = vextract.low.u32 %v4376
    %v4378 = vextract.high.u32 %v4376
    %v4379 = vmul.u32.u64.compose %v4375, %v4370
    %v4380 = vextract.low.u32 %v4379
    %v4381 = vextract.high.u32 %v4379
    %v4382 = vmul.u32 %v4375, %v4366
    %v4383 = vadd.s32 %v4378, %v4380
    %vm4384 = vc.u32 %v4378, %v4380
    %v4385 = vadd.s32 %v4381, 1
    %v4386 = vsel %vm4384, %v4385, %v4381
    %v4387 = vadd.s32 %v4382, %v4386
    %v4388 = vadd.s32 %v4387, 536870912
    %v4389 = vshrl.u32 %v4388, 30
    %v4390 = vshll.u32 %v4389, 30
    %v4391 = vsub.s32 %v4387, %v4390
    %vm4392 = vcmp.lt.s32.totalorder %v4391, 0
    %v4393 = vsub.s32 0, %v4391
    %v4394 = vsel %vm4392, %v4393, %v4391
    %v4395 = vclz %v4394
    %v4396 = vsub.s32 %v4395, 2
    %vm4397 = vcmp.gt.s32.totalorder 0, %v4396
    %v4398 = vsel %vm4397, 0, %v4396
    %v4399 = vsub.s32 32, %v4398
    %v4400 = vshll.u32 %v4391, %v4398
    %v4401 = vshrl.u32 %v4383, %v4399
    %v4402 = vor.u32 %v4400, %v4401
    %v4403 = vsub.s32 4294967266, %v4398
    %v4404 = vadd.s32 %v4403, 127
    %v4405 = vshll.u32 %v4404, 23
    %v4406 = vor.u32 4788187, %v4405
    %v4407 = vand.u32 2147483647, %v4406
    %v4409 = vcvt.s32.f32 %v4402
    %v4410 = vmul.f32 %v4409, %v4407
    %v4411 = vxor.u32 %v4410, 2147483648
    %v4412 = vsel %vm4329, %v4411, %v4410
    %v4413 = vsub.s32 4, %v4389
    %v4414 = vsel %vm4329, %v4413, %v4389
    %v4415 = vsel %vm4328, %v2649, %v4412
    %v4416 = vsel %vm4328, 0, %v4414
    %v4417 = vcosq.f32.pop %v4415
    %v4418 = vsinq.f32.pop %v4415
    %vm4419 = vweird.f32 %v2649
    %v4420 = vadd.s32 %v4416, 3
    %v4421 = vand.u32 %v4420, 3
    %vm4422 = vcmp.lt.s32.totalorder %v4421, 2
    %vm4423 = vcmp.eq.s32.totalorder %v4421, 0
    %v4424 = vxor.u32 %v4418, 2147483648
    %v4425 = vsel %vm4423, %v4417, %v4424
    %vm4426 = vcmp.eq.s32.totalorder %v4421, 2
    %v4427 = vxor.u32 %v4417, 2147483648
    %v4428 = vsel %vm4426, %v4427, %v4418
    %v4429 = vsel %vm4422, %v4425, %v4428
    %v4430 = vsel %vm4419, nan, %v4429
    %v4431 = vand.u32 2147483647, %v2650
    %vm4432 = vcmp.le.f32.partialorder %v4431, 0.7853982
    %vm4433 = vcmp.lt.s32.totalorder %v2650, 0
    %v4434 = vand.u32 %v2650, 2139095040
    %v4435 = vshrl.u32 %v4434, 23
    %v4436 = vsub.s32 %v4435, 127
    %v4437 = vand.u32 2147483647, %v2650
    %v4438 = vand.u32 %v4437, 8388607
    %v4439 = vor.u32 %v4438, 8388608
    %v4440 = vsub.s32 0, %v4439
    %v4441 = vadd.s32 %v4436, 1
    %vm4442 = vcmp.gt.s32.totalorder %v4441, 0
    %v4443 = vsel %vm4442, %v4441, 0
    %v4444 = vshrl.u32 %v4443, 5
    %v4445 = vand.u32 %v4443, 31
    %v4446 = vsub.s32 32, %v4445
    %v4447 = vshrl.u32 683565275, %v4446
    %v4448 = vshll.u32 683565275, %v4445
    %v4449 = vshrl.u32 2475754826, %v4446
    %v4450 = vor.u32 %v4448, %v4449
    %v4451 = vshll.u32 2475754826, %v4445
    %v4452 = vshrl.u32 2131351028, %v4446
    %v4453 = vor.u32 %v4451, %v4452
    %v4454 = vshll.u32 2131351028, %v4445
    %v4455 = vshrl.u32 2102212464, %v4446
    %v4456 = vor.u32 %v4454, %v4455
    %v4457 = vshll.u32 2102212464, %v4445
    %v4458 = vshrl.u32 920167782, %v4446
    %v4459 = vor.u32 %v4457, %v4458
    %v4460 = vshll.u32 920167782, %v4445
    %v4461 = vshrl.u32 1326507024, %v4446
    %v4462 = vor.u32 %v4460, %v4461
    %vm4463 = vcmp.lt.s32.totalorder %v4444, 1
    %vm4464 = vcmp.lt.s32.totalorder %v4444, 2
    %vm4465 = vcmp.lt.s32.totalorder %v4444, 3
    %vm4466 = vcmp.lt.s32.totalorder %v4444, 4
    %v4467 = vsel %vm4463, %v4447, %v4450
    %v4468 = vsel %vm4466, %v4456, 2102212464
    %v4469 = vsel %vm4465, %v4453, %v4468
    %v4470 = vsel %vm4464, %v4467, %v4469
    %v4471 = vsel %vm4463, %v4450, %v4453
    %v4472 = vsel %vm4466, %v4459, 920167782
    %v4473 = vsel %vm4465, %v4456, %v4472
    %v4474 = vsel %vm4464, %v4471, %v4473
    %v4475 = vsel %vm4463, %v4453, %v4456
    %v4476 = vsel %vm4466, %v4462, 1326507024
    %v4477 = vsel %vm4465, %v4459, %v4476
    %v4478 = vsel %vm4464, %v4475, %v4477
    %v4479 = vshll.u32 %v4439, 8
    %v4480 = vmul.u32.u64.compose %v4479, %v4478
    %v4481 = vextract.low.u32 %v4480
    %v4482 = vextract.high.u32 %v4480
    %v4483 = vmul.u32.u64.compose %v4479, %v4474
    %v4484 = vextract.low.u32 %v4483
    %v4485 = vextract.high.u32 %v4483
    %v4486 = vmul.u32 %v4479, %v4470
    %v4487 = vadd.s32 %v4482, %v4484
    %vm4488 = vc.u32 %v4482, %v4484
    %v4489 = vadd.s32 %v4485, 1
    %v4490 = vsel %vm4488, %v4489, %v4485
    %v4491 = vadd.s32 %v4486, %v4490
    %v4492 = vadd.s32 %v4491, 536870912
    %v4493 = vshrl.u32 %v4492, 30
    %v4494 = vshll.u32 %v4493, 30
    %v4495 = vsub.s32 %v4491, %v4494
    %vm4496 = vcmp.lt.s32.totalorder %v4495, 0
    %v4497 = vsub.s32 0, %v4495
    %v4498 = vsel %vm4496, %v4497, %v4495
    %v4499 = vclz %v4498
    %v4500 = vsub.s32 %v4499, 2
    %vm4501 = vcmp.gt.s32.totalorder 0, %v4500
    %v4502 = vsel %vm4501, 0, %v4500
    %v4503 = vsub.s32 32, %v4502
    %v4504 = vshll.u32 %v4495, %v4502
    %v4505 = vshrl.u32 %v4487, %v4503
    %v4506 = vor.u32 %v4504, %v4505
    %v4507 = vsub.s32 4294967266, %v4502
    %v4508 = vadd.s32 %v4507, 127
    %v4509 = vshll.u32 %v4508, 23
    %v4510 = vor.u32 4788187, %v4509
    %v4511 = vand.u32 2147483647, %v4510
    %v4513 = vcvt.s32.f32 %v4506
    %v4514 = vmul.f32 %v4513, %v4511
    %v4515 = vxor.u32 %v4514, 2147483648
    %v4516 = vsel %vm4433, %v4515, %v4514
    %v4517 = vsub.s32 4, %v4493
    %v4518 = vsel %vm4433, %v4517, %v4493
    %v4519 = vsel %vm4432, %v2650, %v4516
    %v4520 = vsel %vm4432, 0, %v4518
    %v4521 = vcosq.f32.pop %v4519
    %v4522 = vsinq.f32.pop %v4519
    %vm4523 = vweird.f32 %v2650
    %v4524 = vadd.s32 %v4520, 3
    %v4525 = vand.u32 %v4524, 3
    %vm4526 = vcmp.lt.s32.totalorder %v4525, 2
    %vm4527 = vcmp.eq.s32.totalorder %v4525, 0
    %v4528 = vxor.u32 %v4522, 2147483648
    %v4529 = vsel %vm4527, %v4521, %v4528
    %vm4530 = vcmp.eq.s32.totalorder %v4525, 2
    %v4531 = vxor.u32 %v4521, 2147483648
    %v4532 = vsel %vm4530, %v4531, %v4522
    %v4533 = vsel %vm4526, %v4529, %v4532
    %v4534 = vsel %vm4523, nan, %v4533
    %v4535 = vand.u32 2147483647, %v2651
    %vm4536 = vcmp.le.f32.partialorder %v4535, 0.7853982
    %vm4537 = vcmp.lt.s32.totalorder %v2651, 0
    %v4538 = vand.u32 %v2651, 2139095040
    %v4539 = vshrl.u32 %v4538, 23
    %v4540 = vsub.s32 %v4539, 127
    %v4541 = vand.u32 2147483647, %v2651
    %v4542 = vand.u32 %v4541, 8388607
    %v4543 = vor.u32 %v4542, 8388608
    %v4544 = vsub.s32 0, %v4543
    %v4545 = vadd.s32 %v4540, 1
    %vm4546 = vcmp.gt.s32.totalorder %v4545, 0
    %v4547 = vsel %vm4546, %v4545, 0
    %v4548 = vshrl.u32 %v4547, 5
    %v4549 = vand.u32 %v4547, 31
    %v4550 = vsub.s32 32, %v4549
    %v4551 = vshrl.u32 683565275, %v4550
    %v4552 = vshll.u32 683565275, %v4549
    %v4553 = vshrl.u32 2475754826, %v4550
    %v4554 = vor.u32 %v4552, %v4553
    %v4555 = vshll.u32 2475754826, %v4549
    %v4556 = vshrl.u32 2131351028, %v4550
    %v4557 = vor.u32 %v4555, %v4556
    %v4558 = vshll.u32 2131351028, %v4549
    %v4559 = vshrl.u32 2102212464, %v4550
    %v4560 = vor.u32 %v4558, %v4559
    %v4561 = vshll.u32 2102212464, %v4549
    %v4562 = vshrl.u32 920167782, %v4550
    %v4563 = vor.u32 %v4561, %v4562
    %v4564 = vshll.u32 920167782, %v4549
    %v4565 = vshrl.u32 1326507024, %v4550
    %v4566 = vor.u32 %v4564, %v4565
    %vm4567 = vcmp.lt.s32.totalorder %v4548, 1
    %vm4568 = vcmp.lt.s32.totalorder %v4548, 2
    %vm4569 = vcmp.lt.s32.totalorder %v4548, 3
    %vm4570 = vcmp.lt.s32.totalorder %v4548, 4
    %v4571 = vsel %vm4567, %v4551, %v4554
    %v4572 = vsel %vm4570, %v4560, 2102212464
    %v4573 = vsel %vm4569, %v4557, %v4572
    %v4574 = vsel %vm4568, %v4571, %v4573
    %v4575 = vsel %vm4567, %v4554, %v4557
    %v4576 = vsel %vm4570, %v4563, 920167782
    %v4577 = vsel %vm4569, %v4560, %v4576
    %v4578 = vsel %vm4568, %v4575, %v4577
    %v4579 = vsel %vm4567, %v4557, %v4560
    %v4580 = vsel %vm4570, %v4566, 1326507024
    %v4581 = vsel %vm4569, %v4563, %v4580
    %v4582 = vsel %vm4568, %v4579, %v4581
    %v4583 = vshll.u32 %v4543, 8
    %v4584 = vmul.u32.u64.compose %v4583, %v4582
    %v4585 = vextract.low.u32 %v4584
    %v4586 = vextract.high.u32 %v4584
    %v4587 = vmul.u32.u64.compose %v4583, %v4578
    %v4588 = vextract.low.u32 %v4587
    %v4589 = vextract.high.u32 %v4587
    %v4590 = vmul.u32 %v4583, %v4574
    %v4591 = vadd.s32 %v4586, %v4588
    %vm4592 = vc.u32 %v4586, %v4588
    %v4593 = vadd.s32 %v4589, 1
    %v4594 = vsel %vm4592, %v4593, %v4589
    %v4595 = vadd.s32 %v4590, %v4594
    %v4596 = vadd.s32 %v4595, 536870912
    %v4597 = vshrl.u32 %v4596, 30
    %v4598 = vshll.u32 %v4597, 30
    %v4599 = vsub.s32 %v4595, %v4598
    %vm4600 = vcmp.lt.s32.totalorder %v4599, 0
    %v4601 = vsub.s32 0, %v4599
    %v4602 = vsel %vm4600, %v4601, %v4599
    %v4603 = vclz %v4602
    %v4604 = vsub.s32 %v4603, 2
    %vm4605 = vcmp.gt.s32.totalorder 0, %v4604
    %v4606 = vsel %vm4605, 0, %v4604
    %v4607 = vsub.s32 32, %v4606
    %v4608 = vshll.u32 %v4599, %v4606
    %v4609 = vshrl.u32 %v4591, %v4607
    %v4610 = vor.u32 %v4608, %v4609
    %v4611 = vsub.s32 4294967266, %v4606
    %v4612 = vadd.s32 %v4611, 127
    %v4613 = vshll.u32 %v4612, 23
    %v4614 = vor.u32 4788187, %v4613
    %v4615 = vand.u32 2147483647, %v4614
    %v4617 = vcvt.s32.f32 %v4610
    %v4618 = vmul.f32 %v4617, %v4615
    %v4619 = vxor.u32 %v4618, 2147483648
    %v4620 = vsel %vm4537, %v4619, %v4618
    %v4621 = vsub.s32 4, %v4597
    %v4622 = vsel %vm4537, %v4621, %v4597
    %v4623 = vsel %vm4536, %v2651, %v4620
    %v4624 = vsel %vm4536, 0, %v4622
    %v4625 = vcosq.f32.pop %v4623
    %v4626 = vsinq.f32.pop %v4623
    %vm4627 = vweird.f32 %v2651
    %v4628 = vadd.s32 %v4624, 3
    %v4629 = vand.u32 %v4628, 3
    %vm4630 = vcmp.lt.s32.totalorder %v4629, 2
    %vm4631 = vcmp.eq.s32.totalorder %v4629, 0
    %v4632 = vxor.u32 %v4626, 2147483648
    %v4633 = vsel %vm4631, %v4625, %v4632
    %vm4634 = vcmp.eq.s32.totalorder %v4629, 2
    %v4635 = vxor.u32 %v4625, 2147483648
    %v4636 = vsel %vm4634, %v4635, %v4626
    %v4637 = vsel %vm4630, %v4633, %v4636
    %v4638 = vsel %vm4627, nan, %v4637
    %v4639 = vand.u32 2147483647, %v2652
    %vm4640 = vcmp.le.f32.partialorder %v4639, 0.7853982
    %vm4641 = vcmp.lt.s32.totalorder %v2652, 0
    %v4642 = vand.u32 %v2652, 2139095040
    %v4643 = vshrl.u32 %v4642, 23
    %v4644 = vsub.s32 %v4643, 127
    %v4645 = vand.u32 2147483647, %v2652
    %v4646 = vand.u32 %v4645, 8388607
    %v4647 = vor.u32 %v4646, 8388608
    %v4648 = vsub.s32 0, %v4647
    %v4649 = vadd.s32 %v4644, 1
    %vm4650 = vcmp.gt.s32.totalorder %v4649, 0
    %v4651 = vsel %vm4650, %v4649, 0
    %v4652 = vshrl.u32 %v4651, 5
    %v4653 = vand.u32 %v4651, 31
    %v4654 = vsub.s32 32, %v4653
    %v4655 = vshrl.u32 683565275, %v4654
    %v4656 = vshll.u32 683565275, %v4653
    %v4657 = vshrl.u32 2475754826, %v4654
    %v4658 = vor.u32 %v4656, %v4657
    %v4659 = vshll.u32 2475754826, %v4653
    %v4660 = vshrl.u32 2131351028, %v4654
    %v4661 = vor.u32 %v4659, %v4660
    %v4662 = vshll.u32 2131351028, %v4653
    %v4663 = vshrl.u32 2102212464, %v4654
    %v4664 = vor.u32 %v4662, %v4663
    %v4665 = vshll.u32 2102212464, %v4653
    %v4666 = vshrl.u32 920167782, %v4654
    %v4667 = vor.u32 %v4665, %v4666
    %v4668 = vshll.u32 920167782, %v4653
    %v4669 = vshrl.u32 1326507024, %v4654
    %v4670 = vor.u32 %v4668, %v4669
    %vm4671 = vcmp.lt.s32.totalorder %v4652, 1
    %vm4672 = vcmp.lt.s32.totalorder %v4652, 2
    %vm4673 = vcmp.lt.s32.totalorder %v4652, 3
    %vm4674 = vcmp.lt.s32.totalorder %v4652, 4
    %v4675 = vsel %vm4671, %v4655, %v4658
    %v4676 = vsel %vm4674, %v4664, 2102212464
    %v4677 = vsel %vm4673, %v4661, %v4676
    %v4678 = vsel %vm4672, %v4675, %v4677
    %v4679 = vsel %vm4671, %v4658, %v4661
    %v4680 = vsel %vm4674, %v4667, 920167782
    %v4681 = vsel %vm4673, %v4664, %v4680
    %v4682 = vsel %vm4672, %v4679, %v4681
    %v4683 = vsel %vm4671, %v4661, %v4664
    %v4684 = vsel %vm4674, %v4670, 1326507024
    %v4685 = vsel %vm4673, %v4667, %v4684
    %v4686 = vsel %vm4672, %v4683, %v4685
    %v4687 = vshll.u32 %v4647, 8
    %v4688 = vmul.u32.u64.compose %v4687, %v4686
    %v4689 = vextract.low.u32 %v4688
    %v4690 = vextract.high.u32 %v4688
    %v4691 = vmul.u32.u64.compose %v4687, %v4682
    %v4692 = vextract.low.u32 %v4691
    %v4693 = vextract.high.u32 %v4691
    %v4694 = vmul.u32 %v4687, %v4678
    %v4695 = vadd.s32 %v4690, %v4692
    %vm4696 = vc.u32 %v4690, %v4692
    %v4697 = vadd.s32 %v4693, 1
    %v4698 = vsel %vm4696, %v4697, %v4693
    %v4699 = vadd.s32 %v4694, %v4698
    %v4700 = vadd.s32 %v4699, 536870912
    %v4701 = vshrl.u32 %v4700, 30
    %v4702 = vshll.u32 %v4701, 30
    %v4703 = vsub.s32 %v4699, %v4702
    %vm4704 = vcmp.lt.s32.totalorder %v4703, 0
    %v4705 = vsub.s32 0, %v4703
    %v4706 = vsel %vm4704, %v4705, %v4703
    %v4707 = vclz %v4706
    %v4708 = vsub.s32 %v4707, 2
    %vm4709 = vcmp.gt.s32.totalorder 0, %v4708
    %v4710 = vsel %vm4709, 0, %v4708
    %v4711 = vsub.s32 32, %v4710
    %v4712 = vshll.u32 %v4703, %v4710
    %v4713 = vshrl.u32 %v4695, %v4711
    %v4714 = vor.u32 %v4712, %v4713
    %v4715 = vsub.s32 4294967266, %v4710
    %v4716 = vadd.s32 %v4715, 127
    %v4717 = vshll.u32 %v4716, 23
    %v4718 = vor.u32 4788187, %v4717
    %v4719 = vand.u32 2147483647, %v4718
    %v4721 = vcvt.s32.f32 %v4714
    %v4722 = vmul.f32 %v4721, %v4719
    %v4723 = vxor.u32 %v4722, 2147483648
    %v4724 = vsel %vm4641, %v4723, %v4722
    %v4725 = vsub.s32 4, %v4701
    %v4726 = vsel %vm4641, %v4725, %v4701
    %v4727 = vsel %vm4640, %v2652, %v4724
    %v4728 = vsel %vm4640, 0, %v4726
    %v4729 = vcosq.f32.pop %v4727
    %v4730 = vsinq.f32.pop %v4727
    %vm4731 = vweird.f32 %v2652
    %v4732 = vadd.s32 %v4728, 3
    %v4733 = vand.u32 %v4732, 3
    %vm4734 = vcmp.lt.s32.totalorder %v4733, 2
    %vm4735 = vcmp.eq.s32.totalorder %v4733, 0
    %v4736 = vxor.u32 %v4730, 2147483648
    %v4737 = vsel %vm4735, %v4729, %v4736
    %vm4738 = vcmp.eq.s32.totalorder %v4733, 2
    %v4739 = vxor.u32 %v4729, 2147483648
    %v4740 = vsel %vm4738, %v4739, %v4730
    %v4741 = vsel %vm4734, %v4737, %v4740
    %v4742 = vsel %vm4731, nan, %v4741
    %v4743 = vand.u32 2147483647, %v2653
    %vm4744 = vcmp.le.f32.partialorder %v4743, 0.7853982
    %vm4745 = vcmp.lt.s32.totalorder %v2653, 0
    %v4746 = vand.u32 %v2653, 2139095040
    %v4747 = vshrl.u32 %v4746, 23
    %v4748 = vsub.s32 %v4747, 127
    %v4749 = vand.u32 2147483647, %v2653
    %v4750 = vand.u32 %v4749, 8388607
    %v4751 = vor.u32 %v4750, 8388608
    %v4752 = vsub.s32 0, %v4751
    %v4753 = vadd.s32 %v4748, 1
    %vm4754 = vcmp.gt.s32.totalorder %v4753, 0
    %v4755 = vsel %vm4754, %v4753, 0
    %v4756 = vshrl.u32 %v4755, 5
    %v4757 = vand.u32 %v4755, 31
    %v4758 = vsub.s32 32, %v4757
    %v4759 = vshrl.u32 683565275, %v4758
    %v4760 = vshll.u32 683565275, %v4757
    %v4761 = vshrl.u32 2475754826, %v4758
    %v4762 = vor.u32 %v4760, %v4761
    %v4763 = vshll.u32 2475754826, %v4757
    %v4764 = vshrl.u32 2131351028, %v4758
    %v4765 = vor.u32 %v4763, %v4764
    %v4766 = vshll.u32 2131351028, %v4757
    %v4767 = vshrl.u32 2102212464, %v4758
    %v4768 = vor.u32 %v4766, %v4767
    %v4769 = vshll.u32 2102212464, %v4757
    %v4770 = vshrl.u32 920167782, %v4758
    %v4771 = vor.u32 %v4769, %v4770
    %v4772 = vshll.u32 920167782, %v4757
    %v4773 = vshrl.u32 1326507024, %v4758
    %v4774 = vor.u32 %v4772, %v4773
    %vm4775 = vcmp.lt.s32.totalorder %v4756, 1
    %vm4776 = vcmp.lt.s32.totalorder %v4756, 2
    %vm4777 = vcmp.lt.s32.totalorder %v4756, 3
    %vm4778 = vcmp.lt.s32.totalorder %v4756, 4
    %v4779 = vsel %vm4775, %v4759, %v4762
    %v4780 = vsel %vm4778, %v4768, 2102212464
    %v4781 = vsel %vm4777, %v4765, %v4780
    %v4782 = vsel %vm4776, %v4779, %v4781
    %v4783 = vsel %vm4775, %v4762, %v4765
    %v4784 = vsel %vm4778, %v4771, 920167782
    %v4785 = vsel %vm4777, %v4768, %v4784
    %v4786 = vsel %vm4776, %v4783, %v4785
    %v4787 = vsel %vm4775, %v4765, %v4768
    %v4788 = vsel %vm4778, %v4774, 1326507024
    %v4789 = vsel %vm4777, %v4771, %v4788
    %v4790 = vsel %vm4776, %v4787, %v4789
    %v4791 = vshll.u32 %v4751, 8
    %v4792 = vmul.u32.u64.compose %v4791, %v4790
    %v4793 = vextract.low.u32 %v4792
    %v4794 = vextract.high.u32 %v4792
    %v4795 = vmul.u32.u64.compose %v4791, %v4786
    %v4796 = vextract.low.u32 %v4795
    %v4797 = vextract.high.u32 %v4795
    %v4798 = vmul.u32 %v4791, %v4782
    %v4799 = vadd.s32 %v4794, %v4796
    %vm4800 = vc.u32 %v4794, %v4796
    %v4801 = vadd.s32 %v4797, 1
    %v4802 = vsel %vm4800, %v4801, %v4797
    %v4803 = vadd.s32 %v4798, %v4802
    %v4804 = vadd.s32 %v4803, 536870912
    %v4805 = vshrl.u32 %v4804, 30
    %v4806 = vshll.u32 %v4805, 30
    %v4807 = vsub.s32 %v4803, %v4806
    %vm4808 = vcmp.lt.s32.totalorder %v4807, 0
    %v4809 = vsub.s32 0, %v4807
    %v4810 = vsel %vm4808, %v4809, %v4807
    %v4811 = vclz %v4810
    %v4812 = vsub.s32 %v4811, 2
    %vm4813 = vcmp.gt.s32.totalorder 0, %v4812
    %v4814 = vsel %vm4813, 0, %v4812
    %v4815 = vsub.s32 32, %v4814
    %v4816 = vshll.u32 %v4807, %v4814
    %v4817 = vshrl.u32 %v4799, %v4815
    %v4818 = vor.u32 %v4816, %v4817
    %v4819 = vsub.s32 4294967266, %v4814
    %v4820 = vadd.s32 %v4819, 127
    %v4821 = vshll.u32 %v4820, 23
    %v4822 = vor.u32 4788187, %v4821
    %v4823 = vand.u32 2147483647, %v4822
    %v4825 = vcvt.s32.f32 %v4818
    %v4826 = vmul.f32 %v4825, %v4823
    %v4827 = vxor.u32 %v4826, 2147483648
    %v4828 = vsel %vm4745, %v4827, %v4826
    %v4829 = vsub.s32 4, %v4805
    %v4830 = vsel %vm4745, %v4829, %v4805
    %v4831 = vsel %vm4744, %v2653, %v4828
    %v4832 = vsel %vm4744, 0, %v4830
    %v4833 = vcosq.f32.pop %v4831
    %v4834 = vsinq.f32.pop %v4831
    %vm4835 = vweird.f32 %v2653
    %v4836 = vadd.s32 %v4832, 3
    %v4837 = vand.u32 %v4836, 3
    %vm4838 = vcmp.lt.s32.totalorder %v4837, 2
    %vm4839 = vcmp.eq.s32.totalorder %v4837, 0
    %v4840 = vxor.u32 %v4834, 2147483648
    %v4841 = vsel %vm4839, %v4833, %v4840
    %vm4842 = vcmp.eq.s32.totalorder %v4837, 2
    %v4843 = vxor.u32 %v4833, 2147483648
    %v4844 = vsel %vm4842, %v4843, %v4834
    %v4845 = vsel %vm4838, %v4841, %v4844
    %v4846 = vsel %vm4835, nan, %v4845
    %v4847 = vand.u32 2147483647, %v2654
    %vm4848 = vcmp.le.f32.partialorder %v4847, 0.7853982
    %vm4849 = vcmp.lt.s32.totalorder %v2654, 0
    %v4850 = vand.u32 %v2654, 2139095040
    %v4851 = vshrl.u32 %v4850, 23
    %v4852 = vsub.s32 %v4851, 127
    %v4853 = vand.u32 2147483647, %v2654
    %v4854 = vand.u32 %v4853, 8388607
    %v4855 = vor.u32 %v4854, 8388608
    %v4856 = vsub.s32 0, %v4855
    %v4857 = vadd.s32 %v4852, 1
    %vm4858 = vcmp.gt.s32.totalorder %v4857, 0
    %v4859 = vsel %vm4858, %v4857, 0
    %v4860 = vshrl.u32 %v4859, 5
    %v4861 = vand.u32 %v4859, 31
    %v4862 = vsub.s32 32, %v4861
    %v4863 = vshrl.u32 683565275, %v4862
    %v4864 = vshll.u32 683565275, %v4861
    %v4865 = vshrl.u32 2475754826, %v4862
    %v4866 = vor.u32 %v4864, %v4865
    %v4867 = vshll.u32 2475754826, %v4861
    %v4868 = vshrl.u32 2131351028, %v4862
    %v4869 = vor.u32 %v4867, %v4868
    %v4870 = vshll.u32 2131351028, %v4861
    %v4871 = vshrl.u32 2102212464, %v4862
    %v4872 = vor.u32 %v4870, %v4871
    %v4873 = vshll.u32 2102212464, %v4861
    %v4874 = vshrl.u32 920167782, %v4862
    %v4875 = vor.u32 %v4873, %v4874
    %v4876 = vshll.u32 920167782, %v4861
    %v4877 = vshrl.u32 1326507024, %v4862
    %v4878 = vor.u32 %v4876, %v4877
    %vm4879 = vcmp.lt.s32.totalorder %v4860, 1
    %vm4880 = vcmp.lt.s32.totalorder %v4860, 2
    %vm4881 = vcmp.lt.s32.totalorder %v4860, 3
    %vm4882 = vcmp.lt.s32.totalorder %v4860, 4
    %v4883 = vsel %vm4879, %v4863, %v4866
    %v4884 = vsel %vm4882, %v4872, 2102212464
    %v4885 = vsel %vm4881, %v4869, %v4884
    %v4886 = vsel %vm4880, %v4883, %v4885
    %v4887 = vsel %vm4879, %v4866, %v4869
    %v4888 = vsel %vm4882, %v4875, 920167782
    %v4889 = vsel %vm4881, %v4872, %v4888
    %v4890 = vsel %vm4880, %v4887, %v4889
    %v4891 = vsel %vm4879, %v4869, %v4872
    %v4892 = vsel %vm4882, %v4878, 1326507024
    %v4893 = vsel %vm4881, %v4875, %v4892
    %v4894 = vsel %vm4880, %v4891, %v4893
    %v4895 = vshll.u32 %v4855, 8
    %v4896 = vmul.u32.u64.compose %v4895, %v4894
    %v4897 = vextract.low.u32 %v4896
    %v4898 = vextract.high.u32 %v4896
    %v4899 = vmul.u32.u64.compose %v4895, %v4890
    %v4900 = vextract.low.u32 %v4899
    %v4901 = vextract.high.u32 %v4899
    %v4902 = vmul.u32 %v4895, %v4886
    %v4903 = vadd.s32 %v4898, %v4900
    %vm4904 = vc.u32 %v4898, %v4900
    %v4905 = vadd.s32 %v4901, 1
    %v4906 = vsel %vm4904, %v4905, %v4901
    %v4907 = vadd.s32 %v4902, %v4906
    %v4908 = vadd.s32 %v4907, 536870912
    %v4909 = vshrl.u32 %v4908, 30
    %v4910 = vshll.u32 %v4909, 30
    %v4911 = vsub.s32 %v4907, %v4910
    %vm4912 = vcmp.lt.s32.totalorder %v4911, 0
    %v4913 = vsub.s32 0, %v4911
    %v4914 = vsel %vm4912, %v4913, %v4911
    %v4915 = vclz %v4914
    %v4916 = vsub.s32 %v4915, 2
    %vm4917 = vcmp.gt.s32.totalorder 0, %v4916
    %v4918 = vsel %vm4917, 0, %v4916
    %v4919 = vsub.s32 32, %v4918
    %v4920 = vshll.u32 %v4911, %v4918
    %v4921 = vshrl.u32 %v4903, %v4919
    %v4922 = vor.u32 %v4920, %v4921
    %v4923 = vsub.s32 4294967266, %v4918
    %v4924 = vadd.s32 %v4923, 127
    %v4925 = vshll.u32 %v4924, 23
    %v4926 = vor.u32 4788187, %v4925
    %v4927 = vand.u32 2147483647, %v4926
    %v4929 = vcvt.s32.f32 %v4922
    %v4930 = vmul.f32 %v4929, %v4927
    %v4931 = vxor.u32 %v4930, 2147483648
    %v4932 = vsel %vm4849, %v4931, %v4930
    %v4933 = vsub.s32 4, %v4909
    %v4934 = vsel %vm4849, %v4933, %v4909
    %v4935 = vsel %vm4848, %v2654, %v4932
    %v4936 = vsel %vm4848, 0, %v4934
    %v4937 = vcosq.f32.pop %v4935
    %v4938 = vsinq.f32.pop %v4935
    %vm4939 = vweird.f32 %v2654
    %v4940 = vadd.s32 %v4936, 3
    %v4941 = vand.u32 %v4940, 3
    %vm4942 = vcmp.lt.s32.totalorder %v4941, 2
    %vm4943 = vcmp.eq.s32.totalorder %v4941, 0
    %v4944 = vxor.u32 %v4938, 2147483648
    %v4945 = vsel %vm4943, %v4937, %v4944
    %vm4946 = vcmp.eq.s32.totalorder %v4941, 2
    %v4947 = vxor.u32 %v4937, 2147483648
    %v4948 = vsel %vm4946, %v4947, %v4938
    %v4949 = vsel %vm4942, %v4945, %v4948
    %v4950 = vsel %vm4939, nan, %v4949
    %v4951 = vand.u32 2147483647, %v2655
    %vm4952 = vcmp.le.f32.partialorder %v4951, 0.7853982
    %vm4953 = vcmp.lt.s32.totalorder %v2655, 0
    %v4954 = vand.u32 %v2655, 2139095040
    %v4955 = vshrl.u32 %v4954, 23
    %v4956 = vsub.s32 %v4955, 127
    %v4957 = vand.u32 2147483647, %v2655
    %v4958 = vand.u32 %v4957, 8388607
    %v4959 = vor.u32 %v4958, 8388608
    %v4960 = vsub.s32 0, %v4959
    %v4961 = vadd.s32 %v4956, 1
    %vm4962 = vcmp.gt.s32.totalorder %v4961, 0
    %v4963 = vsel %vm4962, %v4961, 0
    %v4964 = vshrl.u32 %v4963, 5
    %v4965 = vand.u32 %v4963, 31
    %v4966 = vsub.s32 32, %v4965
    %v4967 = vshrl.u32 683565275, %v4966
    %v4968 = vshll.u32 683565275, %v4965
    %v4969 = vshrl.u32 2475754826, %v4966
    %v4970 = vor.u32 %v4968, %v4969
    %v4971 = vshll.u32 2475754826, %v4965
    %v4972 = vshrl.u32 2131351028, %v4966
    %v4973 = vor.u32 %v4971, %v4972
    %v4974 = vshll.u32 2131351028, %v4965
    %v4975 = vshrl.u32 2102212464, %v4966
    %v4976 = vor.u32 %v4974, %v4975
    %v4977 = vshll.u32 2102212464, %v4965
    %v4978 = vshrl.u32 920167782, %v4966
    %v4979 = vor.u32 %v4977, %v4978
    %v4980 = vshll.u32 920167782, %v4965
    %v4981 = vshrl.u32 1326507024, %v4966
    %v4982 = vor.u32 %v4980, %v4981
    %vm4983 = vcmp.lt.s32.totalorder %v4964, 1
    %vm4984 = vcmp.lt.s32.totalorder %v4964, 2
    %vm4985 = vcmp.lt.s32.totalorder %v4964, 3
    %vm4986 = vcmp.lt.s32.totalorder %v4964, 4
    %v4987 = vsel %vm4983, %v4967, %v4970
    %v4988 = vsel %vm4986, %v4976, 2102212464
    %v4989 = vsel %vm4985, %v4973, %v4988
    %v4990 = vsel %vm4984, %v4987, %v4989
    %v4991 = vsel %vm4983, %v4970, %v4973
    %v4992 = vsel %vm4986, %v4979, 920167782
    %v4993 = vsel %vm4985, %v4976, %v4992
    %v4994 = vsel %vm4984, %v4991, %v4993
    %v4995 = vsel %vm4983, %v4973, %v4976
    %v4996 = vsel %vm4986, %v4982, 1326507024
    %v4997 = vsel %vm4985, %v4979, %v4996
    %v4998 = vsel %vm4984, %v4995, %v4997
    %v4999 = vshll.u32 %v4959, 8
    %v5000 = vmul.u32.u64.compose %v4999, %v4998
    %v5001 = vextract.low.u32 %v5000
    %v5002 = vextract.high.u32 %v5000
    %v5003 = vmul.u32.u64.compose %v4999, %v4994
    %v5004 = vextract.low.u32 %v5003
    %v5005 = vextract.high.u32 %v5003
    %v5006 = vmul.u32 %v4999, %v4990
    %v5007 = vadd.s32 %v5002, %v5004
    %vm5008 = vc.u32 %v5002, %v5004
    %v5009 = vadd.s32 %v5005, 1
    %v5010 = vsel %vm5008, %v5009, %v5005
    %v5011 = vadd.s32 %v5006, %v5010
    %v5012 = vadd.s32 %v5011, 536870912
    %v5013 = vshrl.u32 %v5012, 30
    %v5014 = vshll.u32 %v5013, 30
    %v5015 = vsub.s32 %v5011, %v5014
    %vm5016 = vcmp.lt.s32.totalorder %v5015, 0
    %v5017 = vsub.s32 0, %v5015
    %v5018 = vsel %vm5016, %v5017, %v5015
    %v5019 = vclz %v5018
    %v5020 = vsub.s32 %v5019, 2
    %vm5021 = vcmp.gt.s32.totalorder 0, %v5020
    %v5022 = vsel %vm5021, 0, %v5020
    %v5023 = vsub.s32 32, %v5022
    %v5024 = vshll.u32 %v5015, %v5022
    %v5025 = vshrl.u32 %v5007, %v5023
    %v5026 = vor.u32 %v5024, %v5025
    %v5027 = vsub.s32 4294967266, %v5022
    %v5028 = vadd.s32 %v5027, 127
    %v5029 = vshll.u32 %v5028, 23
    %v5030 = vor.u32 4788187, %v5029
    %v5031 = vand.u32 2147483647, %v5030
    %v5033 = vcvt.s32.f32 %v5026
    %v5034 = vmul.f32 %v5033, %v5031
    %v5035 = vxor.u32 %v5034, 2147483648
    %v5036 = vsel %vm4953, %v5035, %v5034
    %v5037 = vsub.s32 4, %v5013
    %v5038 = vsel %vm4953, %v5037, %v5013
    %v5039 = vsel %vm4952, %v2655, %v5036
    %v5040 = vsel %vm4952, 0, %v5038
    %v5041 = vcosq.f32.pop %v5039
    %v5042 = vsinq.f32.pop %v5039
    %vm5043 = vweird.f32 %v2655
    %v5044 = vadd.s32 %v5040, 3
    %v5045 = vand.u32 %v5044, 3
    %vm5046 = vcmp.lt.s32.totalorder %v5045, 2
    %vm5047 = vcmp.eq.s32.totalorder %v5045, 0
    %v5048 = vxor.u32 %v5042, 2147483648
    %v5049 = vsel %vm5047, %v5041, %v5048
    %vm5050 = vcmp.eq.s32.totalorder %v5045, 2
    %v5051 = vxor.u32 %v5041, 2147483648
    %v5052 = vsel %vm5050, %v5051, %v5042
    %v5053 = vsel %vm5046, %v5049, %v5052
    %v5054 = vsel %vm5043, nan, %v5053
    %v5055 = vand.u32 2147483647, %v2656
    %vm5056 = vcmp.le.f32.partialorder %v5055, 0.7853982
    %vm5057 = vcmp.lt.s32.totalorder %v2656, 0
    %v5058 = vand.u32 %v2656, 2139095040
    %v5059 = vshrl.u32 %v5058, 23
    %v5060 = vsub.s32 %v5059, 127
    %v5061 = vand.u32 2147483647, %v2656
    %v5062 = vand.u32 %v5061, 8388607
    %v5063 = vor.u32 %v5062, 8388608
    %v5064 = vsub.s32 0, %v5063
    %v5065 = vadd.s32 %v5060, 1
    %vm5066 = vcmp.gt.s32.totalorder %v5065, 0
    %v5067 = vsel %vm5066, %v5065, 0
    %v5068 = vshrl.u32 %v5067, 5
    %v5069 = vand.u32 %v5067, 31
    %v5070 = vsub.s32 32, %v5069
    %v5071 = vshrl.u32 683565275, %v5070
    %v5072 = vshll.u32 683565275, %v5069
    %v5073 = vshrl.u32 2475754826, %v5070
    %v5074 = vor.u32 %v5072, %v5073
    %v5075 = vshll.u32 2475754826, %v5069
    %v5076 = vshrl.u32 2131351028, %v5070
    %v5077 = vor.u32 %v5075, %v5076
    %v5078 = vshll.u32 2131351028, %v5069
    %v5079 = vshrl.u32 2102212464, %v5070
    %v5080 = vor.u32 %v5078, %v5079
    %v5081 = vshll.u32 2102212464, %v5069
    %v5082 = vshrl.u32 920167782, %v5070
    %v5083 = vor.u32 %v5081, %v5082
    %v5084 = vshll.u32 920167782, %v5069
    %v5085 = vshrl.u32 1326507024, %v5070
    %v5086 = vor.u32 %v5084, %v5085
    %vm5087 = vcmp.lt.s32.totalorder %v5068, 1
    %vm5088 = vcmp.lt.s32.totalorder %v5068, 2
    %vm5089 = vcmp.lt.s32.totalorder %v5068, 3
    %vm5090 = vcmp.lt.s32.totalorder %v5068, 4
    %v5091 = vsel %vm5087, %v5071, %v5074
    %v5092 = vsel %vm5090, %v5080, 2102212464
    %v5093 = vsel %vm5089, %v5077, %v5092
    %v5094 = vsel %vm5088, %v5091, %v5093
    %v5095 = vsel %vm5087, %v5074, %v5077
    %v5096 = vsel %vm5090, %v5083, 920167782
    %v5097 = vsel %vm5089, %v5080, %v5096
    %v5098 = vsel %vm5088, %v5095, %v5097
    %v5099 = vsel %vm5087, %v5077, %v5080
    %v5100 = vsel %vm5090, %v5086, 1326507024
    %v5101 = vsel %vm5089, %v5083, %v5100
    %v5102 = vsel %vm5088, %v5099, %v5101
    %v5103 = vshll.u32 %v5063, 8
    %v5104 = vmul.u32.u64.compose %v5103, %v5102
    %v5105 = vextract.low.u32 %v5104
    %v5106 = vextract.high.u32 %v5104
    %v5107 = vmul.u32.u64.compose %v5103, %v5098
    %v5108 = vextract.low.u32 %v5107
    %v5109 = vextract.high.u32 %v5107
    %v5110 = vmul.u32 %v5103, %v5094
    %v5111 = vadd.s32 %v5106, %v5108
    %vm5112 = vc.u32 %v5106, %v5108
    %v5113 = vadd.s32 %v5109, 1
    %v5114 = vsel %vm5112, %v5113, %v5109
    %v5115 = vadd.s32 %v5110, %v5114
    %v5116 = vadd.s32 %v5115, 536870912
    %v5117 = vshrl.u32 %v5116, 30
    %v5118 = vshll.u32 %v5117, 30
    %v5119 = vsub.s32 %v5115, %v5118
    %vm5120 = vcmp.lt.s32.totalorder %v5119, 0
    %v5121 = vsub.s32 0, %v5119
    %v5122 = vsel %vm5120, %v5121, %v5119
    %v5123 = vclz %v5122
    %v5124 = vsub.s32 %v5123, 2
    %vm5125 = vcmp.gt.s32.totalorder 0, %v5124
    %v5126 = vsel %vm5125, 0, %v5124
    %v5127 = vsub.s32 32, %v5126
    %v5128 = vshll.u32 %v5119, %v5126
    %v5129 = vshrl.u32 %v5111, %v5127
    %v5130 = vor.u32 %v5128, %v5129
    %v5131 = vsub.s32 4294967266, %v5126
    %v5132 = vadd.s32 %v5131, 127
    %v5133 = vshll.u32 %v5132, 23
    %v5134 = vor.u32 4788187, %v5133
    %v5135 = vand.u32 2147483647, %v5134
    %v5137 = vcvt.s32.f32 %v5130
    %v5138 = vmul.f32 %v5137, %v5135
    %v5139 = vxor.u32 %v5138, 2147483648
    %v5140 = vsel %vm5057, %v5139, %v5138
    %v5141 = vsub.s32 4, %v5117
    %v5142 = vsel %vm5057, %v5141, %v5117
    %v5143 = vsel %vm5056, %v2656, %v5140
    %v5144 = vsel %vm5056, 0, %v5142
    %v5145 = vcosq.f32.pop %v5143
    %v5146 = vsinq.f32.pop %v5143
    %vm5147 = vweird.f32 %v2656
    %v5148 = vadd.s32 %v5144, 3
    %v5149 = vand.u32 %v5148, 3
    %vm5150 = vcmp.lt.s32.totalorder %v5149, 2
    %vm5151 = vcmp.eq.s32.totalorder %v5149, 0
    %v5152 = vxor.u32 %v5146, 2147483648
    %v5153 = vsel %vm5151, %v5145, %v5152
    %vm5154 = vcmp.eq.s32.totalorder %v5149, 2
    %v5155 = vxor.u32 %v5145, 2147483648
    %v5156 = vsel %vm5154, %v5155, %v5146
    %v5157 = vsel %vm5150, %v5153, %v5156
    %v5158 = vsel %vm5147, nan, %v5157
    %v5159 = vand.u32 2147483647, %v2657
    %vm5160 = vcmp.le.f32.partialorder %v5159, 0.7853982
    %vm5161 = vcmp.lt.s32.totalorder %v2657, 0
    %v5162 = vand.u32 %v2657, 2139095040
    %v5163 = vshrl.u32 %v5162, 23
    %v5164 = vsub.s32 %v5163, 127
    %v5165 = vand.u32 2147483647, %v2657
    %v5166 = vand.u32 %v5165, 8388607
    %v5167 = vor.u32 %v5166, 8388608
    %v5168 = vsub.s32 0, %v5167
    %v5169 = vadd.s32 %v5164, 1
    %vm5170 = vcmp.gt.s32.totalorder %v5169, 0
    %v5171 = vsel %vm5170, %v5169, 0
    %v5172 = vshrl.u32 %v5171, 5
    %v5173 = vand.u32 %v5171, 31
    %v5174 = vsub.s32 32, %v5173
    %v5175 = vshrl.u32 683565275, %v5174
    %v5176 = vshll.u32 683565275, %v5173
    %v5177 = vshrl.u32 2475754826, %v5174
    %v5178 = vor.u32 %v5176, %v5177
    %v5179 = vshll.u32 2475754826, %v5173
    %v5180 = vshrl.u32 2131351028, %v5174
    %v5181 = vor.u32 %v5179, %v5180
    %v5182 = vshll.u32 2131351028, %v5173
    %v5183 = vshrl.u32 2102212464, %v5174
    %v5184 = vor.u32 %v5182, %v5183
    %v5185 = vshll.u32 2102212464, %v5173
    %v5186 = vshrl.u32 920167782, %v5174
    %v5187 = vor.u32 %v5185, %v5186
    %v5188 = vshll.u32 920167782, %v5173
    %v5189 = vshrl.u32 1326507024, %v5174
    %v5190 = vor.u32 %v5188, %v5189
    %vm5191 = vcmp.lt.s32.totalorder %v5172, 1
    %vm5192 = vcmp.lt.s32.totalorder %v5172, 2
    %vm5193 = vcmp.lt.s32.totalorder %v5172, 3
    %vm5194 = vcmp.lt.s32.totalorder %v5172, 4
    %v5195 = vsel %vm5191, %v5175, %v5178
    %v5196 = vsel %vm5194, %v5184, 2102212464
    %v5197 = vsel %vm5193, %v5181, %v5196
    %v5198 = vsel %vm5192, %v5195, %v5197
    %v5199 = vsel %vm5191, %v5178, %v5181
    %v5200 = vsel %vm5194, %v5187, 920167782
    %v5201 = vsel %vm5193, %v5184, %v5200
    %v5202 = vsel %vm5192, %v5199, %v5201
    %v5203 = vsel %vm5191, %v5181, %v5184
    %v5204 = vsel %vm5194, %v5190, 1326507024
    %v5205 = vsel %vm5193, %v5187, %v5204
    %v5206 = vsel %vm5192, %v5203, %v5205
    %v5207 = vshll.u32 %v5167, 8
    %v5208 = vmul.u32.u64.compose %v5207, %v5206
    %v5209 = vextract.low.u32 %v5208
    %v5210 = vextract.high.u32 %v5208
    %v5211 = vmul.u32.u64.compose %v5207, %v5202
    %v5212 = vextract.low.u32 %v5211
    %v5213 = vextract.high.u32 %v5211
    %v5214 = vmul.u32 %v5207, %v5198
    %v5215 = vadd.s32 %v5210, %v5212
    %vm5216 = vc.u32 %v5210, %v5212
    %v5217 = vadd.s32 %v5213, 1
    %v5218 = vsel %vm5216, %v5217, %v5213
    %v5219 = vadd.s32 %v5214, %v5218
    %v5220 = vadd.s32 %v5219, 536870912
    %v5221 = vshrl.u32 %v5220, 30
    %v5222 = vshll.u32 %v5221, 30
    %v5223 = vsub.s32 %v5219, %v5222
    %vm5224 = vcmp.lt.s32.totalorder %v5223, 0
    %v5225 = vsub.s32 0, %v5223
    %v5226 = vsel %vm5224, %v5225, %v5223
    %v5227 = vclz %v5226
    %v5228 = vsub.s32 %v5227, 2
    %vm5229 = vcmp.gt.s32.totalorder 0, %v5228
    %v5230 = vsel %vm5229, 0, %v5228
    %v5231 = vsub.s32 32, %v5230
    %v5232 = vshll.u32 %v5223, %v5230
    %v5233 = vshrl.u32 %v5215, %v5231
    %v5234 = vor.u32 %v5232, %v5233
    %v5235 = vsub.s32 4294967266, %v5230
    %v5236 = vadd.s32 %v5235, 127
    %v5237 = vshll.u32 %v5236, 23
    %v5238 = vor.u32 4788187, %v5237
    %v5239 = vand.u32 2147483647, %v5238
    %v5241 = vcvt.s32.f32 %v5234
    %v5242 = vmul.f32 %v5241, %v5239
    %v5243 = vxor.u32 %v5242, 2147483648
    %v5244 = vsel %vm5161, %v5243, %v5242
    %v5245 = vsub.s32 4, %v5221
    %v5246 = vsel %vm5161, %v5245, %v5221
    %v5247 = vsel %vm5160, %v2657, %v5244
    %v5248 = vsel %vm5160, 0, %v5246
    %v5249 = vcosq.f32.pop %v5247
    %v5250 = vsinq.f32.pop %v5247
    %vm5251 = vweird.f32 %v2657
    %v5252 = vadd.s32 %v5248, 3
    %v5253 = vand.u32 %v5252, 3
    %vm5254 = vcmp.lt.s32.totalorder %v5253, 2
    %vm5255 = vcmp.eq.s32.totalorder %v5253, 0
    %v5256 = vxor.u32 %v5250, 2147483648
    %v5257 = vsel %vm5255, %v5249, %v5256
    %vm5258 = vcmp.eq.s32.totalorder %v5253, 2
    %v5259 = vxor.u32 %v5249, 2147483648
    %v5260 = vsel %vm5258, %v5259, %v5250
    %v5261 = vsel %vm5254, %v5257, %v5260
    %v5262 = vsel %vm5251, nan, %v5261
    %v5263 = vand.u32 2147483647, %v2658
    %vm5264 = vcmp.le.f32.partialorder %v5263, 0.7853982
    %vm5265 = vcmp.lt.s32.totalorder %v2658, 0
    %v5266 = vand.u32 %v2658, 2139095040
    %v5267 = vshrl.u32 %v5266, 23
    %v5268 = vsub.s32 %v5267, 127
    %v5269 = vand.u32 2147483647, %v2658
    %v5270 = vand.u32 %v5269, 8388607
    %v5271 = vor.u32 %v5270, 8388608
    %v5272 = vsub.s32 0, %v5271
    %v5273 = vadd.s32 %v5268, 1
    %vm5274 = vcmp.gt.s32.totalorder %v5273, 0
    %v5275 = vsel %vm5274, %v5273, 0
    %v5276 = vshrl.u32 %v5275, 5
    %v5277 = vand.u32 %v5275, 31
    %v5278 = vsub.s32 32, %v5277
    %v5279 = vshrl.u32 683565275, %v5278
    %v5280 = vshll.u32 683565275, %v5277
    %v5281 = vshrl.u32 2475754826, %v5278
    %v5282 = vor.u32 %v5280, %v5281
    %v5283 = vshll.u32 2475754826, %v5277
    %v5284 = vshrl.u32 2131351028, %v5278
    %v5285 = vor.u32 %v5283, %v5284
    %v5286 = vshll.u32 2131351028, %v5277
    %v5287 = vshrl.u32 2102212464, %v5278
    %v5288 = vor.u32 %v5286, %v5287
    %v5289 = vshll.u32 2102212464, %v5277
    %v5290 = vshrl.u32 920167782, %v5278
    %v5291 = vor.u32 %v5289, %v5290
    %v5292 = vshll.u32 920167782, %v5277
    %v5293 = vshrl.u32 1326507024, %v5278
    %v5294 = vor.u32 %v5292, %v5293
    %vm5295 = vcmp.lt.s32.totalorder %v5276, 1
    %vm5296 = vcmp.lt.s32.totalorder %v5276, 2
    %vm5297 = vcmp.lt.s32.totalorder %v5276, 3
    %vm5298 = vcmp.lt.s32.totalorder %v5276, 4
    %v5299 = vsel %vm5295, %v5279, %v5282
    %v5300 = vsel %vm5298, %v5288, 2102212464
    %v5301 = vsel %vm5297, %v5285, %v5300
    %v5302 = vsel %vm5296, %v5299, %v5301
    %v5303 = vsel %vm5295, %v5282, %v5285
    %v5304 = vsel %vm5298, %v5291, 920167782
    %v5305 = vsel %vm5297, %v5288, %v5304
    %v5306 = vsel %vm5296, %v5303, %v5305
    %v5307 = vsel %vm5295, %v5285, %v5288
    %v5308 = vsel %vm5298, %v5294, 1326507024
    %v5309 = vsel %vm5297, %v5291, %v5308
    %v5310 = vsel %vm5296, %v5307, %v5309
    %v5311 = vshll.u32 %v5271, 8
    %v5312 = vmul.u32.u64.compose %v5311, %v5310
    %v5313 = vextract.low.u32 %v5312
    %v5314 = vextract.high.u32 %v5312
    %v5315 = vmul.u32.u64.compose %v5311, %v5306
    %v5316 = vextract.low.u32 %v5315
    %v5317 = vextract.high.u32 %v5315
    %v5318 = vmul.u32 %v5311, %v5302
    %v5319 = vadd.s32 %v5314, %v5316
    %vm5320 = vc.u32 %v5314, %v5316
    %v5321 = vadd.s32 %v5317, 1
    %v5322 = vsel %vm5320, %v5321, %v5317
    %v5323 = vadd.s32 %v5318, %v5322
    %v5324 = vadd.s32 %v5323, 536870912
    %v5325 = vshrl.u32 %v5324, 30
    %v5326 = vshll.u32 %v5325, 30
    %v5327 = vsub.s32 %v5323, %v5326
    %vm5328 = vcmp.lt.s32.totalorder %v5327, 0
    %v5329 = vsub.s32 0, %v5327
    %v5330 = vsel %vm5328, %v5329, %v5327
    %v5331 = vclz %v5330
    %v5332 = vsub.s32 %v5331, 2
    %vm5333 = vcmp.gt.s32.totalorder 0, %v5332
    %v5334 = vsel %vm5333, 0, %v5332
    %v5335 = vsub.s32 32, %v5334
    %v5336 = vshll.u32 %v5327, %v5334
    %v5337 = vshrl.u32 %v5319, %v5335
    %v5338 = vor.u32 %v5336, %v5337
    %v5339 = vsub.s32 4294967266, %v5334
    %v5340 = vadd.s32 %v5339, 127
    %v5341 = vshll.u32 %v5340, 23
    %v5342 = vor.u32 4788187, %v5341
    %v5343 = vand.u32 2147483647, %v5342
    %v5345 = vcvt.s32.f32 %v5338
    %v5346 = vmul.f32 %v5345, %v5343
    %v5347 = vxor.u32 %v5346, 2147483648
    %v5348 = vsel %vm5265, %v5347, %v5346
    %v5349 = vsub.s32 4, %v5325
    %v5350 = vsel %vm5265, %v5349, %v5325
    %v5351 = vsel %vm5264, %v2658, %v5348
    %v5352 = vsel %vm5264, 0, %v5350
    %v5353 = vcosq.f32.pop %v5351
    %v5354 = vsinq.f32.pop %v5351
    %vm5355 = vweird.f32 %v2658
    %v5356 = vadd.s32 %v5352, 3
    %v5357 = vand.u32 %v5356, 3
    %vm5358 = vcmp.lt.s32.totalorder %v5357, 2
    %vm5359 = vcmp.eq.s32.totalorder %v5357, 0
    %v5360 = vxor.u32 %v5354, 2147483648
    %v5361 = vsel %vm5359, %v5353, %v5360
    %vm5362 = vcmp.eq.s32.totalorder %v5357, 2
    %v5363 = vxor.u32 %v5353, 2147483648
    %v5364 = vsel %vm5362, %v5363, %v5354
    %v5365 = vsel %vm5358, %v5361, %v5364
    %v5366 = vsel %vm5355, nan, %v5365
    %v5367 = vand.u32 2147483647, %v2659
    %vm5368 = vcmp.le.f32.partialorder %v5367, 0.7853982
    %vm5369 = vcmp.lt.s32.totalorder %v2659, 0
    %v5370 = vand.u32 %v2659, 2139095040
    %v5371 = vshrl.u32 %v5370, 23
    %v5372 = vsub.s32 %v5371, 127
    %v5373 = vand.u32 2147483647, %v2659
    %v5374 = vand.u32 %v5373, 8388607
    %v5375 = vor.u32 %v5374, 8388608
    %v5376 = vsub.s32 0, %v5375
    %v5377 = vadd.s32 %v5372, 1
    %vm5378 = vcmp.gt.s32.totalorder %v5377, 0
    %v5379 = vsel %vm5378, %v5377, 0
    %v5380 = vshrl.u32 %v5379, 5
    %v5381 = vand.u32 %v5379, 31
    %v5382 = vsub.s32 32, %v5381
    %v5383 = vshrl.u32 683565275, %v5382
    %v5384 = vshll.u32 683565275, %v5381
    %v5385 = vshrl.u32 2475754826, %v5382
    %v5386 = vor.u32 %v5384, %v5385
    %v5387 = vshll.u32 2475754826, %v5381
    %v5388 = vshrl.u32 2131351028, %v5382
    %v5389 = vor.u32 %v5387, %v5388
    %v5390 = vshll.u32 2131351028, %v5381
    %v5391 = vshrl.u32 2102212464, %v5382
    %v5392 = vor.u32 %v5390, %v5391
    %v5393 = vshll.u32 2102212464, %v5381
    %v5394 = vshrl.u32 920167782, %v5382
    %v5395 = vor.u32 %v5393, %v5394
    %v5396 = vshll.u32 920167782, %v5381
    %v5397 = vshrl.u32 1326507024, %v5382
    %v5398 = vor.u32 %v5396, %v5397
    %vm5399 = vcmp.lt.s32.totalorder %v5380, 1
    %vm5400 = vcmp.lt.s32.totalorder %v5380, 2
    %vm5401 = vcmp.lt.s32.totalorder %v5380, 3
    %vm5402 = vcmp.lt.s32.totalorder %v5380, 4
    %v5403 = vsel %vm5399, %v5383, %v5386
    %v5404 = vsel %vm5402, %v5392, 2102212464
    %v5405 = vsel %vm5401, %v5389, %v5404
    %v5406 = vsel %vm5400, %v5403, %v5405
    %v5407 = vsel %vm5399, %v5386, %v5389
    %v5408 = vsel %vm5402, %v5395, 920167782
    %v5409 = vsel %vm5401, %v5392, %v5408
    %v5410 = vsel %vm5400, %v5407, %v5409
    %v5411 = vsel %vm5399, %v5389, %v5392
    %v5412 = vsel %vm5402, %v5398, 1326507024
    %v5413 = vsel %vm5401, %v5395, %v5412
    %v5414 = vsel %vm5400, %v5411, %v5413
    %v5415 = vshll.u32 %v5375, 8
    %v5416 = vmul.u32.u64.compose %v5415, %v5414
    %v5417 = vextract.low.u32 %v5416
    %v5418 = vextract.high.u32 %v5416
    %v5419 = vmul.u32.u64.compose %v5415, %v5410
    %v5420 = vextract.low.u32 %v5419
    %v5421 = vextract.high.u32 %v5419
    %v5422 = vmul.u32 %v5415, %v5406
    %v5423 = vadd.s32 %v5418, %v5420
    %vm5424 = vc.u32 %v5418, %v5420
    %v5425 = vadd.s32 %v5421, 1
    %v5426 = vsel %vm5424, %v5425, %v5421
    %v5427 = vadd.s32 %v5422, %v5426
    %v5428 = vadd.s32 %v5427, 536870912
    %v5429 = vshrl.u32 %v5428, 30
    %v5430 = vshll.u32 %v5429, 30
    %v5431 = vsub.s32 %v5427, %v5430
    %vm5432 = vcmp.lt.s32.totalorder %v5431, 0
    %v5433 = vsub.s32 0, %v5431
    %v5434 = vsel %vm5432, %v5433, %v5431
    %v5435 = vclz %v5434
    %v5436 = vsub.s32 %v5435, 2
    %vm5437 = vcmp.gt.s32.totalorder 0, %v5436
    %v5438 = vsel %vm5437, 0, %v5436
    %v5439 = vsub.s32 32, %v5438
    %v5440 = vshll.u32 %v5431, %v5438
    %v5441 = vshrl.u32 %v5423, %v5439
    %v5442 = vor.u32 %v5440, %v5441
    %v5443 = vsub.s32 4294967266, %v5438
    %v5444 = vadd.s32 %v5443, 127
    %v5445 = vshll.u32 %v5444, 23
    %v5446 = vor.u32 4788187, %v5445
    %v5447 = vand.u32 2147483647, %v5446
    %v5449 = vcvt.s32.f32 %v5442
    %v5450 = vmul.f32 %v5449, %v5447
    %v5451 = vxor.u32 %v5450, 2147483648
    %v5452 = vsel %vm5369, %v5451, %v5450
    %v5453 = vsub.s32 4, %v5429
    %v5454 = vsel %vm5369, %v5453, %v5429
    %v5455 = vsel %vm5368, %v2659, %v5452
    %v5456 = vsel %vm5368, 0, %v5454
    %v5457 = vcosq.f32.pop %v5455
    %v5458 = vsinq.f32.pop %v5455
    %vm5459 = vweird.f32 %v2659
    %v5460 = vadd.s32 %v5456, 3
    %v5461 = vand.u32 %v5460, 3
    %vm5462 = vcmp.lt.s32.totalorder %v5461, 2
    %vm5463 = vcmp.eq.s32.totalorder %v5461, 0
    %v5464 = vxor.u32 %v5458, 2147483648
    %v5465 = vsel %vm5463, %v5457, %v5464
    %vm5466 = vcmp.eq.s32.totalorder %v5461, 2
    %v5467 = vxor.u32 %v5457, 2147483648
    %v5468 = vsel %vm5466, %v5467, %v5458
    %v5469 = vsel %vm5462, %v5465, %v5468
    %v5470 = vsel %vm5459, nan, %v5469
    %v5471 = vand.u32 2147483647, %v2660
    %vm5472 = vcmp.le.f32.partialorder %v5471, 0.7853982
    %vm5473 = vcmp.lt.s32.totalorder %v2660, 0
    %v5474 = vand.u32 %v2660, 2139095040
    %v5475 = vshrl.u32 %v5474, 23
    %v5476 = vsub.s32 %v5475, 127
    %v5477 = vand.u32 2147483647, %v2660
    %v5478 = vand.u32 %v5477, 8388607
    %v5479 = vor.u32 %v5478, 8388608
    %v5480 = vsub.s32 0, %v5479
    %v5481 = vadd.s32 %v5476, 1
    %vm5482 = vcmp.gt.s32.totalorder %v5481, 0
    %v5483 = vsel %vm5482, %v5481, 0
    %v5484 = vshrl.u32 %v5483, 5
    %v5485 = vand.u32 %v5483, 31
    %v5486 = vsub.s32 32, %v5485
    %v5487 = vshrl.u32 683565275, %v5486
    %v5488 = vshll.u32 683565275, %v5485
    %v5489 = vshrl.u32 2475754826, %v5486
    %v5490 = vor.u32 %v5488, %v5489
    %v5491 = vshll.u32 2475754826, %v5485
    %v5492 = vshrl.u32 2131351028, %v5486
    %v5493 = vor.u32 %v5491, %v5492
    %v5494 = vshll.u32 2131351028, %v5485
    %v5495 = vshrl.u32 2102212464, %v5486
    %v5496 = vor.u32 %v5494, %v5495
    %v5497 = vshll.u32 2102212464, %v5485
    %v5498 = vshrl.u32 920167782, %v5486
    %v5499 = vor.u32 %v5497, %v5498
    %v5500 = vshll.u32 920167782, %v5485
    %v5501 = vshrl.u32 1326507024, %v5486
    %v5502 = vor.u32 %v5500, %v5501
    %vm5503 = vcmp.lt.s32.totalorder %v5484, 1
    %vm5504 = vcmp.lt.s32.totalorder %v5484, 2
    %vm5505 = vcmp.lt.s32.totalorder %v5484, 3
    %vm5506 = vcmp.lt.s32.totalorder %v5484, 4
    %v5507 = vsel %vm5503, %v5487, %v5490
    %v5508 = vsel %vm5506, %v5496, 2102212464
    %v5509 = vsel %vm5505, %v5493, %v5508
    %v5510 = vsel %vm5504, %v5507, %v5509
    %v5511 = vsel %vm5503, %v5490, %v5493
    %v5512 = vsel %vm5506, %v5499, 920167782
    %v5513 = vsel %vm5505, %v5496, %v5512
    %v5514 = vsel %vm5504, %v5511, %v5513
    %v5515 = vsel %vm5503, %v5493, %v5496
    %v5516 = vsel %vm5506, %v5502, 1326507024
    %v5517 = vsel %vm5505, %v5499, %v5516
    %v5518 = vsel %vm5504, %v5515, %v5517
    %v5519 = vshll.u32 %v5479, 8
    %v5520 = vmul.u32.u64.compose %v5519, %v5518
    %v5521 = vextract.low.u32 %v5520
    %v5522 = vextract.high.u32 %v5520
    %v5523 = vmul.u32.u64.compose %v5519, %v5514
    %v5524 = vextract.low.u32 %v5523
    %v5525 = vextract.high.u32 %v5523
    %v5526 = vmul.u32 %v5519, %v5510
    %v5527 = vadd.s32 %v5522, %v5524
    %vm5528 = vc.u32 %v5522, %v5524
    %v5529 = vadd.s32 %v5525, 1
    %v5530 = vsel %vm5528, %v5529, %v5525
    %v5531 = vadd.s32 %v5526, %v5530
    %v5532 = vadd.s32 %v5531, 536870912
    %v5533 = vshrl.u32 %v5532, 30
    %v5534 = vshll.u32 %v5533, 30
    %v5535 = vsub.s32 %v5531, %v5534
    %vm5536 = vcmp.lt.s32.totalorder %v5535, 0
    %v5537 = vsub.s32 0, %v5535
    %v5538 = vsel %vm5536, %v5537, %v5535
    %v5539 = vclz %v5538
    %v5540 = vsub.s32 %v5539, 2
    %vm5541 = vcmp.gt.s32.totalorder 0, %v5540
    %v5542 = vsel %vm5541, 0, %v5540
    %v5543 = vsub.s32 32, %v5542
    %v5544 = vshll.u32 %v5535, %v5542
    %v5545 = vshrl.u32 %v5527, %v5543
    %v5546 = vor.u32 %v5544, %v5545
    %v5547 = vsub.s32 4294967266, %v5542
    %v5548 = vadd.s32 %v5547, 127
    %v5549 = vshll.u32 %v5548, 23
    %v5550 = vor.u32 4788187, %v5549
    %v5551 = vand.u32 2147483647, %v5550
    %v5553 = vcvt.s32.f32 %v5546
    %v5554 = vmul.f32 %v5553, %v5551
    %v5555 = vxor.u32 %v5554, 2147483648
    %v5556 = vsel %vm5473, %v5555, %v5554
    %v5557 = vsub.s32 4, %v5533
    %v5558 = vsel %vm5473, %v5557, %v5533
    %v5559 = vsel %vm5472, %v2660, %v5556
    %v5560 = vsel %vm5472, 0, %v5558
    %v5561 = vcosq.f32.pop %v5559
    %v5562 = vsinq.f32.pop %v5559
    %vm5563 = vweird.f32 %v2660
    %v5564 = vadd.s32 %v5560, 3
    %v5565 = vand.u32 %v5564, 3
    %vm5566 = vcmp.lt.s32.totalorder %v5565, 2
    %vm5567 = vcmp.eq.s32.totalorder %v5565, 0
    %v5568 = vxor.u32 %v5562, 2147483648
    %v5569 = vsel %vm5567, %v5561, %v5568
    %vm5570 = vcmp.eq.s32.totalorder %v5565, 2
    %v5571 = vxor.u32 %v5561, 2147483648
    %v5572 = vsel %vm5570, %v5571, %v5562
    %v5573 = vsel %vm5566, %v5569, %v5572
    %v5574 = vsel %vm5563, nan, %v5573
    %v5575 = vand.u32 2147483647, %v2661
    %vm5576 = vcmp.le.f32.partialorder %v5575, 0.7853982
    %vm5577 = vcmp.lt.s32.totalorder %v2661, 0
    %v5578 = vand.u32 %v2661, 2139095040
    %v5579 = vshrl.u32 %v5578, 23
    %v5580 = vsub.s32 %v5579, 127
    %v5581 = vand.u32 2147483647, %v2661
    %v5582 = vand.u32 %v5581, 8388607
    %v5583 = vor.u32 %v5582, 8388608
    %v5584 = vsub.s32 0, %v5583
    %v5585 = vadd.s32 %v5580, 1
    %vm5586 = vcmp.gt.s32.totalorder %v5585, 0
    %v5587 = vsel %vm5586, %v5585, 0
    %v5588 = vshrl.u32 %v5587, 5
    %v5589 = vand.u32 %v5587, 31
    %v5590 = vsub.s32 32, %v5589
    %v5591 = vshrl.u32 683565275, %v5590
    %v5592 = vshll.u32 683565275, %v5589
    %v5593 = vshrl.u32 2475754826, %v5590
    %v5594 = vor.u32 %v5592, %v5593
    %v5595 = vshll.u32 2475754826, %v5589
    %v5596 = vshrl.u32 2131351028, %v5590
    %v5597 = vor.u32 %v5595, %v5596
    %v5598 = vshll.u32 2131351028, %v5589
    %v5599 = vshrl.u32 2102212464, %v5590
    %v5600 = vor.u32 %v5598, %v5599
    %v5601 = vshll.u32 2102212464, %v5589
    %v5602 = vshrl.u32 920167782, %v5590
    %v5603 = vor.u32 %v5601, %v5602
    %v5604 = vshll.u32 920167782, %v5589
    %v5605 = vshrl.u32 1326507024, %v5590
    %v5606 = vor.u32 %v5604, %v5605
    %vm5607 = vcmp.lt.s32.totalorder %v5588, 1
    %vm5608 = vcmp.lt.s32.totalorder %v5588, 2
    %vm5609 = vcmp.lt.s32.totalorder %v5588, 3
    %vm5610 = vcmp.lt.s32.totalorder %v5588, 4
    %v5611 = vsel %vm5607, %v5591, %v5594
    %v5612 = vsel %vm5610, %v5600, 2102212464
    %v5613 = vsel %vm5609, %v5597, %v5612
    %v5614 = vsel %vm5608, %v5611, %v5613
    %v5615 = vsel %vm5607, %v5594, %v5597
    %v5616 = vsel %vm5610, %v5603, 920167782
    %v5617 = vsel %vm5609, %v5600, %v5616
    %v5618 = vsel %vm5608, %v5615, %v5617
    %v5619 = vsel %vm5607, %v5597, %v5600
    %v5620 = vsel %vm5610, %v5606, 1326507024
    %v5621 = vsel %vm5609, %v5603, %v5620
    %v5622 = vsel %vm5608, %v5619, %v5621
    %v5623 = vshll.u32 %v5583, 8
    %v5624 = vmul.u32.u64.compose %v5623, %v5622
    %v5625 = vextract.low.u32 %v5624
    %v5626 = vextract.high.u32 %v5624
    %v5627 = vmul.u32.u64.compose %v5623, %v5618
    %v5628 = vextract.low.u32 %v5627
    %v5629 = vextract.high.u32 %v5627
    %v5630 = vmul.u32 %v5623, %v5614
    %v5631 = vadd.s32 %v5626, %v5628
    %vm5632 = vc.u32 %v5626, %v5628
    %v5633 = vadd.s32 %v5629, 1
    %v5634 = vsel %vm5632, %v5633, %v5629
    %v5635 = vadd.s32 %v5630, %v5634
    %v5636 = vadd.s32 %v5635, 536870912
    %v5637 = vshrl.u32 %v5636, 30
    %v5638 = vshll.u32 %v5637, 30
    %v5639 = vsub.s32 %v5635, %v5638
    %vm5640 = vcmp.lt.s32.totalorder %v5639, 0
    %v5641 = vsub.s32 0, %v5639
    %v5642 = vsel %vm5640, %v5641, %v5639
    %v5643 = vclz %v5642
    %v5644 = vsub.s32 %v5643, 2
    %vm5645 = vcmp.gt.s32.totalorder 0, %v5644
    %v5646 = vsel %vm5645, 0, %v5644
    %v5647 = vsub.s32 32, %v5646
    %v5648 = vshll.u32 %v5639, %v5646
    %v5649 = vshrl.u32 %v5631, %v5647
    %v5650 = vor.u32 %v5648, %v5649
    %v5651 = vsub.s32 4294967266, %v5646
    %v5652 = vadd.s32 %v5651, 127
    %v5653 = vshll.u32 %v5652, 23
    %v5654 = vor.u32 4788187, %v5653
    %v5655 = vand.u32 2147483647, %v5654
    %v5657 = vcvt.s32.f32 %v5650
    %v5658 = vmul.f32 %v5657, %v5655
    %v5659 = vxor.u32 %v5658, 2147483648
    %v5660 = vsel %vm5577, %v5659, %v5658
    %v5661 = vsub.s32 4, %v5637
    %v5662 = vsel %vm5577, %v5661, %v5637
    %v5663 = vsel %vm5576, %v2661, %v5660
    %v5664 = vsel %vm5576, 0, %v5662
    %v5665 = vcosq.f32.pop %v5663
    %v5666 = vsinq.f32.pop %v5663
    %vm5667 = vweird.f32 %v2661
    %v5668 = vadd.s32 %v5664, 3
    %v5669 = vand.u32 %v5668, 3
    %vm5670 = vcmp.lt.s32.totalorder %v5669, 2
    %vm5671 = vcmp.eq.s32.totalorder %v5669, 0
    %v5672 = vxor.u32 %v5666, 2147483648
    %v5673 = vsel %vm5671, %v5665, %v5672
    %vm5674 = vcmp.eq.s32.totalorder %v5669, 2
    %v5675 = vxor.u32 %v5665, 2147483648
    %v5676 = vsel %vm5674, %v5675, %v5666
    %v5677 = vsel %vm5670, %v5673, %v5676
    %v5678 = vsel %vm5667, nan, %v5677
    %v5679 = vand.u32 2147483647, %v2662
    %vm5680 = vcmp.le.f32.partialorder %v5679, 0.7853982
    %vm5681 = vcmp.lt.s32.totalorder %v2662, 0
    %v5682 = vand.u32 %v2662, 2139095040
    %v5683 = vshrl.u32 %v5682, 23
    %v5684 = vsub.s32 %v5683, 127
    %v5685 = vand.u32 2147483647, %v2662
    %v5686 = vand.u32 %v5685, 8388607
    %v5687 = vor.u32 %v5686, 8388608
    %v5688 = vsub.s32 0, %v5687
    %v5689 = vadd.s32 %v5684, 1
    %vm5690 = vcmp.gt.s32.totalorder %v5689, 0
    %v5691 = vsel %vm5690, %v5689, 0
    %v5692 = vshrl.u32 %v5691, 5
    %v5693 = vand.u32 %v5691, 31
    %v5694 = vsub.s32 32, %v5693
    %v5695 = vshrl.u32 683565275, %v5694
    %v5696 = vshll.u32 683565275, %v5693
    %v5697 = vshrl.u32 2475754826, %v5694
    %v5698 = vor.u32 %v5696, %v5697
    %v5699 = vshll.u32 2475754826, %v5693
    %v5700 = vshrl.u32 2131351028, %v5694
    %v5701 = vor.u32 %v5699, %v5700
    %v5702 = vshll.u32 2131351028, %v5693
    %v5703 = vshrl.u32 2102212464, %v5694
    %v5704 = vor.u32 %v5702, %v5703
    %v5705 = vshll.u32 2102212464, %v5693
    %v5706 = vshrl.u32 920167782, %v5694
    %v5707 = vor.u32 %v5705, %v5706
    %v5708 = vshll.u32 920167782, %v5693
    %v5709 = vshrl.u32 1326507024, %v5694
    %v5710 = vor.u32 %v5708, %v5709
    %vm5711 = vcmp.lt.s32.totalorder %v5692, 1
    %vm5712 = vcmp.lt.s32.totalorder %v5692, 2
    %vm5713 = vcmp.lt.s32.totalorder %v5692, 3
    %vm5714 = vcmp.lt.s32.totalorder %v5692, 4
    %v5715 = vsel %vm5711, %v5695, %v5698
    %v5716 = vsel %vm5714, %v5704, 2102212464
    %v5717 = vsel %vm5713, %v5701, %v5716
    %v5718 = vsel %vm5712, %v5715, %v5717
    %v5719 = vsel %vm5711, %v5698, %v5701
    %v5720 = vsel %vm5714, %v5707, 920167782
    %v5721 = vsel %vm5713, %v5704, %v5720
    %v5722 = vsel %vm5712, %v5719, %v5721
    %v5723 = vsel %vm5711, %v5701, %v5704
    %v5724 = vsel %vm5714, %v5710, 1326507024
    %v5725 = vsel %vm5713, %v5707, %v5724
    %v5726 = vsel %vm5712, %v5723, %v5725
    %v5727 = vshll.u32 %v5687, 8
    %v5728 = vmul.u32.u64.compose %v5727, %v5726
    %v5729 = vextract.low.u32 %v5728
    %v5730 = vextract.high.u32 %v5728
    %v5731 = vmul.u32.u64.compose %v5727, %v5722
    %v5732 = vextract.low.u32 %v5731
    %v5733 = vextract.high.u32 %v5731
    %v5734 = vmul.u32 %v5727, %v5718
    %v5735 = vadd.s32 %v5730, %v5732
    %vm5736 = vc.u32 %v5730, %v5732
    %v5737 = vadd.s32 %v5733, 1
    %v5738 = vsel %vm5736, %v5737, %v5733
    %v5739 = vadd.s32 %v5734, %v5738
    %v5740 = vadd.s32 %v5739, 536870912
    %v5741 = vshrl.u32 %v5740, 30
    %v5742 = vshll.u32 %v5741, 30
    %v5743 = vsub.s32 %v5739, %v5742
    %vm5744 = vcmp.lt.s32.totalorder %v5743, 0
    %v5745 = vsub.s32 0, %v5743
    %v5746 = vsel %vm5744, %v5745, %v5743
    %v5747 = vclz %v5746
    %v5748 = vsub.s32 %v5747, 2
    %vm5749 = vcmp.gt.s32.totalorder 0, %v5748
    %v5750 = vsel %vm5749, 0, %v5748
    %v5751 = vsub.s32 32, %v5750
    %v5752 = vshll.u32 %v5743, %v5750
    %v5753 = vshrl.u32 %v5735, %v5751
    %v5754 = vor.u32 %v5752, %v5753
    %v5755 = vsub.s32 4294967266, %v5750
    %v5756 = vadd.s32 %v5755, 127
    %v5757 = vshll.u32 %v5756, 23
    %v5758 = vor.u32 4788187, %v5757
    %v5759 = vand.u32 2147483647, %v5758
    %v5761 = vcvt.s32.f32 %v5754
    %v5762 = vmul.f32 %v5761, %v5759
    %v5763 = vxor.u32 %v5762, 2147483648
    %v5764 = vsel %vm5681, %v5763, %v5762
    %v5765 = vsub.s32 4, %v5741
    %v5766 = vsel %vm5681, %v5765, %v5741
    %v5767 = vsel %vm5680, %v2662, %v5764
    %v5768 = vsel %vm5680, 0, %v5766
    %v5769 = vcosq.f32.pop %v5767
    %v5770 = vsinq.f32.pop %v5767
    %vm5771 = vweird.f32 %v2662
    %v5772 = vadd.s32 %v5768, 3
    %v5773 = vand.u32 %v5772, 3
    %vm5774 = vcmp.lt.s32.totalorder %v5773, 2
    %vm5775 = vcmp.eq.s32.totalorder %v5773, 0
    %v5776 = vxor.u32 %v5770, 2147483648
    %v5777 = vsel %vm5775, %v5769, %v5776
    %vm5778 = vcmp.eq.s32.totalorder %v5773, 2
    %v5779 = vxor.u32 %v5769, 2147483648
    %v5780 = vsel %vm5778, %v5779, %v5770
    %v5781 = vsel %vm5774, %v5777, %v5780
    %v5782 = vsel %vm5771, nan, %v5781
    %5783 = vst [vmem:[#allocation10] sm:$0xff] %v2766
    %5784 = vst [vmem:[#allocation10 + $0x8] sm:$0xff] %v2870
    %5785 = vst [vmem:[#allocation10 + $0x10] sm:$0xff] %v2974
    %5786 = vst [vmem:[#allocation10 + $0x18] sm:$0xff] %v3078
    %5787 = vst [vmem:[#allocation10 + $0x20] sm:$0xff] %v3182
    %5788 = vst [vmem:[#allocation10 + $0x28] sm:$0xff] %v3286
    %5789 = vst [vmem:[#allocation10 + $0x30] sm:$0xff] %v3390
    %5790 = vst [vmem:[#allocation10 + $0x38] sm:$0xff] %v3494
    %5791 = vst [vmem:[#allocation10 + $0x40] sm:$0xff] %v3598
    %5792 = vst [vmem:[#allocation10 + $0x48] sm:$0xff] %v3702
    %5793 = vst [vmem:[#allocation10 + $0x50] sm:$0xff] %v3806
    %5794 = vst [vmem:[#allocation10 + $0x58] sm:$0xff] %v3910
    %5795 = vst [vmem:[#allocation10 + $0x60] sm:$0xff] %v4014
    %5796 = vst [vmem:[#allocation10 + $0x68] sm:$0xff] %v4118
    %5797 = vst [vmem:[#allocation10 + $0x70] sm:$0xff] %v4222
    %5798 = vst [vmem:[#allocation10 + $0x78] sm:$0xff] %v4326
    %5799 = vst [vmem:[#allocation10 + $0x80] sm:$0xff] %v4430
    %5800 = vst [vmem:[#allocation10 + $0x88] sm:$0xff] %v4534
    %5801 = vst [vmem:[#allocation10 + $0x90] sm:$0xff] %v4638
    %5802 = vst [vmem:[#allocation10 + $0x98] sm:$0xff] %v4742
    %5803 = vst [vmem:[#allocation10 + $0xa0] sm:$0xff] %v4846
    %5804 = vst [vmem:[#allocation10 + $0xa8] sm:$0xff] %v4950
    %5805 = vst [vmem:[#allocation10 + $0xb0] sm:$0xff] %v5054
    %5806 = vst [vmem:[#allocation10 + $0xb8] sm:$0xff] %v5158
    %5807 = vst [vmem:[#allocation10 + $0xc0] sm:$0xff] %v5262
    %5808 = vst [vmem:[#allocation10 + $0xc8] sm:$0xff] %v5366
    %5809 = vst [vmem:[#allocation10 + $0xd0] sm:$0xff] %v5470
    %5810 = vst [vmem:[#allocation10 + $0xd8] sm:$0xff] %v5574
    %5811 = vst [vmem:[#allocation10 + $0xe0] sm:$0xff] %v5678
    %5812 = vst [vmem:[#allocation10 + $0xe8] sm:$0xff] %v5782
    // Predicated region
    $region34: #{tpu_custom_call.1} parent=1 // pred_check
      _
    $region35: #{tpu_custom_call.1} parent=1 // pred_check_branch
      %5814 = sbr.rel (0) target = $region37
    $region36: #{tpu_custom_call.1} parent=1 // pred_region
      %s5816 = ssub.s32 3840, 3840
      %5817 = vsyncadd [#allocation4], %s5816
      %s5818 = sshll.u32 [#allocation10], 4
      %s5819 = int_to_ptr.vmem [resolvable:$true] %s5818
      %5824 = dma.vmem_to_hbm [thread:$0]  %s5819, 3840, %s4, [#allocation4], 1920, 1920, 120
    $region37: #{tpu_custom_call.1} parent=1 // pred_fallthru
      _
    // Predicated region
    $region38: #{tpu_custom_call.1} parent=1 // pred_check
      _
    $region39: #{tpu_custom_call.1} parent=1 // pred_check_branch
      %5826 = sbr.rel (0) target = $region41
    $region40: #{tpu_custom_call.1} parent=1 // pred_region
      %5827 = dma.done [#allocation4], 3840
    $region41: #{tpu_custom_call.1} parent=1 // pred_fallthru
      _
    %5828 = vsyncpa [#allocation3], 1
    %5829 = vsyncpa [#allocation6], 1
    %5830 = vsyncpa [#allocation9], 1
    %5831 = vsyncpa [#allocation4], 1

</llo_original>
